<compile_context>
chip_gen: v7x
topology: tpu7x:2x2x1
jax: 0.10.0
libtpu: 0.0.40
codegen_flags: <defaults>
</compile_context>

<pallas_src>
import math

import numpy as np
import jax
import jax.numpy as jnp
from jax import lax
from jax.experimental import pallas as pl
from jax.experimental.pallas import tpu as pltpu

# ----- model hyper-parameters (small, consistent with the module) -----
D_MODEL = 32
NHEAD = 4            # must be even for the torch module's checks
HEAD_DIM = D_MODEL // NHEAD
DIM_FF = 64
SEQ = 8
BATCH = 2
N_SRC = 2
EPS = 1e-5

ROWS_PER_SRC = SEQ * BATCH            # 16 rows per source
N_ROWS = N_SRC * ROWS_PER_SRC         # 32 rows total
LANES = 128                           # lane-dense parameter slab width

# ----- packed parameter-slab row layout (all multiples of 8 where it matters) -----
ROW_P    = 0                          # (32, 32) row permutation  (s,b) -> (b,s)
ROW_PT   = ROW_P + N_ROWS             # (32, 32) inverse permutation
ROW_WQKV = ROW_PT + N_ROWS            # (32, 96) fused, pre-transposed QKV weight
ROW_WO   = ROW_WQKV + D_MODEL         # (32, 32) output projection (in -> out)
ROW_W1   = ROW_WO + D_MODEL           # (32, 64) FF linear1 (pre-transposed)
ROW_W2   = ROW_W1 + D_MODEL           # (64, 32) FF linear2 (pre-transposed)
ROW_VEC  = ROW_W2 + DIM_FF            # 8 rows of small per-feature vectors
SLAB_ROWS = ((ROW_VEC + 8 + 7) // 8) * 8   # = 232


def _layernorm(x, w, b):
    mu = jnp.mean(x, axis=-1, keepdims=True)
    var = jnp.mean((x - mu) ** 2, axis=-1, keepdims=True)
    return (x - mu) * lax.rsqrt(var + EPS) * w + b


def encoder_layer_kernel(x0_ref, x1_ref, slab_ref, out0_ref, out1_ref):
    f32 = jnp.float32

    # ---- parameters: static sub-views of the single packed slab ----
    P    = slab_ref[ROW_P:ROW_P + N_ROWS, 0:N_ROWS]
    Pt   = slab_ref[ROW_PT:ROW_PT + N_ROWS, 0:N_ROWS]
    wqkv = slab_ref[ROW_WQKV:ROW_WQKV + D_MODEL, 0:3 * D_MODEL]
    wo   = slab_ref[ROW_WO:ROW_WO + D_MODEL, 0:D_MODEL]
    w1   = slab_ref[ROW_W1:ROW_W1 + D_MODEL, 0:DIM_FF]
    w2   = slab_ref[ROW_W2:ROW_W2 + DIM_FF, 0:D_MODEL]
    bqkv = slab_ref[ROW_VEC + 0:ROW_VEC + 1, 0:3 * D_MODEL]
    b1   = slab_ref[ROW_VEC + 1:ROW_VEC + 2, 0:DIM_FF]
    bo   = slab_ref[ROW_VEC + 2:ROW_VEC + 3, 0:D_MODEL]
    n1w  = slab_ref[ROW_VEC + 3:ROW_VEC + 4, 0:D_MODEL]
    n1b  = slab_ref[ROW_VEC + 4:ROW_VEC + 5, 0:D_MODEL]
    n2w  = slab_ref[ROW_VEC + 5:ROW_VEC + 6, 0:D_MODEL]
    n2b  = slab_ref[ROW_VEC + 6:ROW_VEC + 7, 0:D_MODEL]
    b2   = slab_ref[ROW_VEC + 7:ROW_VEC + 8, 0:D_MODEL]

    # ---- inputs in native (S, B, D) layout; flatten rows (s-major, b-minor) ----
    x0 = x0_ref[...].reshape(ROWS_PER_SRC, D_MODEL).astype(f32)
    x1 = x1_ref[...].reshape(ROWS_PER_SRC, D_MODEL).astype(f32)
    x = jnp.concatenate([x0, x1], axis=0)                        # (32, 32)

    # reorder rows (src, s, b) -> (src, b, s) with one permutation matmul so
    # the attention batch dim is contiguous (replaces host-side transposes).
    xp = jnp.dot(P, x, preferred_element_type=f32)               # (32, 32)

    # ---- fused QKV projection: one MXU push ----
    qkv = jnp.dot(xp, wqkv, preferred_element_type=f32) + bqkv   # (32, 96)
    q = qkv[:, 0 * D_MODEL:1 * D_MODEL].reshape(N_SRC * BATCH, SEQ, D_MODEL)
    k = qkv[:, 1 * D_MODEL:2 * D_MODEL].reshape(N_SRC * BATCH, SEQ, D_MODEL)
    v = qkv[:, 2 * D_MODEL:3 * D_MODEL].reshape(N_SRC * BATCH, SEQ, D_MODEL)

    # ---- multi-head self attention, batched over (source x batch) = 4 ----
    scale = 1.0 / math.sqrt(HEAD_DIM)
    heads = []
    for h in range(NHEAD):
        sl = slice(h * HEAD_DIM, (h + 1) * HEAD_DIM)
        s = jnp.einsum("bqd,bkd->bqk", q[:, :, sl], k[:, :, sl],
                       preferred_element_type=f32) * scale        # (4, 8, 8)
        s = s - jnp.max(s, axis=-1, keepdims=True)
        p = jnp.exp(s)
        p = p / jnp.sum(p, axis=-1, keepdims=True)                # exact softmax
        heads.append(jnp.einsum("bqk,bkd->bqd", p, v[:, :, sl],
                                preferred_element_type=f32))      # (4, 8, 8)
    o = jnp.concatenate(heads, axis=-1).reshape(N_ROWS, D_MODEL)  # (32, 32)

    # single K=D output projection (instead of per-head K=8 matmuls)
    attn = jnp.dot(o, wo, preferred_element_type=f32) + bo        # (32, 32)

    # TODO(synk): dropout / dropout1 / dropout2 are identity (eval-mode semantics).

    # ---- residual + norm1 (post-norm) ----
    h1 = _layernorm(xp + attn, n1w, n1b)

    # ---- feed-forward ----
    ff = jnp.maximum(jnp.dot(h1, w1, preferred_element_type=f32) + b1, 0.0)
    ff = jnp.dot(ff, w2, preferred_element_type=f32) + b2

    # ---- residual + norm2 ----
    y = _layernorm(h1 + ff, n2w, n2b)                             # (32, 32)

    # restore the native (src, s, b) row order and store as (S, B, D)
    yo = jnp.dot(Pt, y, preferred_element_type=f32)
    out0_ref[...] = yo[0:ROWS_PER_SRC].reshape(SEQ, BATCH, D_MODEL).astype(out0_ref.dtype)
    out1_ref[...] = yo[ROWS_PER_SRC:N_ROWS].reshape(SEQ, BATCH, D_MODEL).astype(out1_ref.dtype)


@jax.jit
def transformer_encoder_layer_forward(src0, src1, slab):
    """Mimics TransformerEncoderLayer.forward with name='self',
    norm_first=False, no masks, eval mode.
    src0, src1: (S, B, D) as in PyTorch batch_first=False. Returns a tuple."""
    cost = pl.CostEstimate(flops=700_000, transcendentals=1_100,
                           bytes_accessed=130_000)
    return pl.pallas_call(
        encoder_layer_kernel,
        out_shape=(jax.ShapeDtypeStruct(src0.shape, src0.dtype),
                   jax.ShapeDtypeStruct(src1.shape, src1.dtype)),
        cost_estimate=cost,
    )(src0, src1, slab)


def build_param_slab(params):
    """Host-side, done once: fuse/transposes weights, build permutations,
    pack everything into one lane-dense (SLAB_ROWS, 128) f32 slab."""
    slab = np.zeros((SLAB_ROWS, LANES), np.float32)

    # permutation: target row r' = src*R + b*S + s  takes source row src*R + s*B + b
    rp = np.arange(N_ROWS)
    src = rp // ROWS_PER_SRC
    rem = rp % ROWS_PER_SRC
    b = rem // SEQ
    s = rem % SEQ
    src_row = src * ROWS_PER_SRC + s * BATCH + b
    P = np.zeros((N_ROWS, N_ROWS), np.float32)
    P[rp, src_row] = 1.0
    slab[ROW_P:ROW_P + N_ROWS, 0:N_ROWS] = P
    slab[ROW_PT:ROW_PT + N_ROWS, 0:N_ROWS] = P.T

    wqkv_t = np.concatenate([np.asarray(params["wq"]).T,
                             np.asarray(params["wk"]).T,
                             np.asarray(params["wv"]).T], axis=1)      # (D, 3D)
    slab[ROW_WQKV:ROW_WQKV + D_MODEL, 0:3 * D_MODEL] = wqkv_t
    slab[ROW_WO:ROW_WO + D_MODEL, 0:D_MODEL] = np.asarray(params["wo"]).T
    slab[ROW_W1:ROW_W1 + D_MODEL, 0:DIM_FF] = np.asarray(params["w1"]).T
    slab[ROW_W2:ROW_W2 + DIM_FF, 0:D_MODEL] = np.asarray(params["w2"]).T

    slab[ROW_VEC + 0, 0:3 * D_MODEL] = np.concatenate(
        [np.asarray(params["bq"])[0], np.asarray(params["bk"])[0],
         np.asarray(params["bv"])[0]])
    slab[ROW_VEC + 1, 0:DIM_FF]  = np.asarray(params["b1"])[0]
    slab[ROW_VEC + 2, 0:D_MODEL] = np.asarray(params["bo"])[0]
    slab[ROW_VEC + 3, 0:D_MODEL] = np.asarray(params["n1w"])[0]
    slab[ROW_VEC + 4, 0:D_MODEL] = np.asarray(params["n1b"])[0]
    slab[ROW_VEC + 5, 0:D_MODEL] = np.asarray(params["n2w"])[0]
    slab[ROW_VEC + 6, 0:D_MODEL] = np.asarray(params["n2b"])[0]
    slab[ROW_VEC + 7, 0:D_MODEL] = np.asarray(params["b2"])[0]
    return jnp.asarray(slab)


# ----------------- pure-JAX reference (for sanity check) -----------------
_P_HI = lax.Precision.HIGHEST


def _ref_layer(x, params):   # x: (B, S, D)
    q = jnp.dot(x, params["wq"].T, precision=_P_HI) + params["bq"][0]
    k = jnp.dot(x, params["wk"].T, precision=_P_HI) + params["bk"][0]
    v = jnp.dot(x, params["wv"].T, precision=_P_HI) + params["bv"][0]
    B, S, D = x.shape

    def split(t):
        return t.reshape(B, S, NHEAD, HEAD_DIM).transpose(0, 2, 1, 3)

    qh, kh, vh = split(q), split(k), split(v)
    s = jnp.einsum("bhqd,bhkd->bhqk", qh, kh, precision=_P_HI) / math.sqrt(HEAD_DIM)
    p = jax.nn.softmax(s, axis=-1)
    a = jnp.einsum("bhqk,bhkd->bhqd", p, vh,
                   precision=_P_HI).transpose(0, 2, 1, 3).reshape(B, S, D)
    a = jnp.dot(a, params["wo"].T, precision=_P_HI) + params["bo"][0]
    h1 = _layernorm(x + a, params["n1w"][0], params["n1b"][0])
    ff = jnp.maximum(jnp.dot(h1, params["w1"].T, precision=_P_HI) + params["b1"][0], 0.0)
    ff = jnp.dot(ff, params["w2"].T, precision=_P_HI) + params["b2"][0]
    return _layernorm(h1 + ff, params["n2w"][0], params["n2b"][0])


def init_params(key):
    ks = jax.random.split(key, 10)

    def u(k, shape, fan_in):
        lim = 1.0 / math.sqrt(fan_in)
        return jax.random.uniform(k, shape, jnp.float32, -lim, lim)

    in_proj = u(ks[0], (3 * D_MODEL, D_MODEL), D_MODEL)
    in_bias = u(ks[7], (3 * D_MODEL,), D_MODEL)
    return {
        "wq": in_proj[0 * D_MODEL:1 * D_MODEL],
        "wk": in_proj[1 * D_MODEL:2 * D_MODEL],
        "wv": in_proj[2 * D_MODEL:3 * D_MODEL],
        "bq": in_bias[0 * D_MODEL:1 * D_MODEL].reshape(1, D_MODEL),
        "bk": in_bias[1 * D_MODEL:2 * D_MODEL].reshape(1, D_MODEL),
        "bv": in_bias[2 * D_MODEL:3 * D_MODEL].reshape(1, D_MODEL),
        "wo": u(ks[1], (D_MODEL, D_MODEL), D_MODEL),
        "bo": u(ks[2], (1, D_MODEL), D_MODEL),
        "n1w": jnp.ones((1, D_MODEL), jnp.float32),
        "n1b": jnp.zeros((1, D_MODEL), jnp.float32),
        "n2w": jnp.ones((1, D_MODEL), jnp.float32),
        "n2b": jnp.zeros((1, D_MODEL), jnp.float32),
        "w1": u(ks[3], (DIM_FF, D_MODEL), D_MODEL),
        "b1": u(ks[4], (1, DIM_FF), D_MODEL),
        "w2": u(ks[5], (D_MODEL, DIM_FF), DIM_FF),
        "b2": u(ks[6], (1, D_MODEL), DIM_FF),
    }


if __name__ == "__main__":
    key = jax.random.PRNGKey(0)
    kp, k0, k1 = jax.random.split(key, 3)
    params = init_params(kp)
    slab = build_param_slab(params)   # one-time host-side packing

    # PyTorch batch_first=False layout: (seq, batch, d_model)
    src0 = jax.random.normal(k0, (SEQ, BATCH, D_MODEL), jnp.float32)
    src1 = jax.random.normal(k1, (SEQ, BATCH, D_MODEL), jnp.float32)

    out0, out1 = transformer_encoder_layer_forward(src0, src1, slab)
    out0, out1 = jax.block_until_ready((out0, out1))

    # sanity check against a high-precision pure-JAX reference (exact softmax
    # reciprocal in the kernel -> tight tolerance).
    ref0 = jnp.transpose(_ref_layer(jnp.transpose(src0, (1, 0, 2)), params), (1, 0, 2))
    ref1 = jnp.transpose(_ref_layer(jnp.transpose(src1, (1, 0, 2)), params), (1, 0, 2))
    assert out0.shape == (SEQ, BATCH, D_MODEL) and out1.shape == (SEQ, BATCH, D_MODEL)
    assert jnp.allclose(out0, ref0, atol=1e-3, rtol=1e-3)
    assert jnp.allclose(out1, ref1, atol=1e-3, rtol=1e-3)

    print("KERNEL_OK")
</pallas_src>

<mosaic_0001>
module attributes {stable_mosaic.version = 11 : i64} {
  func.func @encoder_layer_kernel(%arg0: memref<8x2x32xf32, #tpu.memory_space<vmem>>, %arg1: memref<8x2x32xf32, #tpu.memory_space<vmem>>, %arg2: memref<232x128xf32, #tpu.memory_space<vmem>>, %arg3: memref<8x2x32xf32, #tpu.memory_space<vmem>>, %arg4: memref<8x2x32xf32, #tpu.memory_space<vmem>>) attributes {dimension_semantics = [], scalar_prefetch = 0 : i64, scratch_operands = 0 : i64, tpu.core_type = #tpu.core_type<tc>} {
    %c0 = arith.constant 0 : index
    %c0_0 = arith.constant 0 : index
    %0 = vector.load %arg2[%c0, %c0_0] : memref<232x128xf32, #tpu.memory_space<vmem>>, vector<32x32xf32>
    %c32 = arith.constant 32 : index
    %c0_1 = arith.constant 0 : index
    %1 = vector.load %arg2[%c32, %c0_1] : memref<232x128xf32, #tpu.memory_space<vmem>>, vector<32x32xf32>
    %c64 = arith.constant 64 : index
    %c0_2 = arith.constant 0 : index
    %2 = vector.load %arg2[%c64, %c0_2] : memref<232x128xf32, #tpu.memory_space<vmem>>, vector<32x96xf32>
    %c96 = arith.constant 96 : index
    %c0_3 = arith.constant 0 : index
    %3 = vector.load %arg2[%c96, %c0_3] : memref<232x128xf32, #tpu.memory_space<vmem>>, vector<32x32xf32>
    %c128 = arith.constant 128 : index
    %c0_4 = arith.constant 0 : index
    %4 = vector.load %arg2[%c128, %c0_4] : memref<232x128xf32, #tpu.memory_space<vmem>>, vector<32x64xf32>
    %c160 = arith.constant 160 : index
    %c0_5 = arith.constant 0 : index
    %5 = vector.load %arg2[%c160, %c0_5] : memref<232x128xf32, #tpu.memory_space<vmem>>, vector<64x32xf32>
    %c224 = arith.constant 224 : index
    %c0_6 = arith.constant 0 : index
    %6 = vector.load %arg2[%c224, %c0_6] : memref<232x128xf32, #tpu.memory_space<vmem>>, vector<1x96xf32>
    %c225 = arith.constant 225 : index
    %c0_7 = arith.constant 0 : index
    %7 = vector.load %arg2[%c225, %c0_7] : memref<232x128xf32, #tpu.memory_space<vmem>>, vector<1x64xf32>
    %c226 = arith.constant 226 : index
    %c0_8 = arith.constant 0 : index
    %8 = vector.load %arg2[%c226, %c0_8] : memref<232x128xf32, #tpu.memory_space<vmem>>, vector<1x32xf32>
    %c227 = arith.constant 227 : index
    %c0_9 = arith.constant 0 : index
    %9 = vector.load %arg2[%c227, %c0_9] : memref<232x128xf32, #tpu.memory_space<vmem>>, vector<1x32xf32>
    %c228 = arith.constant 228 : index
    %c0_10 = arith.constant 0 : index
    %10 = vector.load %arg2[%c228, %c0_10] : memref<232x128xf32, #tpu.memory_space<vmem>>, vector<1x32xf32>
    %c229 = arith.constant 229 : index
    %c0_11 = arith.constant 0 : index
    %11 = vector.load %arg2[%c229, %c0_11] : memref<232x128xf32, #tpu.memory_space<vmem>>, vector<1x32xf32>
    %c230 = arith.constant 230 : index
    %c0_12 = arith.constant 0 : index
    %12 = vector.load %arg2[%c230, %c0_12] : memref<232x128xf32, #tpu.memory_space<vmem>>, vector<1x32xf32>
    %c231 = arith.constant 231 : index
    %c0_13 = arith.constant 0 : index
    %13 = vector.load %arg2[%c231, %c0_13] : memref<232x128xf32, #tpu.memory_space<vmem>>, vector<1x32xf32>
    %c0_14 = arith.constant 0 : index
    %c0_15 = arith.constant 0 : index
    %c0_16 = arith.constant 0 : index
    %14 = vector.load %arg0[%c0_14, %c0_15, %c0_16] : memref<8x2x32xf32, #tpu.memory_space<vmem>>, vector<8x2x32xf32>
    %15 = vector.shape_cast %14 : vector<8x2x32xf32> to vector<16x32xf32>
    %c0_17 = arith.constant 0 : index
    %c0_18 = arith.constant 0 : index
    %c0_19 = arith.constant 0 : index
    %16 = vector.load %arg1[%c0_17, %c0_18, %c0_19] : memref<8x2x32xf32, #tpu.memory_space<vmem>>, vector<8x2x32xf32>
    %17 = vector.shape_cast %16 : vector<8x2x32xf32> to vector<16x32xf32>
    %18 = tpu.concatenate %15, %17 in 0 : vector<16x32xf32>, vector<16x32xf32> -> vector<32x32xf32>
    %cst = arith.constant dense<0.000000e+00> : vector<32x32xf32>
    %19 = tpu.matmul %0, %18, %cst {dimension_numbers = #tpu.dot_dimension_numbers<[1], [0], [0], [1], [0, 0, 1, 1], [], []>} : vector<32x32xf32>, vector<32x32xf32>, vector<32x32xf32> -> vector<32x32xf32>
    %cst_20 = arith.constant dense<0.000000e+00> : vector<32x96xf32>
    %20 = tpu.matmul %19, %2, %cst_20 {dimension_numbers = #tpu.dot_dimension_numbers<[1], [0], [0], [1], [0, 0, 1, 1], [], []>} : vector<32x32xf32>, vector<32x96xf32>, vector<32x96xf32> -> vector<32x96xf32>
    %21 = vector.broadcast %6 : vector<1x96xf32> to vector<32x96xf32>
    %22 = arith.addf %20, %21 : vector<32x96xf32>
    %23 = vector.extract_strided_slice %22 {offsets = [0, 0], sizes = [32, 32], strides = [1, 1]} : vector<32x96xf32> to vector<32x32xf32>
    %24 = vector.shape_cast %23 : vector<32x32xf32> to vector<4x8x32xf32>
    %25 = vector.extract_strided_slice %22 {offsets = [0, 32], sizes = [32, 32], strides = [1, 1]} : vector<32x96xf32> to vector<32x32xf32>
    %26 = vector.shape_cast %25 : vector<32x32xf32> to vector<4x8x32xf32>
    %27 = vector.extract_strided_slice %22 {offsets = [0, 64], sizes = [32, 32], strides = [1, 1]} : vector<32x96xf32> to vector<32x32xf32>
    %28 = vector.shape_cast %27 : vector<32x32xf32> to vector<4x8x32xf32>
    %29 = vector.extract_strided_slice %24 {offsets = [0, 0, 0], sizes = [4, 8, 8], strides = [1, 1, 1]} : vector<4x8x32xf32> to vector<4x8x8xf32>
    %30 = vector.extract_strided_slice %26 {offsets = [0, 0, 0], sizes = [4, 8, 8], strides = [1, 1, 1]} : vector<4x8x32xf32> to vector<4x8x8xf32>
    "tpu.trace_start"() <{level = 10 : i32, message = "bqd,bkd->bqk"}> : () -> ()
    %cst_21 = arith.constant dense<0.000000e+00> : vector<4x8x8xf32>
    %31 = tpu.matmul %29, %30, %cst_21 {dimension_numbers = #tpu.dot_dimension_numbers<[2], [2], [1], [1], [0, 0, 0, 1, 1, 1], [0], [0]>} : vector<4x8x8xf32>, vector<4x8x8xf32>, vector<4x8x8xf32> -> vector<4x8x8xf32>
    "tpu.trace_stop"() : () -> ()
    %cst_22 = arith.constant 0.353553385 : f32
    %32 = vector.broadcast %cst_22 : f32 to vector<4x8x8xf32>
    %33 = arith.mulf %31, %32 : vector<4x8x8xf32>
    %cst_23 = arith.constant dense<0xFF800000> : vector<4x8xf32>
    %34 = vector.multi_reduction <maximumf>, %33, %cst_23 [2] : vector<4x8x8xf32> to vector<4x8xf32>
    %35 = vector.shape_cast %34 : vector<4x8xf32> to vector<4x8x1xf32>
    %36 = vector.broadcast %35 : vector<4x8x1xf32> to vector<4x8x8xf32>
    %37 = arith.subf %33, %36 : vector<4x8x8xf32>
    %38 = math.exp %37 : vector<4x8x8xf32>
    %cst_24 = arith.constant dense<0.000000e+00> : vector<4x8xf32>
    %39 = vector.multi_reduction <add>, %38, %cst_24 [2] : vector<4x8x8xf32> to vector<4x8xf32>
    %40 = vector.shape_cast %39 : vector<4x8xf32> to vector<4x8x1xf32>
    %41 = vector.broadcast %40 : vector<4x8x1xf32> to vector<4x8x8xf32>
    %42 = arith.divf %38, %41 : vector<4x8x8xf32>
    %43 = vector.extract_strided_slice %28 {offsets = [0, 0, 0], sizes = [4, 8, 8], strides = [1, 1, 1]} : vector<4x8x32xf32> to vector<4x8x8xf32>
    "tpu.trace_start"() <{level = 10 : i32, message = "bqk,bkd->bqd"}> : () -> ()
    %cst_25 = arith.constant dense<0.000000e+00> : vector<4x8x8xf32>
    %44 = tpu.matmul %42, %43, %cst_25 {dimension_numbers = #tpu.dot_dimension_numbers<[2], [1], [1], [2], [0, 0, 0, 1, 1, 2], [0], [0]>} : vector<4x8x8xf32>, vector<4x8x8xf32>, vector<4x8x8xf32> -> vector<4x8x8xf32>
    "tpu.trace_stop"() : () -> ()
    %45 = vector.extract_strided_slice %24 {offsets = [0, 0, 8], sizes = [4, 8, 8], strides = [1, 1, 1]} : vector<4x8x32xf32> to vector<4x8x8xf32>
    %46 = vector.extract_strided_slice %26 {offsets = [0, 0, 8], sizes = [4, 8, 8], strides = [1, 1, 1]} : vector<4x8x32xf32> to vector<4x8x8xf32>
    "tpu.trace_start"() <{level = 10 : i32, message = "bqd,bkd->bqk"}> : () -> ()
    %cst_26 = arith.constant dense<0.000000e+00> : vector<4x8x8xf32>
    %47 = tpu.matmul %45, %46, %cst_26 {dimension_numbers = #tpu.dot_dimension_numbers<[2], [2], [1], [1], [0, 0, 0, 1, 1, 1], [0], [0]>} : vector<4x8x8xf32>, vector<4x8x8xf32>, vector<4x8x8xf32> -> vector<4x8x8xf32>
    "tpu.trace_stop"() : () -> ()
    %cst_27 = arith.constant 0.353553385 : f32
    %48 = vector.broadcast %cst_27 : f32 to vector<4x8x8xf32>
    %49 = arith.mulf %47, %48 : vector<4x8x8xf32>
    %cst_28 = arith.constant dense<0xFF800000> : vector<4x8xf32>
    %50 = vector.multi_reduction <maximumf>, %49, %cst_28 [2] : vector<4x8x8xf32> to vector<4x8xf32>
    %51 = vector.shape_cast %50 : vector<4x8xf32> to vector<4x8x1xf32>
    %52 = vector.broadcast %51 : vector<4x8x1xf32> to vector<4x8x8xf32>
    %53 = arith.subf %49, %52 : vector<4x8x8xf32>
    %54 = math.exp %53 : vector<4x8x8xf32>
    %cst_29 = arith.constant dense<0.000000e+00> : vector<4x8xf32>
    %55 = vector.multi_reduction <add>, %54, %cst_29 [2] : vector<4x8x8xf32> to vector<4x8xf32>
    %56 = vector.shape_cast %55 : vector<4x8xf32> to vector<4x8x1xf32>
    %57 = vector.broadcast %56 : vector<4x8x1xf32> to vector<4x8x8xf32>
    %58 = arith.divf %54, %57 : vector<4x8x8xf32>
    %59 = vector.extract_strided_slice %28 {offsets = [0, 0, 8], sizes = [4, 8, 8], strides = [1, 1, 1]} : vector<4x8x32xf32> to vector<4x8x8xf32>
    "tpu.trace_start"() <{level = 10 : i32, message = "bqk,bkd->bqd"}> : () -> ()
    %cst_30 = arith.constant dense<0.000000e+00> : vector<4x8x8xf32>
    %60 = tpu.matmul %58, %59, %cst_30 {dimension_numbers = #tpu.dot_dimension_numbers<[2], [1], [1], [2], [0, 0, 0, 1, 1, 2], [0], [0]>} : vector<4x8x8xf32>, vector<4x8x8xf32>, vector<4x8x8xf32> -> vector<4x8x8xf32>
    "tpu.trace_stop"() : () -> ()
    %61 = vector.extract_strided_slice %24 {offsets = [0, 0, 16], sizes = [4, 8, 8], strides = [1, 1, 1]} : vector<4x8x32xf32> to vector<4x8x8xf32>
    %62 = vector.extract_strided_slice %26 {offsets = [0, 0, 16], sizes = [4, 8, 8], strides = [1, 1, 1]} : vector<4x8x32xf32> to vector<4x8x8xf32>
    "tpu.trace_start"() <{level = 10 : i32, message = "bqd,bkd->bqk"}> : () -> ()
    %cst_31 = arith.constant dense<0.000000e+00> : vector<4x8x8xf32>
    %63 = tpu.matmul %61, %62, %cst_31 {dimension_numbers = #tpu.dot_dimension_numbers<[2], [2], [1], [1], [0, 0, 0, 1, 1, 1], [0], [0]>} : vector<4x8x8xf32>, vector<4x8x8xf32>, vector<4x8x8xf32> -> vector<4x8x8xf32>
    "tpu.trace_stop"() : () -> ()
    %cst_32 = arith.constant 0.353553385 : f32
    %64 = vector.broadcast %cst_32 : f32 to vector<4x8x8xf32>
    %65 = arith.mulf %63, %64 : vector<4x8x8xf32>
    %cst_33 = arith.constant dense<0xFF800000> : vector<4x8xf32>
    %66 = vector.multi_reduction <maximumf>, %65, %cst_33 [2] : vector<4x8x8xf32> to vector<4x8xf32>
    %67 = vector.shape_cast %66 : vector<4x8xf32> to vector<4x8x1xf32>
    %68 = vector.broadcast %67 : vector<4x8x1xf32> to vector<4x8x8xf32>
    %69 = arith.subf %65, %68 : vector<4x8x8xf32>
    %70 = math.exp %69 : vector<4x8x8xf32>
    %cst_34 = arith.constant dense<0.000000e+00> : vector<4x8xf32>
    %71 = vector.multi_reduction <add>, %70, %cst_34 [2] : vector<4x8x8xf32> to vector<4x8xf32>
    %72 = vector.shape_cast %71 : vector<4x8xf32> to vector<4x8x1xf32>
    %73 = vector.broadcast %72 : vector<4x8x1xf32> to vector<4x8x8xf32>
    %74 = arith.divf %70, %73 : vector<4x8x8xf32>
    %75 = vector.extract_strided_slice %28 {offsets = [0, 0, 16], sizes = [4, 8, 8], strides = [1, 1, 1]} : vector<4x8x32xf32> to vector<4x8x8xf32>
    "tpu.trace_start"() <{level = 10 : i32, message = "bqk,bkd->bqd"}> : () -> ()
    %cst_35 = arith.constant dense<0.000000e+00> : vector<4x8x8xf32>
    %76 = tpu.matmul %74, %75, %cst_35 {dimension_numbers = #tpu.dot_dimension_numbers<[2], [1], [1], [2], [0, 0, 0, 1, 1, 2], [0], [0]>} : vector<4x8x8xf32>, vector<4x8x8xf32>, vector<4x8x8xf32> -> vector<4x8x8xf32>
    "tpu.trace_stop"() : () -> ()
    %77 = vector.extract_strided_slice %24 {offsets = [0, 0, 24], sizes = [4, 8, 8], strides = [1, 1, 1]} : vector<4x8x32xf32> to vector<4x8x8xf32>
    %78 = vector.extract_strided_slice %26 {offsets = [0, 0, 24], sizes = [4, 8, 8], strides = [1, 1, 1]} : vector<4x8x32xf32> to vector<4x8x8xf32>
    "tpu.trace_start"() <{level = 10 : i32, message = "bqd,bkd->bqk"}> : () -> ()
    %cst_36 = arith.constant dense<0.000000e+00> : vector<4x8x8xf32>
    %79 = tpu.matmul %77, %78, %cst_36 {dimension_numbers = #tpu.dot_dimension_numbers<[2], [2], [1], [1], [0, 0, 0, 1, 1, 1], [0], [0]>} : vector<4x8x8xf32>, vector<4x8x8xf32>, vector<4x8x8xf32> -> vector<4x8x8xf32>
    "tpu.trace_stop"() : () -> ()
    %cst_37 = arith.constant 0.353553385 : f32
    %80 = vector.broadcast %cst_37 : f32 to vector<4x8x8xf32>
    %81 = arith.mulf %79, %80 : vector<4x8x8xf32>
    %cst_38 = arith.constant dense<0xFF800000> : vector<4x8xf32>
    %82 = vector.multi_reduction <maximumf>, %81, %cst_38 [2] : vector<4x8x8xf32> to vector<4x8xf32>
    %83 = vector.shape_cast %82 : vector<4x8xf32> to vector<4x8x1xf32>
    %84 = vector.broadcast %83 : vector<4x8x1xf32> to vector<4x8x8xf32>
    %85 = arith.subf %81, %84 : vector<4x8x8xf32>
    %86 = math.exp %85 : vector<4x8x8xf32>
    %cst_39 = arith.constant dense<0.000000e+00> : vector<4x8xf32>
    %87 = vector.multi_reduction <add>, %86, %cst_39 [2] : vector<4x8x8xf32> to vector<4x8xf32>
    %88 = vector.shape_cast %87 : vector<4x8xf32> to vector<4x8x1xf32>
    %89 = vector.broadcast %88 : vector<4x8x1xf32> to vector<4x8x8xf32>
    %90 = arith.divf %86, %89 : vector<4x8x8xf32>
    %91 = vector.extract_strided_slice %28 {offsets = [0, 0, 24], sizes = [4, 8, 8], strides = [1, 1, 1]} : vector<4x8x32xf32> to vector<4x8x8xf32>
    "tpu.trace_start"() <{level = 10 : i32, message = "bqk,bkd->bqd"}> : () -> ()
    %cst_40 = arith.constant dense<0.000000e+00> : vector<4x8x8xf32>
    %92 = tpu.matmul %90, %91, %cst_40 {dimension_numbers = #tpu.dot_dimension_numbers<[2], [1], [1], [2], [0, 0, 0, 1, 1, 2], [0], [0]>} : vector<4x8x8xf32>, vector<4x8x8xf32>, vector<4x8x8xf32> -> vector<4x8x8xf32>
    "tpu.trace_stop"() : () -> ()
    %93 = tpu.concatenate %44, %60, %76, %92 in 2 : vector<4x8x8xf32>, vector<4x8x8xf32>, vector<4x8x8xf32>, vector<4x8x8xf32> -> vector<4x8x32xf32>
    %94 = vector.shape_cast %93 : vector<4x8x32xf32> to vector<32x32xf32>
    %cst_41 = arith.constant dense<0.000000e+00> : vector<32x32xf32>
    %95 = tpu.matmul %94, %3, %cst_41 {dimension_numbers = #tpu.dot_dimension_numbers<[1], [0], [0], [1], [0, 0, 1, 1], [], []>} : vector<32x32xf32>, vector<32x32xf32>, vector<32x32xf32> -> vector<32x32xf32>
    %96 = vector.broadcast %8 : vector<1x32xf32> to vector<32x32xf32>
    %97 = arith.addf %95, %96 : vector<32x32xf32>
    %98 = arith.addf %19, %97 : vector<32x32xf32>
    %cst_42 = arith.constant dense<0.000000e+00> : vector<32xf32>
    %99 = vector.multi_reduction <add>, %98, %cst_42 [1] : vector<32x32xf32> to vector<32xf32>
    %100 = vector.shape_cast %99 : vector<32xf32> to vector<32x1xf32>
    %cst_43 = arith.constant 3.200000e+01 : f32
    %101 = vector.broadcast %cst_43 : f32 to vector<32x1xf32>
    %102 = arith.divf %100, %101 : vector<32x1xf32>
    %103 = vector.broadcast %102 : vector<32x1xf32> to vector<32x32xf32>
    %104 = arith.subf %98, %103 : vector<32x32xf32>
    %105 = arith.mulf %104, %104 : vector<32x32xf32>
    %cst_44 = arith.constant dense<0.000000e+00> : vector<32xf32>
    %106 = vector.multi_reduction <add>, %105, %cst_44 [1] : vector<32x32xf32> to vector<32xf32>
    %107 = vector.shape_cast %106 : vector<32xf32> to vector<32x1xf32>
    %cst_45 = arith.constant 3.200000e+01 : f32
    %108 = vector.broadcast %cst_45 : f32 to vector<32x1xf32>
    %109 = arith.divf %107, %108 : vector<32x1xf32>
    %110 = vector.broadcast %102 : vector<32x1xf32> to vector<32x32xf32>
    %111 = arith.subf %98, %110 : vector<32x32xf32>
    %cst_46 = arith.constant 9.99999974E-6 : f32
    %112 = vector.broadcast %cst_46 : f32 to vector<32x1xf32>
    %113 = arith.addf %109, %112 : vector<32x1xf32>
    %114 = math.rsqrt %113 : vector<32x1xf32>
    %115 = vector.broadcast %114 : vector<32x1xf32> to vector<32x32xf32>
    %116 = arith.mulf %111, %115 : vector<32x32xf32>
    %117 = vector.broadcast %9 : vector<1x32xf32> to vector<32x32xf32>
    %118 = arith.mulf %116, %117 : vector<32x32xf32>
    %119 = vector.broadcast %10 : vector<1x32xf32> to vector<32x32xf32>
    %120 = arith.addf %118, %119 : vector<32x32xf32>
    %cst_47 = arith.constant dense<0.000000e+00> : vector<32x64xf32>
    %121 = tpu.matmul %120, %4, %cst_47 {dimension_numbers = #tpu.dot_dimension_numbers<[1], [0], [0], [1], [0, 0, 1, 1], [], []>} : vector<32x32xf32>, vector<32x64xf32>, vector<32x64xf32> -> vector<32x64xf32>
    %122 = vector.broadcast %7 : vector<1x64xf32> to vector<32x64xf32>
    %123 = arith.addf %121, %122 : vector<32x64xf32>
    %cst_48 = arith.constant 0.000000e+00 : f32
    %124 = vector.broadcast %cst_48 : f32 to vector<32x64xf32>
    %125 = arith.maximumf %123, %124 : vector<32x64xf32>
    %cst_49 = arith.constant dense<0.000000e+00> : vector<32x32xf32>
    %126 = tpu.matmul %125, %5, %cst_49 {dimension_numbers = #tpu.dot_dimension_numbers<[1], [0], [0], [1], [0, 0, 1, 1], [], []>} : vector<32x64xf32>, vector<64x32xf32>, vector<32x32xf32> -> vector<32x32xf32>
    %127 = vector.broadcast %13 : vector<1x32xf32> to vector<32x32xf32>
    %128 = arith.addf %126, %127 : vector<32x32xf32>
    %129 = arith.addf %120, %128 : vector<32x32xf32>
    %cst_50 = arith.constant dense<0.000000e+00> : vector<32xf32>
    %130 = vector.multi_reduction <add>, %129, %cst_50 [1] : vector<32x32xf32> to vector<32xf32>
    %131 = vector.shape_cast %130 : vector<32xf32> to vector<32x1xf32>
    %cst_51 = arith.constant 3.200000e+01 : f32
    %132 = vector.broadcast %cst_51 : f32 to vector<32x1xf32>
    %133 = arith.divf %131, %132 : vector<32x1xf32>
    %134 = vector.broadcast %133 : vector<32x1xf32> to vector<32x32xf32>
    %135 = arith.subf %129, %134 : vector<32x32xf32>
    %136 = arith.mulf %135, %135 : vector<32x32xf32>
    %cst_52 = arith.constant dense<0.000000e+00> : vector<32xf32>
    %137 = vector.multi_reduction <add>, %136, %cst_52 [1] : vector<32x32xf32> to vector<32xf32>
    %138 = vector.shape_cast %137 : vector<32xf32> to vector<32x1xf32>
    %cst_53 = arith.constant 3.200000e+01 : f32
    %139 = vector.broadcast %cst_53 : f32 to vector<32x1xf32>
    %140 = arith.divf %138, %139 : vector<32x1xf32>
    %141 = vector.broadcast %133 : vector<32x1xf32> to vector<32x32xf32>
    %142 = arith.subf %129, %141 : vector<32x32xf32>
    %cst_54 = arith.constant 9.99999974E-6 : f32
    %143 = vector.broadcast %cst_54 : f32 to vector<32x1xf32>
    %144 = arith.addf %140, %143 : vector<32x1xf32>
    %145 = math.rsqrt %144 : vector<32x1xf32>
    %146 = vector.broadcast %145 : vector<32x1xf32> to vector<32x32xf32>
    %147 = arith.mulf %142, %146 : vector<32x32xf32>
    %148 = vector.broadcast %11 : vector<1x32xf32> to vector<32x32xf32>
    %149 = arith.mulf %147, %148 : vector<32x32xf32>
    %150 = vector.broadcast %12 : vector<1x32xf32> to vector<32x32xf32>
    %151 = arith.addf %149, %150 : vector<32x32xf32>
    %cst_55 = arith.constant dense<0.000000e+00> : vector<32x32xf32>
    %152 = tpu.matmul %1, %151, %cst_55 {dimension_numbers = #tpu.dot_dimension_numbers<[1], [0], [0], [1], [0, 0, 1, 1], [], []>} : vector<32x32xf32>, vector<32x32xf32>, vector<32x32xf32> -> vector<32x32xf32>
    %153 = vector.extract_strided_slice %152 {offsets = [0, 0], sizes = [16, 32], strides = [1, 1]} : vector<32x32xf32> to vector<16x32xf32>
    %154 = vector.shape_cast %153 : vector<16x32xf32> to vector<8x2x32xf32>
    %c0_56 = arith.constant 0 : index
    %c0_57 = arith.constant 0 : index
    %c0_58 = arith.constant 0 : index
    %155 = vector.load %arg3[%c0_56, %c0_57, %c0_58] : memref<8x2x32xf32, #tpu.memory_space<vmem>>, vector<8x2x32xf32>
    tpu.vector_store %arg3[%c0_56, %c0_57, %c0_58], %154 {strides = array<i32>} : memref<8x2x32xf32, #tpu.memory_space<vmem>>, vector<8x2x32xf32>,
    %156 = vector.extract_strided_slice %152 {offsets = [16, 0], sizes = [16, 32], strides = [1, 1]} : vector<32x32xf32> to vector<16x32xf32>
    %157 = vector.shape_cast %156 : vector<16x32xf32> to vector<8x2x32xf32>
    %c0_59 = arith.constant 0 : index
    %c0_60 = arith.constant 0 : index
    %c0_61 = arith.constant 0 : index
    %158 = vector.load %arg4[%c0_59, %c0_60, %c0_61] : memref<8x2x32xf32, #tpu.memory_space<vmem>>, vector<8x2x32xf32>
    tpu.vector_store %arg4[%c0_59, %c0_60, %c0_61], %157 {strides = array<i32>} : memref<8x2x32xf32, #tpu.memory_space<vmem>>, vector<8x2x32xf32>,
    return
  }
}

</mosaic_0001>

<llo_original>
// kernel: transformer_encoder_layer_forward.1
$region0: #{transformer_encoder_layer_forward.1}
  #allocation0 [shape = 'u32[]', space=smem, size = 0x4, offset = 0x4, fixed_abs, tag = 'smem constant byte address 0x4 - core index']
  #allocation1 [shape = 'u32[144,128]{1,0:T(1,128)}', space=vmem, size = 0x12000, scoped, tag = 'internal scratch']
  %s0 = inlined_call_operand.hbm [shape: f32[8,2,32], index: 0, kind: input, shape index: {}]
  %s1 = inlined_call_operand.hbm [shape: f32[8,2,32], index: 1, kind: input, shape index: {}]
  %s2 = inlined_call_operand.hbm [shape: f32[232,128], index: 2, kind: input, shape index: {}]
  %s3 = inlined_call_operand.hbm [shape: f32[8,2,32], index: 3, kind: output, shape index: {0}]
  %s4 = inlined_call_operand.hbm [shape: f32[8,2,32], index: 4, kind: output, shape index: {1}]
  %5 = xla_tuple %s3, %s4
  %s6 = sld [smem:[#allocation0]]
  $region42: #{transformer_encoder_layer_forward.1} parent=0
    _
  %s8 = ssub.s32 1, %s6
  %s9 = scalar_select 0, %s8, %s6
  $region1: #{transformer_encoder_layer_forward.1} parent=0
    #allocation2 [shape = 'u8[8192]{0}', space=vmem, size = 0x2000, scoped, tag = 'input window, operand 0, single buffered']
    #allocation3 [shape = 's32[1]{0}', space=sflag, size = 0x4, scoped, tag = 'scoped memory for transformer_encoder_layer_forward.1']
    #allocation4 [shape = 's32[1]{0}', space=sflag, size = 0x4, scoped, tag = 'scoped memory for transformer_encoder_layer_forward.1']
    #allocation5 [shape = 'u8[8192]{0}', space=vmem, size = 0x2000, scoped, tag = 'input window, operand 1, single buffered']
    #allocation6 [shape = 's32[1]{0}', space=sflag, size = 0x4, scoped, tag = 'scoped memory for transformer_encoder_layer_forward.1']
    #allocation7 [shape = 'u8[118784]{0}', space=vmem, size = 0x1d000, scoped, tag = 'input window, operand 2, single buffered']
    #allocation8 [shape = 'u8[8192]{0}', space=vmem, size = 0x2000, scoped, tag = 'output window, operand 0, single buffered']
    #allocation9 [shape = 'u8[8192]{0}', space=vmem, size = 0x2000, scoped, tag = 'output window, operand 1, single buffered']
    #allocation10 [shape = 's32[1]{0}', space=sflag, size = 0x4, scoped, tag = 'scoped memory for transformer_encoder_layer_forward.1']
    %10 = vsyncpa [#allocation3], 0
    %11 = vsyncpa [#allocation6], 0
    %12 = vsyncpa [#allocation4], 0
    %13 = vsyncpa [#allocation10], 0
    // Predicated region
    $region2: #{transformer_encoder_layer_forward.1} parent=1 // pred_check
      _
    $region3: #{transformer_encoder_layer_forward.1} parent=1 // pred_check_branch
      %15 = sbr.rel (0) target = $region5
    $region4: #{transformer_encoder_layer_forward.1} parent=1 // pred_region
      %s17 = ssub.s32 256, 256
      %18 = vsyncadd [#allocation3], %s17
      %s19 = sshll.u32 [#allocation2], 4
      %s20 = int_to_ptr.vmem [resolvable:$true] %s19
      %25 = dma.hbm_to_vmem [thread:$0]  %s0, 256, %s20, [#allocation3], 32, 32, 2
    $region5: #{transformer_encoder_layer_forward.1} parent=1 // pred_fallthru
      _
    // Predicated region
    $region6: #{transformer_encoder_layer_forward.1} parent=1 // pred_check
      _
    $region7: #{transformer_encoder_layer_forward.1} parent=1 // pred_check_branch
      %27 = sbr.rel (0) target = $region9
    $region8: #{transformer_encoder_layer_forward.1} parent=1 // pred_region
      %s29 = ssub.s32 256, 256
      %30 = vsyncadd [#allocation6], %s29
      %s31 = sshll.u32 [#allocation5], 4
      %s32 = int_to_ptr.vmem [resolvable:$true] %s31
      %37 = dma.hbm_to_vmem [thread:$0]  %s1, 256, %s32, [#allocation6], 32, 32, 2
    $region9: #{transformer_encoder_layer_forward.1} parent=1 // pred_fallthru
      _
    // Predicated region
    $region10: #{transformer_encoder_layer_forward.1} parent=1 // pred_check
      _
    $region11: #{transformer_encoder_layer_forward.1} parent=1 // pred_check_branch
      %39 = sbr.rel (0) target = $region13
    $region12: #{transformer_encoder_layer_forward.1} parent=1 // pred_region
      %s41 = ssub.s32 3712, 3712
      %42 = vsyncadd [#allocation6], %s41
      %s43 = sshll.u32 [#allocation7], 4
      %s44 = int_to_ptr.vmem [resolvable:$true] %s43
      %49 = dma.hbm_to_vmem [thread:$0]  %s2, 3712, %s44, [#allocation6], 128, 128, 8
    $region13: #{transformer_encoder_layer_forward.1} parent=1 // pred_fallthru
      _
    // Predicated region
    $region14: #{transformer_encoder_layer_forward.1} parent=1 // pred_check
      _
    $region15: #{transformer_encoder_layer_forward.1} parent=1 // pred_check_branch
      %51 = sbr.rel (0) target = $region17
    $region16: #{transformer_encoder_layer_forward.1} parent=1 // pred_region
      %52 = dma.done [#allocation3], 256
    $region17: #{transformer_encoder_layer_forward.1} parent=1 // pred_fallthru
      _
    // Predicated region
    $region18: #{transformer_encoder_layer_forward.1} parent=1 // pred_check
      _
    $region19: #{transformer_encoder_layer_forward.1} parent=1 // pred_check_branch
      %54 = sbr.rel (0) target = $region21
    $region20: #{transformer_encoder_layer_forward.1} parent=1 // pred_region
      %55 = dma.done [#allocation6], 256
    $region21: #{transformer_encoder_layer_forward.1} parent=1 // pred_fallthru
      _
    // Predicated region
    $region22: #{transformer_encoder_layer_forward.1} parent=1 // pred_check
      _
    $region23: #{transformer_encoder_layer_forward.1} parent=1 // pred_check_branch
      %57 = sbr.rel (0) target = $region25
    $region24: #{transformer_encoder_layer_forward.1} parent=1 // pred_region
      %58 = dma.done [#allocation6], 3712
    $region25: #{transformer_encoder_layer_forward.1} parent=1 // pred_fallthru
      _
    %v59 = vld [vmem:[#allocation7] sm:$0xff]
    %v60 = vld [vmem:[#allocation7 + $0x8] sm:$0xff]
    %v61 = vld [vmem:[#allocation7 + $0x10] sm:$0xff]
    %v62 = vld [vmem:[#allocation7 + $0x18] sm:$0xff]
    %v63 = vld [vmem:[#allocation7 + $0x20] sm:$0xff]
    %v64 = vld [vmem:[#allocation7 + $0x28] sm:$0xff]
    %v65 = vld [vmem:[#allocation7 + $0x30] sm:$0xff]
    %v66 = vld [vmem:[#allocation7 + $0x38] sm:$0xff]
    %v67 = vld [vmem:[#allocation7 + $0x40] sm:$0xff]
    %v68 = vld [vmem:[#allocation7 + $0x48] sm:$0xff]
    %v69 = vld [vmem:[#allocation7 + $0x50] sm:$0xff]
    %v70 = vld [vmem:[#allocation7 + $0x58] sm:$0xff]
    %v71 = vld [vmem:[#allocation7 + $0x60] sm:$0xff]
    %v72 = vld [vmem:[#allocation7 + $0x68] sm:$0xff]
    %v73 = vld [vmem:[#allocation7 + $0x70] sm:$0xff]
    %v74 = vld [vmem:[#allocation7 + $0x78] sm:$0xff]
    %v75 = vld [vmem:[#allocation7 + $0x80] sm:$0xff]
    %v76 = vld [vmem:[#allocation7 + $0x88] sm:$0xff]
    %v77 = vld [vmem:[#allocation7 + $0x90] sm:$0xff]
    %v78 = vld [vmem:[#allocation7 + $0x98] sm:$0xff]
    %v79 = vld [vmem:[#allocation7 + $0xa0] sm:$0xff]
    %v80 = vld [vmem:[#allocation7 + $0xa8] sm:$0xff]
    %v81 = vld [vmem:[#allocation7 + $0xb0] sm:$0xff]
    %v82 = vld [vmem:[#allocation7 + $0xb8] sm:$0xff]
    %v83 = vld [vmem:[#allocation7 + $0xc0] sm:$0xff]
    %v84 = vld [vmem:[#allocation7 + $0xc8] sm:$0xff]
    %v85 = vld [vmem:[#allocation7 + $0xd0] sm:$0xff]
    %v86 = vld [vmem:[#allocation7 + $0xd8] sm:$0xff]
    %v87 = vld [vmem:[#allocation7 + $0xe0] sm:$0x1]
    %v88 = vld [vmem:[#allocation7 + $0xe1] sm:$0x1]
    %v89 = vld [vmem:[#allocation7 + $0xe2] sm:$0x1]
    %v90 = vld [vmem:[#allocation7 + $0xe3] sm:$0x1]
    %v91 = vld [vmem:[#allocation7 + $0xe4] sm:$0x1]
    %v92 = vld [vmem:[#allocation7 + $0xe5] sm:$0x1]
    %v93 = vld [vmem:[#allocation7 + $0xe6] sm:$0x1]
    %v94 = vld [vmem:[#allocation7 + $0xe7] sm:$0x1]
    %v95 = vld [vmem:[#allocation2] sm:$0x3]
    %v96 = vld [vmem:[#allocation2 + $0x2] sm:$0x3]
    %v97 = vld [vmem:[#allocation2 + $0x4] sm:$0x3]
    %v98 = vld [vmem:[#allocation2 + $0x6] sm:$0x3]
    %v99 = vld [vmem:[#allocation2 + $0x8] sm:$0x3]
    %v100 = vld [vmem:[#allocation2 + $0xa] sm:$0x3]
    %v101 = vld [vmem:[#allocation2 + $0xc] sm:$0x3]
    %v102 = vld [vmem:[#allocation2 + $0xe] sm:$0x3]
    %v103 = vld [vmem:[#allocation5] sm:$0x3]
    %v104 = vld [vmem:[#allocation5 + $0x2] sm:$0x3]
    %v105 = vld [vmem:[#allocation5 + $0x4] sm:$0x3]
    %v106 = vld [vmem:[#allocation5 + $0x6] sm:$0x3]
    %v107 = vld [vmem:[#allocation5 + $0x8] sm:$0x3]
    %v108 = vld [vmem:[#allocation5 + $0xa] sm:$0x3]
    %v109 = vld [vmem:[#allocation5 + $0xc] sm:$0x3]
    %v110 = vld [vmem:[#allocation5 + $0xe] sm:$0x3]
    %v119 = vcombine.low %v95, %v96
    %v120 = vcombine.low %v97, %v98
    %v122 = vunpack.c.l.s4 1983009808
    %v123 = vunpack.c.0.s8 %v122
    %v124 = vlaneseq
    %v125 = vshrl.u32 %v124, 7
    %v126 = vsub.s32 %v123, %v125
    %v127 = vrot.slane %v119, %v126
    %v129 = vunpack.c.l.s4 1983009808
    %v130 = vunpack.c.0.s8 %v129
    %v131 = vlaneseq
    %v132 = vshrl.u32 %v131, 7
    %v133 = vsub.s32 %v130, %v132
    %v134 = vrot.slane %v120, %v133
    %v135 = vcombine.low %v127, %v134
    %v136 = vcombine.low %v99, %v100
    %v137 = vcombine.low %v101, %v102
    %v139 = vunpack.c.l.s4 1983009808
    %v140 = vunpack.c.0.s8 %v139
    %v141 = vlaneseq
    %v142 = vshrl.u32 %v141, 7
    %v143 = vsub.s32 %v140, %v142
    %v144 = vrot.slane %v136, %v143
    %v146 = vunpack.c.l.s4 1983009808
    %v147 = vunpack.c.0.s8 %v146
    %v148 = vlaneseq
    %v149 = vshrl.u32 %v148, 7
    %v150 = vsub.s32 %v147, %v149
    %v151 = vrot.slane %v137, %v150
    %v152 = vcombine.low %v144, %v151
    %v163 = vcombine.low %v103, %v104
    %v164 = vcombine.low %v105, %v106
    %v166 = vunpack.c.l.s4 1983009808
    %v167 = vunpack.c.0.s8 %v166
    %v168 = vlaneseq
    %v169 = vshrl.u32 %v168, 7
    %v170 = vsub.s32 %v167, %v169
    %v171 = vrot.slane %v163, %v170
    %v173 = vunpack.c.l.s4 1983009808
    %v174 = vunpack.c.0.s8 %v173
    %v175 = vlaneseq
    %v176 = vshrl.u32 %v175, 7
    %v177 = vsub.s32 %v174, %v176
    %v178 = vrot.slane %v164, %v177
    %v179 = vcombine.low %v171, %v178
    %v180 = vcombine.low %v107, %v108
    %v181 = vcombine.low %v109, %v110
    %v183 = vunpack.c.l.s4 1983009808
    %v184 = vunpack.c.0.s8 %v183
    %v185 = vlaneseq
    %v186 = vshrl.u32 %v185, 7
    %v187 = vsub.s32 %v184, %v186
    %v188 = vrot.slane %v180, %v187
    %v190 = vunpack.c.l.s4 1983009808
    %v191 = vunpack.c.0.s8 %v190
    %v192 = vlaneseq
    %v193 = vshrl.u32 %v192, 7
    %v194 = vsub.s32 %v191, %v193
    %v195 = vrot.slane %v181, %v194
    %v196 = vcombine.low %v188, %v195
    %vm199 = vcmask 261120
    %v201 = vsel %vm199, %v59, 0
    %v204 = vsel %vm199, %v60, 0
    %v207 = vsel %vm199, %v61, 0
    %v210 = vsel %vm199, %v62, 0
    %212 = vmatprep.subr.mxu0 0.0
    %213 = vmatpush1.msra.mxu0 %v135
    %214 = vmatprep.subr.mxu0 0.0
    %215 = vmatpush1.msra.mxu0 %v152
    %216 = vmatprep.subr.mxu0 0.0
    %217 = vmatpush1.msra.mxu0 %v179
    %218 = vmatprep.subr.mxu0 0.0
    %219 = vmatpush1.msra.mxu0 %v196
    %220 = vmatprep.subr.mxu0 0.0
    %221 = vmatpush1.msra.mxu0 0.0
    %222 = vmatprep.subr.mxu0 0.0
    %223 = vmatpush1.msra.mxu0 0.0
    %224 = vmatprep.subr.mxu0 0.0
    %225 = vmatpush1.msra.mxu0 0.0
    %226 = vmatprep.subr.mxu0 0.0
    %227 = vmatpush1.msra.mxu0 0.0
    %228 = vmatprep.subr.mxu0 0.0
    %229 = vmatpush1.msra.mxu0 0.0
    %230 = vmatprep.subr.mxu0 0.0
    %231 = vmatpush1.msra.mxu0 0.0
    %232 = vmatprep.subr.mxu0 0.0
    %233 = vmatpush1.msra.mxu0 0.0
    %234 = vmatprep.subr.mxu0 0.0
    %235 = vmatpush1.msra.mxu0 0.0
    %236 = vmatprep.subr.mxu0 0.0
    %237 = vmatpush1.msra.mxu0 0.0
    %238 = vmatprep.subr.mxu0 0.0
    %239 = vmatpush1.msra.mxu0 0.0
    %240 = vmatprep.subr.mxu0 0.0
    %241 = vmatpush1.msra.mxu0 0.0
    %242 = vmatprep.subr.mxu0 0.0
    %243 = vmatpush1.msra.mxu0 0.0
    %244 = vmatprep.subr.mxu0 0.0
    %245 = vmatpush1.msra.mxu0 0.0
    %246 = vmatprep.subr.mxu0 0.0
    %247 = vmatpush1.msra.mxu0 0.0
    %248 = vmatprep.subr.mxu0 0.0
    %249 = vmatpush1.msra.mxu0 0.0
    %250 = vmatprep.subr.mxu0 0.0
    %251 = vmatpush1.msra.mxu0 0.0
    %252 = vmatprep.subr.mxu0 0.0
    %253 = vmatpush1.msra.mxu0 0.0
    %254 = vmatprep.subr.mxu0 0.0
    %255 = vmatpush1.msra.mxu0 0.0
    %256 = vmatprep.subr.mxu0 0.0
    %257 = vmatpush1.msra.mxu0 0.0
    %258 = vmatprep.subr.mxu0 0.0
    %259 = vmatpush1.msra.mxu0 0.0
    %260 = vmatprep.subr.mxu0 0.0
    %261 = vmatpush1.msra.mxu0 0.0
    %262 = vmatprep.subr.mxu0 0.0
    %263 = vmatpush1.msra.mxu0 0.0
    %264 = vmatprep.subr.mxu0 0.0
    %265 = vmatpush1.msra.mxu0 0.0
    %266 = vmatprep.subr.mxu0 0.0
    %267 = vmatpush1.msra.mxu0 0.0
    %268 = vmatprep.subr.mxu0 0.0
    %269 = vmatpush1.msra.mxu0 0.0
    %270 = vmatprep.subr.mxu0 0.0
    %271 = vmatpush1.msra.mxu0 0.0
    %272 = vmatprep.subr.mxu0 0.0
    %273 = vmatpush1.msra.mxu0 0.0
    %274 = vmatprep.subr.mxu0 0.0
    %275 = vmatpush1.msra.mxu0 0.0
    %276 = vmatprep.mubr.f32.mxu0 0.0
    %277 = vmatmul.mubr.f32.gmra.mrb[0].mxu0 %v201
    %v278 = vpop.f32.mrb[0].mxu0
    %v279 = vadd.f32 0.0, %v278
    %v280 = vpop.f32.mrb[0].mxu0
    %281 = vmatprep.mubr.f32.mxu0 0.0
    %282 = vmatmul.mubr.f32.gmra.mrb[0].mxu0 %v204
    %v283 = vpop.f32.mrb[0].mxu0
    %v284 = vadd.f32 0.0, %v283
    %v285 = vpop.f32.mrb[0].mxu0
    %286 = vmatprep.mubr.f32.mxu0 0.0
    %287 = vmatmul.mubr.f32.gmra.mrb[0].mxu0 %v207
    %v288 = vpop.f32.mrb[0].mxu0
    %v289 = vadd.f32 0.0, %v288
    %v290 = vpop.f32.mrb[0].mxu0
    %291 = vmatprep.mubr.f32.mxu0 0.0
    %292 = vmatmul.mubr.f32.gmra.mrb[0].mxu0 %v210
    %v293 = vpop.f32.mrb[0].mxu0
    %v294 = vadd.f32 0.0, %v293
    %v295 = vpop.f32.mrb[0].mxu0
    %296 = vdwg.mxu0
    %v297 = vlaneseq
    %v298 = vshrl.u32 %v297, 7
    %v299 = vsub.s32 0, %v298
    %v300 = vrot.slane %v87, %v299
    %v302 = vsel %vm199, %v279, 0
    %v305 = vsel %vm199, %v284, 0
    %v308 = vsel %vm199, %v289, 0
    %v311 = vsel %vm199, %v294, 0
    %313 = vmatprep.subr.mxu0 0.0
    %314 = vmatpush1.msra.mxu0 %v67
    %315 = vmatprep.subr.mxu0 0.0
    %316 = vmatpush1.msra.mxu0 %v68
    %317 = vmatprep.subr.mxu0 0.0
    %318 = vmatpush1.msra.mxu0 %v69
    %319 = vmatprep.subr.mxu0 0.0
    %320 = vmatpush1.msra.mxu0 %v70
    %321 = vmatprep.subr.mxu0 0.0
    %322 = vmatpush1.msra.mxu0 0.0
    %323 = vmatprep.subr.mxu0 0.0
    %324 = vmatpush1.msra.mxu0 0.0
    %325 = vmatprep.subr.mxu0 0.0
    %326 = vmatpush1.msra.mxu0 0.0
    %327 = vmatprep.subr.mxu0 0.0
    %328 = vmatpush1.msra.mxu0 0.0
    %329 = vmatprep.subr.mxu0 0.0
    %330 = vmatpush1.msra.mxu0 0.0
    %331 = vmatprep.subr.mxu0 0.0
    %332 = vmatpush1.msra.mxu0 0.0
    %333 = vmatprep.subr.mxu0 0.0
    %334 = vmatpush1.msra.mxu0 0.0
    %335 = vmatprep.subr.mxu0 0.0
    %336 = vmatpush1.msra.mxu0 0.0
    %337 = vmatprep.subr.mxu0 0.0
    %338 = vmatpush1.msra.mxu0 0.0
    %339 = vmatprep.subr.mxu0 0.0
    %340 = vmatpush1.msra.mxu0 0.0
    %341 = vmatprep.subr.mxu0 0.0
    %342 = vmatpush1.msra.mxu0 0.0
    %343 = vmatprep.subr.mxu0 0.0
    %344 = vmatpush1.msra.mxu0 0.0
    %345 = vmatprep.subr.mxu0 0.0
    %346 = vmatpush1.msra.mxu0 0.0
    %347 = vmatprep.subr.mxu0 0.0
    %348 = vmatpush1.msra.mxu0 0.0
    %349 = vmatprep.subr.mxu0 0.0
    %350 = vmatpush1.msra.mxu0 0.0
    %351 = vmatprep.subr.mxu0 0.0
    %352 = vmatpush1.msra.mxu0 0.0
    %353 = vmatprep.subr.mxu0 0.0
    %354 = vmatpush1.msra.mxu0 0.0
    %355 = vmatprep.subr.mxu0 0.0
    %356 = vmatpush1.msra.mxu0 0.0
    %357 = vmatprep.subr.mxu0 0.0
    %358 = vmatpush1.msra.mxu0 0.0
    %359 = vmatprep.subr.mxu0 0.0
    %360 = vmatpush1.msra.mxu0 0.0
    %361 = vmatprep.subr.mxu0 0.0
    %362 = vmatpush1.msra.mxu0 0.0
    %363 = vmatprep.subr.mxu0 0.0
    %364 = vmatpush1.msra.mxu0 0.0
    %365 = vmatprep.subr.mxu0 0.0
    %366 = vmatpush1.msra.mxu0 0.0
    %367 = vmatprep.subr.mxu0 0.0
    %368 = vmatpush1.msra.mxu0 0.0
    %369 = vmatprep.subr.mxu0 0.0
    %370 = vmatpush1.msra.mxu0 0.0
    %371 = vmatprep.subr.mxu0 0.0
    %372 = vmatpush1.msra.mxu0 0.0
    %373 = vmatprep.subr.mxu0 0.0
    %374 = vmatpush1.msra.mxu0 0.0
    %375 = vmatprep.subr.mxu0 0.0
    %376 = vmatpush1.msra.mxu0 0.0
    %377 = vmatprep.mubr.f32.mxu0 0.0
    %378 = vmatmul.mubr.f32.gmra.mrb[0].mxu0 %v302
    %v379 = vpop.f32.mrb[0].mxu0
    %v380 = vadd.f32 %v300, %v379
    %v381 = vpop.f32.mrb[0].mxu0
    %382 = vmatprep.mubr.f32.mxu0 0.0
    %383 = vmatmul.mubr.f32.gmra.mrb[0].mxu0 %v305
    %v384 = vpop.f32.mrb[0].mxu0
    %v385 = vadd.f32 %v300, %v384
    %v386 = vpop.f32.mrb[0].mxu0
    %387 = vmatprep.mubr.f32.mxu0 0.0
    %388 = vmatmul.mubr.f32.gmra.mrb[0].mxu0 %v308
    %v389 = vpop.f32.mrb[0].mxu0
    %v390 = vadd.f32 %v300, %v389
    %v391 = vpop.f32.mrb[0].mxu0
    %392 = vmatprep.mubr.f32.mxu0 0.0
    %393 = vmatmul.mubr.f32.gmra.mrb[0].mxu0 %v311
    %v394 = vpop.f32.mrb[0].mxu0
    %v395 = vadd.f32 %v300, %v394
    %v396 = vpop.f32.mrb[0].mxu0
    %397 = vdwg.mxu0
    %399 = vrot.lane.b32.xlu0 %v380, 96
    %v400 = vpop.permute.xlu0 %399
    %vm401 = vcmask 64512
    %v402 = vsel %vm401, %v380, 0
    %v404 = vsel %vm401, %v400, 0
    %406 = vmatprep.subr.mxu0 0.0
    %407 = vmatpush1.xpose.msra.mxu0 %v404
    %408 = vmatprep.subr.mxu0 0.0
    %409 = vmatpush1.xpose.msra.mxu0 0.0
    %410 = vmatprep.subr.mxu0 0.0
    %411 = vmatpush1.xpose.msra.mxu0 0.0
    %412 = vmatprep.subr.mxu0 0.0
    %413 = vmatpush1.xpose.msra.mxu0 0.0
    %414 = vmatprep.subr.mxu0 0.0
    %415 = vmatpush1.xpose.msra.mxu0 0.0
    %416 = vmatprep.subr.mxu0 0.0
    %417 = vmatpush1.xpose.msra.mxu0 0.0
    %418 = vmatprep.subr.mxu0 0.0
    %419 = vmatpush1.xpose.msra.mxu0 0.0
    %420 = vmatprep.subr.mxu0 0.0
    %421 = vmatpush1.xpose.msra.mxu0 0.0
    %422 = vmatprep.subr.mxu0 0.0
    %423 = vmatpush1.xpose.msra.mxu0 0.0
    %424 = vmatprep.subr.mxu0 0.0
    %425 = vmatpush1.xpose.msra.mxu0 0.0
    %426 = vmatprep.subr.mxu0 0.0
    %427 = vmatpush1.xpose.msra.mxu0 0.0
    %428 = vmatprep.subr.mxu0 0.0
    %429 = vmatpush1.xpose.msra.mxu0 0.0
    %430 = vmatprep.subr.mxu0 0.0
    %431 = vmatpush1.xpose.msra.mxu0 0.0
    %432 = vmatprep.subr.mxu0 0.0
    %433 = vmatpush1.xpose.msra.mxu0 0.0
    %434 = vmatprep.subr.mxu0 0.0
    %435 = vmatpush1.xpose.msra.mxu0 0.0
    %436 = vmatprep.subr.mxu0 0.0
    %437 = vmatpush1.xpose.msra.mxu0 0.0
    %438 = vmatprep.subr.mxu0 0.0
    %439 = vmatpush1.xpose.msra.mxu0 0.0
    %440 = vmatprep.subr.mxu0 0.0
    %441 = vmatpush1.xpose.msra.mxu0 0.0
    %442 = vmatprep.subr.mxu0 0.0
    %443 = vmatpush1.xpose.msra.mxu0 0.0
    %444 = vmatprep.subr.mxu0 0.0
    %445 = vmatpush1.xpose.msra.mxu0 0.0
    %446 = vmatprep.subr.mxu0 0.0
    %447 = vmatpush1.xpose.msra.mxu0 0.0
    %448 = vmatprep.subr.mxu0 0.0
    %449 = vmatpush1.xpose.msra.mxu0 0.0
    %450 = vmatprep.subr.mxu0 0.0
    %451 = vmatpush1.xpose.msra.mxu0 0.0
    %452 = vmatprep.subr.mxu0 0.0
    %453 = vmatpush1.xpose.msra.mxu0 0.0
    %454 = vmatprep.subr.mxu0 0.0
    %455 = vmatpush1.xpose.msra.mxu0 0.0
    %456 = vmatprep.subr.mxu0 0.0
    %457 = vmatpush1.xpose.msra.mxu0 0.0
    %458 = vmatprep.subr.mxu0 0.0
    %459 = vmatpush1.xpose.msra.mxu0 0.0
    %460 = vmatprep.subr.mxu0 0.0
    %461 = vmatpush1.xpose.msra.mxu0 0.0
    %462 = vmatprep.subr.mxu0 0.0
    %463 = vmatpush1.xpose.msra.mxu0 0.0
    %464 = vmatprep.subr.mxu0 0.0
    %465 = vmatpush1.xpose.msra.mxu0 0.0
    %466 = vmatprep.subr.mxu0 0.0
    %467 = vmatpush1.xpose.msra.mxu0 0.0
    %468 = vmatprep.subr.mxu0 0.0
    %469 = vmatpush1.xpose.msra.mxu0 0.0
    %470 = vmatprep.mubr.f32.mxu0 0.0
    %471 = vmatmul.mubr.f32.gmra.mrb[0].mxu0 %v402
    %v472 = vpop.f32.mrb[0].mxu0
    %v473 = vadd.f32 0.0, %v472
    %v474 = vpop.f32.mrb[0].mxu0
    %475 = vdwg.mxu0
    %477 = vrot.lane.b32.xlu0 %v385, 96
    %v478 = vpop.permute.xlu0 %477
    %v479 = vsel %vm401, %v385, 0
    %v481 = vsel %vm401, %v478, 0
    %483 = vmatprep.subr.mxu0 0.0
    %484 = vmatpush1.xpose.msra.mxu0 %v481
    %485 = vmatprep.subr.mxu0 0.0
    %486 = vmatpush1.xpose.msra.mxu0 0.0
    %487 = vmatprep.subr.mxu0 0.0
    %488 = vmatpush1.xpose.msra.mxu0 0.0
    %489 = vmatprep.subr.mxu0 0.0
    %490 = vmatpush1.xpose.msra.mxu0 0.0
    %491 = vmatprep.subr.mxu0 0.0
    %492 = vmatpush1.xpose.msra.mxu0 0.0
    %493 = vmatprep.subr.mxu0 0.0
    %494 = vmatpush1.xpose.msra.mxu0 0.0
    %495 = vmatprep.subr.mxu0 0.0
    %496 = vmatpush1.xpose.msra.mxu0 0.0
    %497 = vmatprep.subr.mxu0 0.0
    %498 = vmatpush1.xpose.msra.mxu0 0.0
    %499 = vmatprep.subr.mxu0 0.0
    %500 = vmatpush1.xpose.msra.mxu0 0.0
    %501 = vmatprep.subr.mxu0 0.0
    %502 = vmatpush1.xpose.msra.mxu0 0.0
    %503 = vmatprep.subr.mxu0 0.0
    %504 = vmatpush1.xpose.msra.mxu0 0.0
    %505 = vmatprep.subr.mxu0 0.0
    %506 = vmatpush1.xpose.msra.mxu0 0.0
    %507 = vmatprep.subr.mxu0 0.0
    %508 = vmatpush1.xpose.msra.mxu0 0.0
    %509 = vmatprep.subr.mxu0 0.0
    %510 = vmatpush1.xpose.msra.mxu0 0.0
    %511 = vmatprep.subr.mxu0 0.0
    %512 = vmatpush1.xpose.msra.mxu0 0.0
    %513 = vmatprep.subr.mxu0 0.0
    %514 = vmatpush1.xpose.msra.mxu0 0.0
    %515 = vmatprep.subr.mxu0 0.0
    %516 = vmatpush1.xpose.msra.mxu0 0.0
    %517 = vmatprep.subr.mxu0 0.0
    %518 = vmatpush1.xpose.msra.mxu0 0.0
    %519 = vmatprep.subr.mxu0 0.0
    %520 = vmatpush1.xpose.msra.mxu0 0.0
    %521 = vmatprep.subr.mxu0 0.0
    %522 = vmatpush1.xpose.msra.mxu0 0.0
    %523 = vmatprep.subr.mxu0 0.0
    %524 = vmatpush1.xpose.msra.mxu0 0.0
    %525 = vmatprep.subr.mxu0 0.0
    %526 = vmatpush1.xpose.msra.mxu0 0.0
    %527 = vmatprep.subr.mxu0 0.0
    %528 = vmatpush1.xpose.msra.mxu0 0.0
    %529 = vmatprep.subr.mxu0 0.0
    %530 = vmatpush1.xpose.msra.mxu0 0.0
    %531 = vmatprep.subr.mxu0 0.0
    %532 = vmatpush1.xpose.msra.mxu0 0.0
    %533 = vmatprep.subr.mxu0 0.0
    %534 = vmatpush1.xpose.msra.mxu0 0.0
    %535 = vmatprep.subr.mxu0 0.0
    %536 = vmatpush1.xpose.msra.mxu0 0.0
    %537 = vmatprep.subr.mxu0 0.0
    %538 = vmatpush1.xpose.msra.mxu0 0.0
    %539 = vmatprep.subr.mxu0 0.0
    %540 = vmatpush1.xpose.msra.mxu0 0.0
    %541 = vmatprep.subr.mxu0 0.0
    %542 = vmatpush1.xpose.msra.mxu0 0.0
    %543 = vmatprep.subr.mxu0 0.0
    %544 = vmatpush1.xpose.msra.mxu0 0.0
    %545 = vmatprep.subr.mxu0 0.0
    %546 = vmatpush1.xpose.msra.mxu0 0.0
    %547 = vmatprep.mubr.f32.mxu0 0.0
    %548 = vmatmul.mubr.f32.gmra.mrb[0].mxu0 %v479
    %v549 = vpop.f32.mrb[0].mxu0
    %v550 = vadd.f32 0.0, %v549
    %v551 = vpop.f32.mrb[0].mxu0
    %552 = vdwg.mxu0
    %554 = vrot.lane.b32.xlu0 %v390, 96
    %v555 = vpop.permute.xlu0 %554
    %v556 = vsel %vm401, %v390, 0
    %v558 = vsel %vm401, %v555, 0
    %560 = vmatprep.subr.mxu0 0.0
    %561 = vmatpush1.xpose.msra.mxu0 %v558
    %562 = vmatprep.subr.mxu0 0.0
    %563 = vmatpush1.xpose.msra.mxu0 0.0
    %564 = vmatprep.subr.mxu0 0.0
    %565 = vmatpush1.xpose.msra.mxu0 0.0
    %566 = vmatprep.subr.mxu0 0.0
    %567 = vmatpush1.xpose.msra.mxu0 0.0
    %568 = vmatprep.subr.mxu0 0.0
    %569 = vmatpush1.xpose.msra.mxu0 0.0
    %570 = vmatprep.subr.mxu0 0.0
    %571 = vmatpush1.xpose.msra.mxu0 0.0
    %572 = vmatprep.subr.mxu0 0.0
    %573 = vmatpush1.xpose.msra.mxu0 0.0
    %574 = vmatprep.subr.mxu0 0.0
    %575 = vmatpush1.xpose.msra.mxu0 0.0
    %576 = vmatprep.subr.mxu0 0.0
    %577 = vmatpush1.xpose.msra.mxu0 0.0
    %578 = vmatprep.subr.mxu0 0.0
    %579 = vmatpush1.xpose.msra.mxu0 0.0
    %580 = vmatprep.subr.mxu0 0.0
    %581 = vmatpush1.xpose.msra.mxu0 0.0
    %582 = vmatprep.subr.mxu0 0.0
    %583 = vmatpush1.xpose.msra.mxu0 0.0
    %584 = vmatprep.subr.mxu0 0.0
    %585 = vmatpush1.xpose.msra.mxu0 0.0
    %586 = vmatprep.subr.mxu0 0.0
    %587 = vmatpush1.xpose.msra.mxu0 0.0
    %588 = vmatprep.subr.mxu0 0.0
    %589 = vmatpush1.xpose.msra.mxu0 0.0
    %590 = vmatprep.subr.mxu0 0.0
    %591 = vmatpush1.xpose.msra.mxu0 0.0
    %592 = vmatprep.subr.mxu0 0.0
    %593 = vmatpush1.xpose.msra.mxu0 0.0
    %594 = vmatprep.subr.mxu0 0.0
    %595 = vmatpush1.xpose.msra.mxu0 0.0
    %596 = vmatprep.subr.mxu0 0.0
    %597 = vmatpush1.xpose.msra.mxu0 0.0
    %598 = vmatprep.subr.mxu0 0.0
    %599 = vmatpush1.xpose.msra.mxu0 0.0
    %600 = vmatprep.subr.mxu0 0.0
    %601 = vmatpush1.xpose.msra.mxu0 0.0
    %602 = vmatprep.subr.mxu0 0.0
    %603 = vmatpush1.xpose.msra.mxu0 0.0
    %604 = vmatprep.subr.mxu0 0.0
    %605 = vmatpush1.xpose.msra.mxu0 0.0
    %606 = vmatprep.subr.mxu0 0.0
    %607 = vmatpush1.xpose.msra.mxu0 0.0
    %608 = vmatprep.subr.mxu0 0.0
    %609 = vmatpush1.xpose.msra.mxu0 0.0
    %610 = vmatprep.subr.mxu0 0.0
    %611 = vmatpush1.xpose.msra.mxu0 0.0
    %612 = vmatprep.subr.mxu0 0.0
    %613 = vmatpush1.xpose.msra.mxu0 0.0
    %614 = vmatprep.subr.mxu0 0.0
    %615 = vmatpush1.xpose.msra.mxu0 0.0
    %616 = vmatprep.subr.mxu0 0.0
    %617 = vmatpush1.xpose.msra.mxu0 0.0
    %618 = vmatprep.subr.mxu0 0.0
    %619 = vmatpush1.xpose.msra.mxu0 0.0
    %620 = vmatprep.subr.mxu0 0.0
    %621 = vmatpush1.xpose.msra.mxu0 0.0
    %622 = vmatprep.subr.mxu0 0.0
    %623 = vmatpush1.xpose.msra.mxu0 0.0
    %624 = vmatprep.mubr.f32.mxu0 0.0
    %625 = vmatmul.mubr.f32.gmra.mrb[0].mxu0 %v556
    %v626 = vpop.f32.mrb[0].mxu0
    %v627 = vadd.f32 0.0, %v626
    %v628 = vpop.f32.mrb[0].mxu0
    %629 = vdwg.mxu0
    %631 = vrot.lane.b32.xlu0 %v395, 96
    %v632 = vpop.permute.xlu0 %631
    %v633 = vsel %vm401, %v395, 0
    %v635 = vsel %vm401, %v632, 0
    %637 = vmatprep.subr.mxu0 0.0
    %638 = vmatpush1.xpose.msra.mxu0 %v635
    %639 = vmatprep.subr.mxu0 0.0
    %640 = vmatpush1.xpose.msra.mxu0 0.0
    %641 = vmatprep.subr.mxu0 0.0
    %642 = vmatpush1.xpose.msra.mxu0 0.0
    %643 = vmatprep.subr.mxu0 0.0
    %644 = vmatpush1.xpose.msra.mxu0 0.0
    %645 = vmatprep.subr.mxu0 0.0
    %646 = vmatpush1.xpose.msra.mxu0 0.0
    %647 = vmatprep.subr.mxu0 0.0
    %648 = vmatpush1.xpose.msra.mxu0 0.0
    %649 = vmatprep.subr.mxu0 0.0
    %650 = vmatpush1.xpose.msra.mxu0 0.0
    %651 = vmatprep.subr.mxu0 0.0
    %652 = vmatpush1.xpose.msra.mxu0 0.0
    %653 = vmatprep.subr.mxu0 0.0
    %654 = vmatpush1.xpose.msra.mxu0 0.0
    %655 = vmatprep.subr.mxu0 0.0
    %656 = vmatpush1.xpose.msra.mxu0 0.0
    %657 = vmatprep.subr.mxu0 0.0
    %658 = vmatpush1.xpose.msra.mxu0 0.0
    %659 = vmatprep.subr.mxu0 0.0
    %660 = vmatpush1.xpose.msra.mxu0 0.0
    %661 = vmatprep.subr.mxu0 0.0
    %662 = vmatpush1.xpose.msra.mxu0 0.0
    %663 = vmatprep.subr.mxu0 0.0
    %664 = vmatpush1.xpose.msra.mxu0 0.0
    %665 = vmatprep.subr.mxu0 0.0
    %666 = vmatpush1.xpose.msra.mxu0 0.0
    %667 = vmatprep.subr.mxu0 0.0
    %668 = vmatpush1.xpose.msra.mxu0 0.0
    %669 = vmatprep.subr.mxu0 0.0
    %670 = vmatpush1.xpose.msra.mxu0 0.0
    %671 = vmatprep.subr.mxu0 0.0
    %672 = vmatpush1.xpose.msra.mxu0 0.0
    %673 = vmatprep.subr.mxu0 0.0
    %674 = vmatpush1.xpose.msra.mxu0 0.0
    %675 = vmatprep.subr.mxu0 0.0
    %676 = vmatpush1.xpose.msra.mxu0 0.0
    %677 = vmatprep.subr.mxu0 0.0
    %678 = vmatpush1.xpose.msra.mxu0 0.0
    %679 = vmatprep.subr.mxu0 0.0
    %680 = vmatpush1.xpose.msra.mxu0 0.0
    %681 = vmatprep.subr.mxu0 0.0
    %682 = vmatpush1.xpose.msra.mxu0 0.0
    %683 = vmatprep.subr.mxu0 0.0
    %684 = vmatpush1.xpose.msra.mxu0 0.0
    %685 = vmatprep.subr.mxu0 0.0
    %686 = vmatpush1.xpose.msra.mxu0 0.0
    %687 = vmatprep.subr.mxu0 0.0
    %688 = vmatpush1.xpose.msra.mxu0 0.0
    %689 = vmatprep.subr.mxu0 0.0
    %690 = vmatpush1.xpose.msra.mxu0 0.0
    %691 = vmatprep.subr.mxu0 0.0
    %692 = vmatpush1.xpose.msra.mxu0 0.0
    %693 = vmatprep.subr.mxu0 0.0
    %694 = vmatpush1.xpose.msra.mxu0 0.0
    %695 = vmatprep.subr.mxu0 0.0
    %696 = vmatpush1.xpose.msra.mxu0 0.0
    %697 = vmatprep.subr.mxu0 0.0
    %698 = vmatpush1.xpose.msra.mxu0 0.0
    %699 = vmatprep.subr.mxu0 0.0
    %700 = vmatpush1.xpose.msra.mxu0 0.0
    %701 = vmatprep.mubr.f32.mxu0 0.0
    %702 = vmatmul.mubr.f32.gmra.mrb[0].mxu0 %v633
    %v703 = vpop.f32.mrb[0].mxu0
    %v704 = vadd.f32 0.0, %v703
    %v705 = vpop.f32.mrb[0].mxu0
    %706 = vdwg.mxu0
    %v707 = vmul.f32 %v473, 0.35355338
    %v708 = vmul.f32 %v550, 0.35355338
    %v709 = vmul.f32 %v627, 0.35355338
    %v710 = vmul.f32 %v704, 0.35355338
    %v711 = vsel %vm401, %v707, -inf
    %712 = vmax.xlane.f32.xlu0 %v711
    %v713 = vpop.xlane.xlu0 %712
    %v714 = vsel %vm401, %v708, -inf
    %715 = vmax.xlane.f32.xlu0 %v714
    %v716 = vpop.xlane.xlu0 %715
    %v717 = vsel %vm401, %v709, -inf
    %718 = vmax.xlane.f32.xlu0 %v717
    %v719 = vpop.xlane.xlu0 %718
    %v720 = vsel %vm401, %v710, -inf
    %721 = vmax.xlane.f32.xlu0 %v720
    %v722 = vpop.xlane.xlu0 %721
    %v723 = vsub.f32 %v707, %v713
    %v724 = vsub.f32 %v708, %v716
    %v725 = vsub.f32 %v709, %v719
    %v726 = vsub.f32 %v710, %v722
    %v727 = vmul.f32 %v723, 1.442695
    %v728 = vpow.pop %v727
    %v729 = vmul.f32 %v724, 1.442695
    %v730 = vpow.pop %v729
    %v731 = vmul.f32 %v725, 1.442695
    %v732 = vpow.pop %v731
    %v733 = vmul.f32 %v726, 1.442695
    %v734 = vpow.pop %v733
    %v735 = vsel %vm401, %v728, 0.0
    %736 = vadd.xlane.f32.xlu0 %v735
    %v737 = vpop.xlane.xlu0 %736
    %v738 = vsel %vm401, %v730, 0.0
    %739 = vadd.xlane.f32.xlu0 %v738
    %v740 = vpop.xlane.xlu0 %739
    %v741 = vsel %vm401, %v732, 0.0
    %742 = vadd.xlane.f32.xlu0 %v741
    %v743 = vpop.xlane.xlu0 %742
    %v744 = vsel %vm401, %v734, 0.0
    %745 = vadd.xlane.f32.xlu0 %v744
    %v746 = vpop.xlane.xlu0 %745
    %v747 = vrcp.pop %v737
    %v748 = vmul.f32 %v728, %v747
    %v749 = vrcp.pop %v740
    %v750 = vmul.f32 %v730, %v749
    %v751 = vrcp.pop %v743
    %v752 = vmul.f32 %v732, %v751
    %v753 = vrcp.pop %v746
    %v754 = vmul.f32 %v734, %v753
    %755 = vrot.lane.b32.xlu0 %v380, 64
    %v756 = vpop.permute.xlu0 %755
    %v759 = vsel %vm401, %v748, 0
    %761 = vmatprep.subr.mxu0 0.0
    %762 = vmatpush1.msra.mxu0 %v756
    %763 = vmatprep.subr.mxu0 0.0
    %764 = vmatpush1.msra.mxu0 0.0
    %765 = vmatprep.subr.mxu0 0.0
    %766 = vmatpush1.msra.mxu0 0.0
    %767 = vmatprep.subr.mxu0 0.0
    %768 = vmatpush1.msra.mxu0 0.0
    %769 = vmatprep.subr.mxu0 0.0
    %770 = vmatpush1.msra.mxu0 0.0
    %771 = vmatprep.subr.mxu0 0.0
    %772 = vmatpush1.msra.mxu0 0.0
    %773 = vmatprep.subr.mxu0 0.0
    %774 = vmatpush1.msra.mxu0 0.0
    %775 = vmatprep.subr.mxu0 0.0
    %776 = vmatpush1.msra.mxu0 0.0
    %777 = vmatprep.subr.mxu0 0.0
    %778 = vmatpush1.msra.mxu0 0.0
    %779 = vmatprep.subr.mxu0 0.0
    %780 = vmatpush1.msra.mxu0 0.0
    %781 = vmatprep.subr.mxu0 0.0
    %782 = vmatpush1.msra.mxu0 0.0
    %783 = vmatprep.subr.mxu0 0.0
    %784 = vmatpush1.msra.mxu0 0.0
    %785 = vmatprep.subr.mxu0 0.0
    %786 = vmatpush1.msra.mxu0 0.0
    %787 = vmatprep.subr.mxu0 0.0
    %788 = vmatpush1.msra.mxu0 0.0
    %789 = vmatprep.subr.mxu0 0.0
    %790 = vmatpush1.msra.mxu0 0.0
    %791 = vmatprep.subr.mxu0 0.0
    %792 = vmatpush1.msra.mxu0 0.0
    %793 = vmatprep.subr.mxu0 0.0
    %794 = vmatpush1.msra.mxu0 0.0
    %795 = vmatprep.subr.mxu0 0.0
    %796 = vmatpush1.msra.mxu0 0.0
    %797 = vmatprep.subr.mxu0 0.0
    %798 = vmatpush1.msra.mxu0 0.0
    %799 = vmatprep.subr.mxu0 0.0
    %800 = vmatpush1.msra.mxu0 0.0
    %801 = vmatprep.subr.mxu0 0.0
    %802 = vmatpush1.msra.mxu0 0.0
    %803 = vmatprep.subr.mxu0 0.0
    %804 = vmatpush1.msra.mxu0 0.0
    %805 = vmatprep.subr.mxu0 0.0
    %806 = vmatpush1.msra.mxu0 0.0
    %807 = vmatprep.subr.mxu0 0.0
    %808 = vmatpush1.msra.mxu0 0.0
    %809 = vmatprep.subr.mxu0 0.0
    %810 = vmatpush1.msra.mxu0 0.0
    %811 = vmatprep.subr.mxu0 0.0
    %812 = vmatpush1.msra.mxu0 0.0
    %813 = vmatprep.subr.mxu0 0.0
    %814 = vmatpush1.msra.mxu0 0.0
    %815 = vmatprep.subr.mxu0 0.0
    %816 = vmatpush1.msra.mxu0 0.0
    %817 = vmatprep.subr.mxu0 0.0
    %818 = vmatpush1.msra.mxu0 0.0
    %819 = vmatprep.subr.mxu0 0.0
    %820 = vmatpush1.msra.mxu0 0.0
    %821 = vmatprep.subr.mxu0 0.0
    %822 = vmatpush1.msra.mxu0 0.0
    %823 = vmatprep.subr.mxu0 0.0
    %824 = vmatpush1.msra.mxu0 0.0
    %825 = vmatprep.mubr.f32.mxu0 0.0
    %826 = vmatmul.mubr.f32.gmra.mrb[0].mxu0 %v759
    %v827 = vpop.f32.mrb[0].mxu0
    %v828 = vadd.f32 0.0, %v827
    %v829 = vpop.f32.mrb[0].mxu0
    %830 = vdwg.mxu0
    %831 = vrot.lane.b32.xlu0 %v385, 64
    %v832 = vpop.permute.xlu0 %831
    %v835 = vsel %vm401, %v750, 0
    %837 = vmatprep.subr.mxu0 0.0
    %838 = vmatpush1.msra.mxu0 %v832
    %839 = vmatprep.subr.mxu0 0.0
    %840 = vmatpush1.msra.mxu0 0.0
    %841 = vmatprep.subr.mxu0 0.0
    %842 = vmatpush1.msra.mxu0 0.0
    %843 = vmatprep.subr.mxu0 0.0
    %844 = vmatpush1.msra.mxu0 0.0
    %845 = vmatprep.subr.mxu0 0.0
    %846 = vmatpush1.msra.mxu0 0.0
    %847 = vmatprep.subr.mxu0 0.0
    %848 = vmatpush1.msra.mxu0 0.0
    %849 = vmatprep.subr.mxu0 0.0
    %850 = vmatpush1.msra.mxu0 0.0
    %851 = vmatprep.subr.mxu0 0.0
    %852 = vmatpush1.msra.mxu0 0.0
    %853 = vmatprep.subr.mxu0 0.0
    %854 = vmatpush1.msra.mxu0 0.0
    %855 = vmatprep.subr.mxu0 0.0
    %856 = vmatpush1.msra.mxu0 0.0
    %857 = vmatprep.subr.mxu0 0.0
    %858 = vmatpush1.msra.mxu0 0.0
    %859 = vmatprep.subr.mxu0 0.0
    %860 = vmatpush1.msra.mxu0 0.0
    %861 = vmatprep.subr.mxu0 0.0
    %862 = vmatpush1.msra.mxu0 0.0
    %863 = vmatprep.subr.mxu0 0.0
    %864 = vmatpush1.msra.mxu0 0.0
    %865 = vmatprep.subr.mxu0 0.0
    %866 = vmatpush1.msra.mxu0 0.0
    %867 = vmatprep.subr.mxu0 0.0
    %868 = vmatpush1.msra.mxu0 0.0
    %869 = vmatprep.subr.mxu0 0.0
    %870 = vmatpush1.msra.mxu0 0.0
    %871 = vmatprep.subr.mxu0 0.0
    %872 = vmatpush1.msra.mxu0 0.0
    %873 = vmatprep.subr.mxu0 0.0
    %874 = vmatpush1.msra.mxu0 0.0
    %875 = vmatprep.subr.mxu0 0.0
    %876 = vmatpush1.msra.mxu0 0.0
    %877 = vmatprep.subr.mxu0 0.0
    %878 = vmatpush1.msra.mxu0 0.0
    %879 = vmatprep.subr.mxu0 0.0
    %880 = vmatpush1.msra.mxu0 0.0
    %881 = vmatprep.subr.mxu0 0.0
    %882 = vmatpush1.msra.mxu0 0.0
    %883 = vmatprep.subr.mxu0 0.0
    %884 = vmatpush1.msra.mxu0 0.0
    %885 = vmatprep.subr.mxu0 0.0
    %886 = vmatpush1.msra.mxu0 0.0
    %887 = vmatprep.subr.mxu0 0.0
    %888 = vmatpush1.msra.mxu0 0.0
    %889 = vmatprep.subr.mxu0 0.0
    %890 = vmatpush1.msra.mxu0 0.0
    %891 = vmatprep.subr.mxu0 0.0
    %892 = vmatpush1.msra.mxu0 0.0
    %893 = vmatprep.subr.mxu0 0.0
    %894 = vmatpush1.msra.mxu0 0.0
    %895 = vmatprep.subr.mxu0 0.0
    %896 = vmatpush1.msra.mxu0 0.0
    %897 = vmatprep.subr.mxu0 0.0
    %898 = vmatpush1.msra.mxu0 0.0
    %899 = vmatprep.subr.mxu0 0.0
    %900 = vmatpush1.msra.mxu0 0.0
    %901 = vmatprep.mubr.f32.mxu0 0.0
    %902 = vmatmul.mubr.f32.gmra.mrb[0].mxu0 %v835
    %v903 = vpop.f32.mrb[0].mxu0
    %v904 = vadd.f32 0.0, %v903
    %v905 = vpop.f32.mrb[0].mxu0
    %906 = vdwg.mxu0
    %907 = vrot.lane.b32.xlu0 %v390, 64
    %v908 = vpop.permute.xlu0 %907
    %v911 = vsel %vm401, %v752, 0
    %913 = vmatprep.subr.mxu0 0.0
    %914 = vmatpush1.msra.mxu0 %v908
    %915 = vmatprep.subr.mxu0 0.0
    %916 = vmatpush1.msra.mxu0 0.0
    %917 = vmatprep.subr.mxu0 0.0
    %918 = vmatpush1.msra.mxu0 0.0
    %919 = vmatprep.subr.mxu0 0.0
    %920 = vmatpush1.msra.mxu0 0.0
    %921 = vmatprep.subr.mxu0 0.0
    %922 = vmatpush1.msra.mxu0 0.0
    %923 = vmatprep.subr.mxu0 0.0
    %924 = vmatpush1.msra.mxu0 0.0
    %925 = vmatprep.subr.mxu0 0.0
    %926 = vmatpush1.msra.mxu0 0.0
    %927 = vmatprep.subr.mxu0 0.0
    %928 = vmatpush1.msra.mxu0 0.0
    %929 = vmatprep.subr.mxu0 0.0
    %930 = vmatpush1.msra.mxu0 0.0
    %931 = vmatprep.subr.mxu0 0.0
    %932 = vmatpush1.msra.mxu0 0.0
    %933 = vmatprep.subr.mxu0 0.0
    %934 = vmatpush1.msra.mxu0 0.0
    %935 = vmatprep.subr.mxu0 0.0
    %936 = vmatpush1.msra.mxu0 0.0
    %937 = vmatprep.subr.mxu0 0.0
    %938 = vmatpush1.msra.mxu0 0.0
    %939 = vmatprep.subr.mxu0 0.0
    %940 = vmatpush1.msra.mxu0 0.0
    %941 = vmatprep.subr.mxu0 0.0
    %942 = vmatpush1.msra.mxu0 0.0
    %943 = vmatprep.subr.mxu0 0.0
    %944 = vmatpush1.msra.mxu0 0.0
    %945 = vmatprep.subr.mxu0 0.0
    %946 = vmatpush1.msra.mxu0 0.0
    %947 = vmatprep.subr.mxu0 0.0
    %948 = vmatpush1.msra.mxu0 0.0
    %949 = vmatprep.subr.mxu0 0.0
    %950 = vmatpush1.msra.mxu0 0.0
    %951 = vmatprep.subr.mxu0 0.0
    %952 = vmatpush1.msra.mxu0 0.0
    %953 = vmatprep.subr.mxu0 0.0
    %954 = vmatpush1.msra.mxu0 0.0
    %955 = vmatprep.subr.mxu0 0.0
    %956 = vmatpush1.msra.mxu0 0.0
    %957 = vmatprep.subr.mxu0 0.0
    %958 = vmatpush1.msra.mxu0 0.0
    %959 = vmatprep.subr.mxu0 0.0
    %960 = vmatpush1.msra.mxu0 0.0
    %961 = vmatprep.subr.mxu0 0.0
    %962 = vmatpush1.msra.mxu0 0.0
    %963 = vmatprep.subr.mxu0 0.0
    %964 = vmatpush1.msra.mxu0 0.0
    %965 = vmatprep.subr.mxu0 0.0
    %966 = vmatpush1.msra.mxu0 0.0
    %967 = vmatprep.subr.mxu0 0.0
    %968 = vmatpush1.msra.mxu0 0.0
    %969 = vmatprep.subr.mxu0 0.0
    %970 = vmatpush1.msra.mxu0 0.0
    %971 = vmatprep.subr.mxu0 0.0
    %972 = vmatpush1.msra.mxu0 0.0
    %973 = vmatprep.subr.mxu0 0.0
    %974 = vmatpush1.msra.mxu0 0.0
    %975 = vmatprep.subr.mxu0 0.0
    %976 = vmatpush1.msra.mxu0 0.0
    %977 = vmatprep.mubr.f32.mxu0 0.0
    %978 = vmatmul.mubr.f32.gmra.mrb[0].mxu0 %v911
    %v979 = vpop.f32.mrb[0].mxu0
    %v980 = vadd.f32 0.0, %v979
    %v981 = vpop.f32.mrb[0].mxu0
    %982 = vdwg.mxu0
    %983 = vrot.lane.b32.xlu0 %v395, 64
    %v984 = vpop.permute.xlu0 %983
    %v987 = vsel %vm401, %v754, 0
    %989 = vmatprep.subr.mxu0 0.0
    %990 = vmatpush1.msra.mxu0 %v984
    %991 = vmatprep.subr.mxu0 0.0
    %992 = vmatpush1.msra.mxu0 0.0
    %993 = vmatprep.subr.mxu0 0.0
    %994 = vmatpush1.msra.mxu0 0.0
    %995 = vmatprep.subr.mxu0 0.0
    %996 = vmatpush1.msra.mxu0 0.0
    %997 = vmatprep.subr.mxu0 0.0
    %998 = vmatpush1.msra.mxu0 0.0
    %999 = vmatprep.subr.mxu0 0.0
    %1000 = vmatpush1.msra.mxu0 0.0
    %1001 = vmatprep.subr.mxu0 0.0
    %1002 = vmatpush1.msra.mxu0 0.0
    %1003 = vmatprep.subr.mxu0 0.0
    %1004 = vmatpush1.msra.mxu0 0.0
    %1005 = vmatprep.subr.mxu0 0.0
    %1006 = vmatpush1.msra.mxu0 0.0
    %1007 = vmatprep.subr.mxu0 0.0
    %1008 = vmatpush1.msra.mxu0 0.0
    %1009 = vmatprep.subr.mxu0 0.0
    %1010 = vmatpush1.msra.mxu0 0.0
    %1011 = vmatprep.subr.mxu0 0.0
    %1012 = vmatpush1.msra.mxu0 0.0
    %1013 = vmatprep.subr.mxu0 0.0
    %1014 = vmatpush1.msra.mxu0 0.0
    %1015 = vmatprep.subr.mxu0 0.0
    %1016 = vmatpush1.msra.mxu0 0.0
    %1017 = vmatprep.subr.mxu0 0.0
    %1018 = vmatpush1.msra.mxu0 0.0
    %1019 = vmatprep.subr.mxu0 0.0
    %1020 = vmatpush1.msra.mxu0 0.0
    %1021 = vmatprep.subr.mxu0 0.0
    %1022 = vmatpush1.msra.mxu0 0.0
    %1023 = vmatprep.subr.mxu0 0.0
    %1024 = vmatpush1.msra.mxu0 0.0
    %1025 = vmatprep.subr.mxu0 0.0
    %1026 = vmatpush1.msra.mxu0 0.0
    %1027 = vmatprep.subr.mxu0 0.0
    %1028 = vmatpush1.msra.mxu0 0.0
    %1029 = vmatprep.subr.mxu0 0.0
    %1030 = vmatpush1.msra.mxu0 0.0
    %1031 = vmatprep.subr.mxu0 0.0
    %1032 = vmatpush1.msra.mxu0 0.0
    %1033 = vmatprep.subr.mxu0 0.0
    %1034 = vmatpush1.msra.mxu0 0.0
    %1035 = vmatprep.subr.mxu0 0.0
    %1036 = vmatpush1.msra.mxu0 0.0
    %1037 = vmatprep.subr.mxu0 0.0
    %1038 = vmatpush1.msra.mxu0 0.0
    %1039 = vmatprep.subr.mxu0 0.0
    %1040 = vmatpush1.msra.mxu0 0.0
    %1041 = vmatprep.subr.mxu0 0.0
    %1042 = vmatpush1.msra.mxu0 0.0
    %1043 = vmatprep.subr.mxu0 0.0
    %1044 = vmatpush1.msra.mxu0 0.0
    %1045 = vmatprep.subr.mxu0 0.0
    %1046 = vmatpush1.msra.mxu0 0.0
    %1047 = vmatprep.subr.mxu0 0.0
    %1048 = vmatpush1.msra.mxu0 0.0
    %1049 = vmatprep.subr.mxu0 0.0
    %1050 = vmatpush1.msra.mxu0 0.0
    %1051 = vmatprep.subr.mxu0 0.0
    %1052 = vmatpush1.msra.mxu0 0.0
    %1053 = vmatprep.mubr.f32.mxu0 0.0
    %1054 = vmatmul.mubr.f32.gmra.mrb[0].mxu0 %v987
    %v1055 = vpop.f32.mrb[0].mxu0
    %v1056 = vadd.f32 0.0, %v1055
    %v1057 = vpop.f32.mrb[0].mxu0
    %1058 = vdwg.mxu0
    %1059 = vrot.lane.b32.xlu0 %v380, 120
    %v1060 = vpop.permute.xlu0 %1059
    %1061 = vrot.lane.b32.xlu0 %v380, 88
    %v1062 = vpop.permute.xlu0 %1061
    %v1063 = vsel %vm401, %v1060, 0
    %v1065 = vsel %vm401, %v1062, 0
    %1067 = vmatprep.subr.mxu0 0.0
    %1068 = vmatpush1.xpose.msra.mxu0 %v1065
    %1069 = vmatprep.subr.mxu0 0.0
    %1070 = vmatpush1.xpose.msra.mxu0 0.0
    %1071 = vmatprep.subr.mxu0 0.0
    %1072 = vmatpush1.xpose.msra.mxu0 0.0
    %1073 = vmatprep.subr.mxu0 0.0
    %1074 = vmatpush1.xpose.msra.mxu0 0.0
    %1075 = vmatprep.subr.mxu0 0.0
    %1076 = vmatpush1.xpose.msra.mxu0 0.0
    %1077 = vmatprep.subr.mxu0 0.0
    %1078 = vmatpush1.xpose.msra.mxu0 0.0
    %1079 = vmatprep.subr.mxu0 0.0
    %1080 = vmatpush1.xpose.msra.mxu0 0.0
    %1081 = vmatprep.subr.mxu0 0.0
    %1082 = vmatpush1.xpose.msra.mxu0 0.0
    %1083 = vmatprep.subr.mxu0 0.0
    %1084 = vmatpush1.xpose.msra.mxu0 0.0
    %1085 = vmatprep.subr.mxu0 0.0
    %1086 = vmatpush1.xpose.msra.mxu0 0.0
    %1087 = vmatprep.subr.mxu0 0.0
    %1088 = vmatpush1.xpose.msra.mxu0 0.0
    %1089 = vmatprep.subr.mxu0 0.0
    %1090 = vmatpush1.xpose.msra.mxu0 0.0
    %1091 = vmatprep.subr.mxu0 0.0
    %1092 = vmatpush1.xpose.msra.mxu0 0.0
    %1093 = vmatprep.subr.mxu0 0.0
    %1094 = vmatpush1.xpose.msra.mxu0 0.0
    %1095 = vmatprep.subr.mxu0 0.0
    %1096 = vmatpush1.xpose.msra.mxu0 0.0
    %1097 = vmatprep.subr.mxu0 0.0
    %1098 = vmatpush1.xpose.msra.mxu0 0.0
    %1099 = vmatprep.subr.mxu0 0.0
    %1100 = vmatpush1.xpose.msra.mxu0 0.0
    %1101 = vmatprep.subr.mxu0 0.0
    %1102 = vmatpush1.xpose.msra.mxu0 0.0
    %1103 = vmatprep.subr.mxu0 0.0
    %1104 = vmatpush1.xpose.msra.mxu0 0.0
    %1105 = vmatprep.subr.mxu0 0.0
    %1106 = vmatpush1.xpose.msra.mxu0 0.0
    %1107 = vmatprep.subr.mxu0 0.0
    %1108 = vmatpush1.xpose.msra.mxu0 0.0
    %1109 = vmatprep.subr.mxu0 0.0
    %1110 = vmatpush1.xpose.msra.mxu0 0.0
    %1111 = vmatprep.subr.mxu0 0.0
    %1112 = vmatpush1.xpose.msra.mxu0 0.0
    %1113 = vmatprep.subr.mxu0 0.0
    %1114 = vmatpush1.xpose.msra.mxu0 0.0
    %1115 = vmatprep.subr.mxu0 0.0
    %1116 = vmatpush1.xpose.msra.mxu0 0.0
    %1117 = vmatprep.subr.mxu0 0.0
    %1118 = vmatpush1.xpose.msra.mxu0 0.0
    %1119 = vmatprep.subr.mxu0 0.0
    %1120 = vmatpush1.xpose.msra.mxu0 0.0
    %1121 = vmatprep.subr.mxu0 0.0
    %1122 = vmatpush1.xpose.msra.mxu0 0.0
    %1123 = vmatprep.subr.mxu0 0.0
    %1124 = vmatpush1.xpose.msra.mxu0 0.0
    %1125 = vmatprep.subr.mxu0 0.0
    %1126 = vmatpush1.xpose.msra.mxu0 0.0
    %1127 = vmatprep.subr.mxu0 0.0
    %1128 = vmatpush1.xpose.msra.mxu0 0.0
    %1129 = vmatprep.subr.mxu0 0.0
    %1130 = vmatpush1.xpose.msra.mxu0 0.0
    %1131 = vmatprep.mubr.f32.mxu0 0.0
    %1132 = vmatmul.mubr.f32.gmra.mrb[0].mxu0 %v1063
    %v1133 = vpop.f32.mrb[0].mxu0
    %v1134 = vadd.f32 0.0, %v1133
    %v1135 = vpop.f32.mrb[0].mxu0
    %1136 = vdwg.mxu0
    %1137 = vrot.lane.b32.xlu0 %v385, 120
    %v1138 = vpop.permute.xlu0 %1137
    %1139 = vrot.lane.b32.xlu0 %v385, 88
    %v1140 = vpop.permute.xlu0 %1139
    %v1141 = vsel %vm401, %v1138, 0
    %v1143 = vsel %vm401, %v1140, 0
    %1145 = vmatprep.subr.mxu0 0.0
    %1146 = vmatpush1.xpose.msra.mxu0 %v1143
    %1147 = vmatprep.subr.mxu0 0.0
    %1148 = vmatpush1.xpose.msra.mxu0 0.0
    %1149 = vmatprep.subr.mxu0 0.0
    %1150 = vmatpush1.xpose.msra.mxu0 0.0
    %1151 = vmatprep.subr.mxu0 0.0
    %1152 = vmatpush1.xpose.msra.mxu0 0.0
    %1153 = vmatprep.subr.mxu0 0.0
    %1154 = vmatpush1.xpose.msra.mxu0 0.0
    %1155 = vmatprep.subr.mxu0 0.0
    %1156 = vmatpush1.xpose.msra.mxu0 0.0
    %1157 = vmatprep.subr.mxu0 0.0
    %1158 = vmatpush1.xpose.msra.mxu0 0.0
    %1159 = vmatprep.subr.mxu0 0.0
    %1160 = vmatpush1.xpose.msra.mxu0 0.0
    %1161 = vmatprep.subr.mxu0 0.0
    %1162 = vmatpush1.xpose.msra.mxu0 0.0
    %1163 = vmatprep.subr.mxu0 0.0
    %1164 = vmatpush1.xpose.msra.mxu0 0.0
    %1165 = vmatprep.subr.mxu0 0.0
    %1166 = vmatpush1.xpose.msra.mxu0 0.0
    %1167 = vmatprep.subr.mxu0 0.0
    %1168 = vmatpush1.xpose.msra.mxu0 0.0
    %1169 = vmatprep.subr.mxu0 0.0
    %1170 = vmatpush1.xpose.msra.mxu0 0.0
    %1171 = vmatprep.subr.mxu0 0.0
    %1172 = vmatpush1.xpose.msra.mxu0 0.0
    %1173 = vmatprep.subr.mxu0 0.0
    %1174 = vmatpush1.xpose.msra.mxu0 0.0
    %1175 = vmatprep.subr.mxu0 0.0
    %1176 = vmatpush1.xpose.msra.mxu0 0.0
    %1177 = vmatprep.subr.mxu0 0.0
    %1178 = vmatpush1.xpose.msra.mxu0 0.0
    %1179 = vmatprep.subr.mxu0 0.0
    %1180 = vmatpush1.xpose.msra.mxu0 0.0
    %1181 = vmatprep.subr.mxu0 0.0
    %1182 = vmatpush1.xpose.msra.mxu0 0.0
    %1183 = vmatprep.subr.mxu0 0.0
    %1184 = vmatpush1.xpose.msra.mxu0 0.0
    %1185 = vmatprep.subr.mxu0 0.0
    %1186 = vmatpush1.xpose.msra.mxu0 0.0
    %1187 = vmatprep.subr.mxu0 0.0
    %1188 = vmatpush1.xpose.msra.mxu0 0.0
    %1189 = vmatprep.subr.mxu0 0.0
    %1190 = vmatpush1.xpose.msra.mxu0 0.0
    %1191 = vmatprep.subr.mxu0 0.0
    %1192 = vmatpush1.xpose.msra.mxu0 0.0
    %1193 = vmatprep.subr.mxu0 0.0
    %1194 = vmatpush1.xpose.msra.mxu0 0.0
    %1195 = vmatprep.subr.mxu0 0.0
    %1196 = vmatpush1.xpose.msra.mxu0 0.0
    %1197 = vmatprep.subr.mxu0 0.0
    %1198 = vmatpush1.xpose.msra.mxu0 0.0
    %1199 = vmatprep.subr.mxu0 0.0
    %1200 = vmatpush1.xpose.msra.mxu0 0.0
    %1201 = vmatprep.subr.mxu0 0.0
    %1202 = vmatpush1.xpose.msra.mxu0 0.0
    %1203 = vmatprep.subr.mxu0 0.0
    %1204 = vmatpush1.xpose.msra.mxu0 0.0
    %1205 = vmatprep.subr.mxu0 0.0
    %1206 = vmatpush1.xpose.msra.mxu0 0.0
    %1207 = vmatprep.subr.mxu0 0.0
    %1208 = vmatpush1.xpose.msra.mxu0 0.0
    %1209 = vmatprep.mubr.f32.mxu0 0.0
    %1210 = vmatmul.mubr.f32.gmra.mrb[0].mxu0 %v1141
    %v1211 = vpop.f32.mrb[0].mxu0
    %v1212 = vadd.f32 0.0, %v1211
    %v1213 = vpop.f32.mrb[0].mxu0
    %1214 = vdwg.mxu0
    %1215 = vrot.lane.b32.xlu0 %v390, 120
    %v1216 = vpop.permute.xlu0 %1215
    %1217 = vrot.lane.b32.xlu0 %v390, 88
    %v1218 = vpop.permute.xlu0 %1217
    %v1219 = vsel %vm401, %v1216, 0
    %v1221 = vsel %vm401, %v1218, 0
    %1223 = vmatprep.subr.mxu0 0.0
    %1224 = vmatpush1.xpose.msra.mxu0 %v1221
    %1225 = vmatprep.subr.mxu0 0.0
    %1226 = vmatpush1.xpose.msra.mxu0 0.0
    %1227 = vmatprep.subr.mxu0 0.0
    %1228 = vmatpush1.xpose.msra.mxu0 0.0
    %1229 = vmatprep.subr.mxu0 0.0
    %1230 = vmatpush1.xpose.msra.mxu0 0.0
    %1231 = vmatprep.subr.mxu0 0.0
    %1232 = vmatpush1.xpose.msra.mxu0 0.0
    %1233 = vmatprep.subr.mxu0 0.0
    %1234 = vmatpush1.xpose.msra.mxu0 0.0
    %1235 = vmatprep.subr.mxu0 0.0
    %1236 = vmatpush1.xpose.msra.mxu0 0.0
    %1237 = vmatprep.subr.mxu0 0.0
    %1238 = vmatpush1.xpose.msra.mxu0 0.0
    %1239 = vmatprep.subr.mxu0 0.0
    %1240 = vmatpush1.xpose.msra.mxu0 0.0
    %1241 = vmatprep.subr.mxu0 0.0
    %1242 = vmatpush1.xpose.msra.mxu0 0.0
    %1243 = vmatprep.subr.mxu0 0.0
    %1244 = vmatpush1.xpose.msra.mxu0 0.0
    %1245 = vmatprep.subr.mxu0 0.0
    %1246 = vmatpush1.xpose.msra.mxu0 0.0
    %1247 = vmatprep.subr.mxu0 0.0
    %1248 = vmatpush1.xpose.msra.mxu0 0.0
    %1249 = vmatprep.subr.mxu0 0.0
    %1250 = vmatpush1.xpose.msra.mxu0 0.0
    %1251 = vmatprep.subr.mxu0 0.0
    %1252 = vmatpush1.xpose.msra.mxu0 0.0
    %1253 = vmatprep.subr.mxu0 0.0
    %1254 = vmatpush1.xpose.msra.mxu0 0.0
    %1255 = vmatprep.subr.mxu0 0.0
    %1256 = vmatpush1.xpose.msra.mxu0 0.0
    %1257 = vmatprep.subr.mxu0 0.0
    %1258 = vmatpush1.xpose.msra.mxu0 0.0
    %1259 = vmatprep.subr.mxu0 0.0
    %1260 = vmatpush1.xpose.msra.mxu0 0.0
    %1261 = vmatprep.subr.mxu0 0.0
    %1262 = vmatpush1.xpose.msra.mxu0 0.0
    %1263 = vmatprep.subr.mxu0 0.0
    %1264 = vmatpush1.xpose.msra.mxu0 0.0
    %1265 = vmatprep.subr.mxu0 0.0
    %1266 = vmatpush1.xpose.msra.mxu0 0.0
    %1267 = vmatprep.subr.mxu0 0.0
    %1268 = vmatpush1.xpose.msra.mxu0 0.0
    %1269 = vmatprep.subr.mxu0 0.0
    %1270 = vmatpush1.xpose.msra.mxu0 0.0
    %1271 = vmatprep.subr.mxu0 0.0
    %1272 = vmatpush1.xpose.msra.mxu0 0.0
    %1273 = vmatprep.subr.mxu0 0.0
    %1274 = vmatpush1.xpose.msra.mxu0 0.0
    %1275 = vmatprep.subr.mxu0 0.0
    %1276 = vmatpush1.xpose.msra.mxu0 0.0
    %1277 = vmatprep.subr.mxu0 0.0
    %1278 = vmatpush1.xpose.msra.mxu0 0.0
    %1279 = vmatprep.subr.mxu0 0.0
    %1280 = vmatpush1.xpose.msra.mxu0 0.0
    %1281 = vmatprep.subr.mxu0 0.0
    %1282 = vmatpush1.xpose.msra.mxu0 0.0
    %1283 = vmatprep.subr.mxu0 0.0
    %1284 = vmatpush1.xpose.msra.mxu0 0.0
    %1285 = vmatprep.subr.mxu0 0.0
    %1286 = vmatpush1.xpose.msra.mxu0 0.0
    %1287 = vmatprep.mubr.f32.mxu0 0.0
    %1288 = vmatmul.mubr.f32.gmra.mrb[0].mxu0 %v1219
    %v1289 = vpop.f32.mrb[0].mxu0
    %v1290 = vadd.f32 0.0, %v1289
    %v1291 = vpop.f32.mrb[0].mxu0
    %1292 = vdwg.mxu0
    %1293 = vrot.lane.b32.xlu0 %v395, 120
    %v1294 = vpop.permute.xlu0 %1293
    %1295 = vrot.lane.b32.xlu0 %v395, 88
    %v1296 = vpop.permute.xlu0 %1295
    %v1297 = vsel %vm401, %v1294, 0
    %v1299 = vsel %vm401, %v1296, 0
    %1301 = vmatprep.subr.mxu0 0.0
    %1302 = vmatpush1.xpose.msra.mxu0 %v1299
    %1303 = vmatprep.subr.mxu0 0.0
    %1304 = vmatpush1.xpose.msra.mxu0 0.0
    %1305 = vmatprep.subr.mxu0 0.0
    %1306 = vmatpush1.xpose.msra.mxu0 0.0
    %1307 = vmatprep.subr.mxu0 0.0
    %1308 = vmatpush1.xpose.msra.mxu0 0.0
    %1309 = vmatprep.subr.mxu0 0.0
    %1310 = vmatpush1.xpose.msra.mxu0 0.0
    %1311 = vmatprep.subr.mxu0 0.0
    %1312 = vmatpush1.xpose.msra.mxu0 0.0
    %1313 = vmatprep.subr.mxu0 0.0
    %1314 = vmatpush1.xpose.msra.mxu0 0.0
    %1315 = vmatprep.subr.mxu0 0.0
    %1316 = vmatpush1.xpose.msra.mxu0 0.0
    %1317 = vmatprep.subr.mxu0 0.0
    %1318 = vmatpush1.xpose.msra.mxu0 0.0
    %1319 = vmatprep.subr.mxu0 0.0
    %1320 = vmatpush1.xpose.msra.mxu0 0.0
    %1321 = vmatprep.subr.mxu0 0.0
    %1322 = vmatpush1.xpose.msra.mxu0 0.0
    %1323 = vmatprep.subr.mxu0 0.0
    %1324 = vmatpush1.xpose.msra.mxu0 0.0
    %1325 = vmatprep.subr.mxu0 0.0
    %1326 = vmatpush1.xpose.msra.mxu0 0.0
    %1327 = vmatprep.subr.mxu0 0.0
    %1328 = vmatpush1.xpose.msra.mxu0 0.0
    %1329 = vmatprep.subr.mxu0 0.0
    %1330 = vmatpush1.xpose.msra.mxu0 0.0
    %1331 = vmatprep.subr.mxu0 0.0
    %1332 = vmatpush1.xpose.msra.mxu0 0.0
    %1333 = vmatprep.subr.mxu0 0.0
    %1334 = vmatpush1.xpose.msra.mxu0 0.0
    %1335 = vmatprep.subr.mxu0 0.0
    %1336 = vmatpush1.xpose.msra.mxu0 0.0
    %1337 = vmatprep.subr.mxu0 0.0
    %1338 = vmatpush1.xpose.msra.mxu0 0.0
    %1339 = vmatprep.subr.mxu0 0.0
    %1340 = vmatpush1.xpose.msra.mxu0 0.0
    %1341 = vmatprep.subr.mxu0 0.0
    %1342 = vmatpush1.xpose.msra.mxu0 0.0
    %1343 = vmatprep.subr.mxu0 0.0
    %1344 = vmatpush1.xpose.msra.mxu0 0.0
    %1345 = vmatprep.subr.mxu0 0.0
    %1346 = vmatpush1.xpose.msra.mxu0 0.0
    %1347 = vmatprep.subr.mxu0 0.0
    %1348 = vmatpush1.xpose.msra.mxu0 0.0
    %1349 = vmatprep.subr.mxu0 0.0
    %1350 = vmatpush1.xpose.msra.mxu0 0.0
    %1351 = vmatprep.subr.mxu0 0.0
    %1352 = vmatpush1.xpose.msra.mxu0 0.0
    %1353 = vmatprep.subr.mxu0 0.0
    %1354 = vmatpush1.xpose.msra.mxu0 0.0
    %1355 = vmatprep.subr.mxu0 0.0
    %1356 = vmatpush1.xpose.msra.mxu0 0.0
    %1357 = vmatprep.subr.mxu0 0.0
    %1358 = vmatpush1.xpose.msra.mxu0 0.0
    %1359 = vmatprep.subr.mxu0 0.0
    %1360 = vmatpush1.xpose.msra.mxu0 0.0
    %1361 = vmatprep.subr.mxu0 0.0
    %1362 = vmatpush1.xpose.msra.mxu0 0.0
    %1363 = vmatprep.subr.mxu0 0.0
    %1364 = vmatpush1.xpose.msra.mxu0 0.0
    %1365 = vmatprep.mubr.f32.mxu0 0.0
    %1366 = vmatmul.mubr.f32.gmra.mrb[0].mxu0 %v1297
    %v1367 = vpop.f32.mrb[0].mxu0
    %v1368 = vadd.f32 0.0, %v1367
    %v1369 = vpop.f32.mrb[0].mxu0
    %1370 = vdwg.mxu0
    %v1371 = vmul.f32 %v1134, 0.35355338
    %v1372 = vmul.f32 %v1212, 0.35355338
    %v1373 = vmul.f32 %v1290, 0.35355338
    %v1374 = vmul.f32 %v1368, 0.35355338
    %v1375 = vsel %vm401, %v1371, -inf
    %1376 = vmax.xlane.f32.xlu0 %v1375
    %v1377 = vpop.xlane.xlu0 %1376
    %v1378 = vsel %vm401, %v1372, -inf
    %1379 = vmax.xlane.f32.xlu0 %v1378
    %v1380 = vpop.xlane.xlu0 %1379
    %v1381 = vsel %vm401, %v1373, -inf
    %1382 = vmax.xlane.f32.xlu0 %v1381
    %v1383 = vpop.xlane.xlu0 %1382
    %v1384 = vsel %vm401, %v1374, -inf
    %1385 = vmax.xlane.f32.xlu0 %v1384
    %v1386 = vpop.xlane.xlu0 %1385
    %v1387 = vsub.f32 %v1371, %v1377
    %v1388 = vsub.f32 %v1372, %v1380
    %v1389 = vsub.f32 %v1373, %v1383
    %v1390 = vsub.f32 %v1374, %v1386
    %v1391 = vmul.f32 %v1387, 1.442695
    %v1392 = vpow.pop %v1391
    %v1393 = vmul.f32 %v1388, 1.442695
    %v1394 = vpow.pop %v1393
    %v1395 = vmul.f32 %v1389, 1.442695
    %v1396 = vpow.pop %v1395
    %v1397 = vmul.f32 %v1390, 1.442695
    %v1398 = vpow.pop %v1397
    %v1399 = vsel %vm401, %v1392, 0.0
    %1400 = vadd.xlane.f32.xlu0 %v1399
    %v1401 = vpop.xlane.xlu0 %1400
    %v1402 = vsel %vm401, %v1394, 0.0
    %1403 = vadd.xlane.f32.xlu0 %v1402
    %v1404 = vpop.xlane.xlu0 %1403
    %v1405 = vsel %vm401, %v1396, 0.0
    %1406 = vadd.xlane.f32.xlu0 %v1405
    %v1407 = vpop.xlane.xlu0 %1406
    %v1408 = vsel %vm401, %v1398, 0.0
    %1409 = vadd.xlane.f32.xlu0 %v1408
    %v1410 = vpop.xlane.xlu0 %1409
    %v1411 = vrcp.pop %v1401
    %v1412 = vmul.f32 %v1392, %v1411
    %v1413 = vrcp.pop %v1404
    %v1414 = vmul.f32 %v1394, %v1413
    %v1415 = vrcp.pop %v1407
    %v1416 = vmul.f32 %v1396, %v1415
    %v1417 = vrcp.pop %v1410
    %v1418 = vmul.f32 %v1398, %v1417
    %1419 = vrot.lane.b32.xlu0 %v380, 56
    %v1420 = vpop.permute.xlu0 %1419
    %v1423 = vsel %vm401, %v1412, 0
    %1425 = vmatprep.subr.mxu0 0.0
    %1426 = vmatpush1.msra.mxu0 %v1420
    %1427 = vmatprep.subr.mxu0 0.0
    %1428 = vmatpush1.msra.mxu0 0.0
    %1429 = vmatprep.subr.mxu0 0.0
    %1430 = vmatpush1.msra.mxu0 0.0
    %1431 = vmatprep.subr.mxu0 0.0
    %1432 = vmatpush1.msra.mxu0 0.0
    %1433 = vmatprep.subr.mxu0 0.0
    %1434 = vmatpush1.msra.mxu0 0.0
    %1435 = vmatprep.subr.mxu0 0.0
    %1436 = vmatpush1.msra.mxu0 0.0
    %1437 = vmatprep.subr.mxu0 0.0
    %1438 = vmatpush1.msra.mxu0 0.0
    %1439 = vmatprep.subr.mxu0 0.0
    %1440 = vmatpush1.msra.mxu0 0.0
    %1441 = vmatprep.subr.mxu0 0.0
    %1442 = vmatpush1.msra.mxu0 0.0
    %1443 = vmatprep.subr.mxu0 0.0
    %1444 = vmatpush1.msra.mxu0 0.0
    %1445 = vmatprep.subr.mxu0 0.0
    %1446 = vmatpush1.msra.mxu0 0.0
    %1447 = vmatprep.subr.mxu0 0.0
    %1448 = vmatpush1.msra.mxu0 0.0
    %1449 = vmatprep.subr.mxu0 0.0
    %1450 = vmatpush1.msra.mxu0 0.0
    %1451 = vmatprep.subr.mxu0 0.0
    %1452 = vmatpush1.msra.mxu0 0.0
    %1453 = vmatprep.subr.mxu0 0.0
    %1454 = vmatpush1.msra.mxu0 0.0
    %1455 = vmatprep.subr.mxu0 0.0
    %1456 = vmatpush1.msra.mxu0 0.0
    %1457 = vmatprep.subr.mxu0 0.0
    %1458 = vmatpush1.msra.mxu0 0.0
    %1459 = vmatprep.subr.mxu0 0.0
    %1460 = vmatpush1.msra.mxu0 0.0
    %1461 = vmatprep.subr.mxu0 0.0
    %1462 = vmatpush1.msra.mxu0 0.0
    %1463 = vmatprep.subr.mxu0 0.0
    %1464 = vmatpush1.msra.mxu0 0.0
    %1465 = vmatprep.subr.mxu0 0.0
    %1466 = vmatpush1.msra.mxu0 0.0
    %1467 = vmatprep.subr.mxu0 0.0
    %1468 = vmatpush1.msra.mxu0 0.0
    %1469 = vmatprep.subr.mxu0 0.0
    %1470 = vmatpush1.msra.mxu0 0.0
    %1471 = vmatprep.subr.mxu0 0.0
    %1472 = vmatpush1.msra.mxu0 0.0
    %1473 = vmatprep.subr.mxu0 0.0
    %1474 = vmatpush1.msra.mxu0 0.0
    %1475 = vmatprep.subr.mxu0 0.0
    %1476 = vmatpush1.msra.mxu0 0.0
    %1477 = vmatprep.subr.mxu0 0.0
    %1478 = vmatpush1.msra.mxu0 0.0
    %1479 = vmatprep.subr.mxu0 0.0
    %1480 = vmatpush1.msra.mxu0 0.0
    %1481 = vmatprep.subr.mxu0 0.0
    %1482 = vmatpush1.msra.mxu0 0.0
    %1483 = vmatprep.subr.mxu0 0.0
    %1484 = vmatpush1.msra.mxu0 0.0
    %1485 = vmatprep.subr.mxu0 0.0
    %1486 = vmatpush1.msra.mxu0 0.0
    %1487 = vmatprep.subr.mxu0 0.0
    %1488 = vmatpush1.msra.mxu0 0.0
    %1489 = vmatprep.mubr.f32.mxu0 0.0
    %1490 = vmatmul.mubr.f32.gmra.mrb[0].mxu0 %v1423
    %v1491 = vpop.f32.mrb[0].mxu0
    %v1492 = vadd.f32 0.0, %v1491
    %v1493 = vpop.f32.mrb[0].mxu0
    %1494 = vdwg.mxu0
    %1495 = vrot.lane.b32.xlu0 %v385, 56
    %v1496 = vpop.permute.xlu0 %1495
    %v1499 = vsel %vm401, %v1414, 0
    %1501 = vmatprep.subr.mxu0 0.0
    %1502 = vmatpush1.msra.mxu0 %v1496
    %1503 = vmatprep.subr.mxu0 0.0
    %1504 = vmatpush1.msra.mxu0 0.0
    %1505 = vmatprep.subr.mxu0 0.0
    %1506 = vmatpush1.msra.mxu0 0.0
    %1507 = vmatprep.subr.mxu0 0.0
    %1508 = vmatpush1.msra.mxu0 0.0
    %1509 = vmatprep.subr.mxu0 0.0
    %1510 = vmatpush1.msra.mxu0 0.0
    %1511 = vmatprep.subr.mxu0 0.0
    %1512 = vmatpush1.msra.mxu0 0.0
    %1513 = vmatprep.subr.mxu0 0.0
    %1514 = vmatpush1.msra.mxu0 0.0
    %1515 = vmatprep.subr.mxu0 0.0
    %1516 = vmatpush1.msra.mxu0 0.0
    %1517 = vmatprep.subr.mxu0 0.0
    %1518 = vmatpush1.msra.mxu0 0.0
    %1519 = vmatprep.subr.mxu0 0.0
    %1520 = vmatpush1.msra.mxu0 0.0
    %1521 = vmatprep.subr.mxu0 0.0
    %1522 = vmatpush1.msra.mxu0 0.0
    %1523 = vmatprep.subr.mxu0 0.0
    %1524 = vmatpush1.msra.mxu0 0.0
    %1525 = vmatprep.subr.mxu0 0.0
    %1526 = vmatpush1.msra.mxu0 0.0
    %1527 = vmatprep.subr.mxu0 0.0
    %1528 = vmatpush1.msra.mxu0 0.0
    %1529 = vmatprep.subr.mxu0 0.0
    %1530 = vmatpush1.msra.mxu0 0.0
    %1531 = vmatprep.subr.mxu0 0.0
    %1532 = vmatpush1.msra.mxu0 0.0
    %1533 = vmatprep.subr.mxu0 0.0
    %1534 = vmatpush1.msra.mxu0 0.0
    %1535 = vmatprep.subr.mxu0 0.0
    %1536 = vmatpush1.msra.mxu0 0.0
    %1537 = vmatprep.subr.mxu0 0.0
    %1538 = vmatpush1.msra.mxu0 0.0
    %1539 = vmatprep.subr.mxu0 0.0
    %1540 = vmatpush1.msra.mxu0 0.0
    %1541 = vmatprep.subr.mxu0 0.0
    %1542 = vmatpush1.msra.mxu0 0.0
    %1543 = vmatprep.subr.mxu0 0.0
    %1544 = vmatpush1.msra.mxu0 0.0
    %1545 = vmatprep.subr.mxu0 0.0
    %1546 = vmatpush1.msra.mxu0 0.0
    %1547 = vmatprep.subr.mxu0 0.0
    %1548 = vmatpush1.msra.mxu0 0.0
    %1549 = vmatprep.subr.mxu0 0.0
    %1550 = vmatpush1.msra.mxu0 0.0
    %1551 = vmatprep.subr.mxu0 0.0
    %1552 = vmatpush1.msra.mxu0 0.0
    %1553 = vmatprep.subr.mxu0 0.0
    %1554 = vmatpush1.msra.mxu0 0.0
    %1555 = vmatprep.subr.mxu0 0.0
    %1556 = vmatpush1.msra.mxu0 0.0
    %1557 = vmatprep.subr.mxu0 0.0
    %1558 = vmatpush1.msra.mxu0 0.0
    %1559 = vmatprep.subr.mxu0 0.0
    %1560 = vmatpush1.msra.mxu0 0.0
    %1561 = vmatprep.subr.mxu0 0.0
    %1562 = vmatpush1.msra.mxu0 0.0
    %1563 = vmatprep.subr.mxu0 0.0
    %1564 = vmatpush1.msra.mxu0 0.0
    %1565 = vmatprep.mubr.f32.mxu0 0.0
    %1566 = vmatmul.mubr.f32.gmra.mrb[0].mxu0 %v1499
    %v1567 = vpop.f32.mrb[0].mxu0
    %v1568 = vadd.f32 0.0, %v1567
    %v1569 = vpop.f32.mrb[0].mxu0
    %1570 = vdwg.mxu0
    %1571 = vrot.lane.b32.xlu0 %v390, 56
    %v1572 = vpop.permute.xlu0 %1571
    %v1575 = vsel %vm401, %v1416, 0
    %1577 = vmatprep.subr.mxu0 0.0
    %1578 = vmatpush1.msra.mxu0 %v1572
    %1579 = vmatprep.subr.mxu0 0.0
    %1580 = vmatpush1.msra.mxu0 0.0
    %1581 = vmatprep.subr.mxu0 0.0
    %1582 = vmatpush1.msra.mxu0 0.0
    %1583 = vmatprep.subr.mxu0 0.0
    %1584 = vmatpush1.msra.mxu0 0.0
    %1585 = vmatprep.subr.mxu0 0.0
    %1586 = vmatpush1.msra.mxu0 0.0
    %1587 = vmatprep.subr.mxu0 0.0
    %1588 = vmatpush1.msra.mxu0 0.0
    %1589 = vmatprep.subr.mxu0 0.0
    %1590 = vmatpush1.msra.mxu0 0.0
    %1591 = vmatprep.subr.mxu0 0.0
    %1592 = vmatpush1.msra.mxu0 0.0
    %1593 = vmatprep.subr.mxu0 0.0
    %1594 = vmatpush1.msra.mxu0 0.0
    %1595 = vmatprep.subr.mxu0 0.0
    %1596 = vmatpush1.msra.mxu0 0.0
    %1597 = vmatprep.subr.mxu0 0.0
    %1598 = vmatpush1.msra.mxu0 0.0
    %1599 = vmatprep.subr.mxu0 0.0
    %1600 = vmatpush1.msra.mxu0 0.0
    %1601 = vmatprep.subr.mxu0 0.0
    %1602 = vmatpush1.msra.mxu0 0.0
    %1603 = vmatprep.subr.mxu0 0.0
    %1604 = vmatpush1.msra.mxu0 0.0
    %1605 = vmatprep.subr.mxu0 0.0
    %1606 = vmatpush1.msra.mxu0 0.0
    %1607 = vmatprep.subr.mxu0 0.0
    %1608 = vmatpush1.msra.mxu0 0.0
    %1609 = vmatprep.subr.mxu0 0.0
    %1610 = vmatpush1.msra.mxu0 0.0
    %1611 = vmatprep.subr.mxu0 0.0
    %1612 = vmatpush1.msra.mxu0 0.0
    %1613 = vmatprep.subr.mxu0 0.0
    %1614 = vmatpush1.msra.mxu0 0.0
    %1615 = vmatprep.subr.mxu0 0.0
    %1616 = vmatpush1.msra.mxu0 0.0
    %1617 = vmatprep.subr.mxu0 0.0
    %1618 = vmatpush1.msra.mxu0 0.0
    %1619 = vmatprep.subr.mxu0 0.0
    %1620 = vmatpush1.msra.mxu0 0.0
    %1621 = vmatprep.subr.mxu0 0.0
    %1622 = vmatpush1.msra.mxu0 0.0
    %1623 = vmatprep.subr.mxu0 0.0
    %1624 = vmatpush1.msra.mxu0 0.0
    %1625 = vmatprep.subr.mxu0 0.0
    %1626 = vmatpush1.msra.mxu0 0.0
    %1627 = vmatprep.subr.mxu0 0.0
    %1628 = vmatpush1.msra.mxu0 0.0
    %1629 = vmatprep.subr.mxu0 0.0
    %1630 = vmatpush1.msra.mxu0 0.0
    %1631 = vmatprep.subr.mxu0 0.0
    %1632 = vmatpush1.msra.mxu0 0.0
    %1633 = vmatprep.subr.mxu0 0.0
    %1634 = vmatpush1.msra.mxu0 0.0
    %1635 = vmatprep.subr.mxu0 0.0
    %1636 = vmatpush1.msra.mxu0 0.0
    %1637 = vmatprep.subr.mxu0 0.0
    %1638 = vmatpush1.msra.mxu0 0.0
    %1639 = vmatprep.subr.mxu0 0.0
    %1640 = vmatpush1.msra.mxu0 0.0
    %1641 = vmatprep.mubr.f32.mxu0 0.0
    %1642 = vmatmul.mubr.f32.gmra.mrb[0].mxu0 %v1575
    %v1643 = vpop.f32.mrb[0].mxu0
    %v1644 = vadd.f32 0.0, %v1643
    %v1645 = vpop.f32.mrb[0].mxu0
    %1646 = vdwg.mxu0
    %1647 = vrot.lane.b32.xlu0 %v395, 56
    %v1648 = vpop.permute.xlu0 %1647
    %v1651 = vsel %vm401, %v1418, 0
    %1653 = vmatprep.subr.mxu0 0.0
    %1654 = vmatpush1.msra.mxu0 %v1648
    %1655 = vmatprep.subr.mxu0 0.0
    %1656 = vmatpush1.msra.mxu0 0.0
    %1657 = vmatprep.subr.mxu0 0.0
    %1658 = vmatpush1.msra.mxu0 0.0
    %1659 = vmatprep.subr.mxu0 0.0
    %1660 = vmatpush1.msra.mxu0 0.0
    %1661 = vmatprep.subr.mxu0 0.0
    %1662 = vmatpush1.msra.mxu0 0.0
    %1663 = vmatprep.subr.mxu0 0.0
    %1664 = vmatpush1.msra.mxu0 0.0
    %1665 = vmatprep.subr.mxu0 0.0
    %1666 = vmatpush1.msra.mxu0 0.0
    %1667 = vmatprep.subr.mxu0 0.0
    %1668 = vmatpush1.msra.mxu0 0.0
    %1669 = vmatprep.subr.mxu0 0.0
    %1670 = vmatpush1.msra.mxu0 0.0
    %1671 = vmatprep.subr.mxu0 0.0
    %1672 = vmatpush1.msra.mxu0 0.0
    %1673 = vmatprep.subr.mxu0 0.0
    %1674 = vmatpush1.msra.mxu0 0.0
    %1675 = vmatprep.subr.mxu0 0.0
    %1676 = vmatpush1.msra.mxu0 0.0
    %1677 = vmatprep.subr.mxu0 0.0
    %1678 = vmatpush1.msra.mxu0 0.0
    %1679 = vmatprep.subr.mxu0 0.0
    %1680 = vmatpush1.msra.mxu0 0.0
    %1681 = vmatprep.subr.mxu0 0.0
    %1682 = vmatpush1.msra.mxu0 0.0
    %1683 = vmatprep.subr.mxu0 0.0
    %1684 = vmatpush1.msra.mxu0 0.0
    %1685 = vmatprep.subr.mxu0 0.0
    %1686 = vmatpush1.msra.mxu0 0.0
    %1687 = vmatprep.subr.mxu0 0.0
    %1688 = vmatpush1.msra.mxu0 0.0
    %1689 = vmatprep.subr.mxu0 0.0
    %1690 = vmatpush1.msra.mxu0 0.0
    %1691 = vmatprep.subr.mxu0 0.0
    %1692 = vmatpush1.msra.mxu0 0.0
    %1693 = vmatprep.subr.mxu0 0.0
    %1694 = vmatpush1.msra.mxu0 0.0
    %1695 = vmatprep.subr.mxu0 0.0
    %1696 = vmatpush1.msra.mxu0 0.0
    %1697 = vmatprep.subr.mxu0 0.0
    %1698 = vmatpush1.msra.mxu0 0.0
    %1699 = vmatprep.subr.mxu0 0.0
    %1700 = vmatpush1.msra.mxu0 0.0
    %1701 = vmatprep.subr.mxu0 0.0
    %1702 = vmatpush1.msra.mxu0 0.0
    %1703 = vmatprep.subr.mxu0 0.0
    %1704 = vmatpush1.msra.mxu0 0.0
    %1705 = vmatprep.subr.mxu0 0.0
    %1706 = vmatpush1.msra.mxu0 0.0
    %1707 = vmatprep.subr.mxu0 0.0
    %1708 = vmatpush1.msra.mxu0 0.0
    %1709 = vmatprep.subr.mxu0 0.0
    %1710 = vmatpush1.msra.mxu0 0.0
    %1711 = vmatprep.subr.mxu0 0.0
    %1712 = vmatpush1.msra.mxu0 0.0
    %1713 = vmatprep.subr.mxu0 0.0
    %1714 = vmatpush1.msra.mxu0 0.0
    %1715 = vmatprep.subr.mxu0 0.0
    %1716 = vmatpush1.msra.mxu0 0.0
    %1717 = vmatprep.mubr.f32.mxu0 0.0
    %1718 = vmatmul.mubr.f32.gmra.mrb[0].mxu0 %v1651
    %v1719 = vpop.f32.mrb[0].mxu0
    %v1720 = vadd.f32 0.0, %v1719
    %v1721 = vpop.f32.mrb[0].mxu0
    %1722 = vdwg.mxu0
    %1723 = vrot.lane.b32.xlu0 %v380, 112
    %v1724 = vpop.permute.xlu0 %1723
    %1725 = vrot.lane.b32.xlu0 %v380, 80
    %v1726 = vpop.permute.xlu0 %1725
    %v1727 = vsel %vm401, %v1724, 0
    %v1729 = vsel %vm401, %v1726, 0
    %1731 = vmatprep.subr.mxu0 0.0
    %1732 = vmatpush1.xpose.msra.mxu0 %v1729
    %1733 = vmatprep.subr.mxu0 0.0
    %1734 = vmatpush1.xpose.msra.mxu0 0.0
    %1735 = vmatprep.subr.mxu0 0.0
    %1736 = vmatpush1.xpose.msra.mxu0 0.0
    %1737 = vmatprep.subr.mxu0 0.0
    %1738 = vmatpush1.xpose.msra.mxu0 0.0
    %1739 = vmatprep.subr.mxu0 0.0
    %1740 = vmatpush1.xpose.msra.mxu0 0.0
    %1741 = vmatprep.subr.mxu0 0.0
    %1742 = vmatpush1.xpose.msra.mxu0 0.0
    %1743 = vmatprep.subr.mxu0 0.0
    %1744 = vmatpush1.xpose.msra.mxu0 0.0
    %1745 = vmatprep.subr.mxu0 0.0
    %1746 = vmatpush1.xpose.msra.mxu0 0.0
    %1747 = vmatprep.subr.mxu0 0.0
    %1748 = vmatpush1.xpose.msra.mxu0 0.0
    %1749 = vmatprep.subr.mxu0 0.0
    %1750 = vmatpush1.xpose.msra.mxu0 0.0
    %1751 = vmatprep.subr.mxu0 0.0
    %1752 = vmatpush1.xpose.msra.mxu0 0.0
    %1753 = vmatprep.subr.mxu0 0.0
    %1754 = vmatpush1.xpose.msra.mxu0 0.0
    %1755 = vmatprep.subr.mxu0 0.0
    %1756 = vmatpush1.xpose.msra.mxu0 0.0
    %1757 = vmatprep.subr.mxu0 0.0
    %1758 = vmatpush1.xpose.msra.mxu0 0.0
    %1759 = vmatprep.subr.mxu0 0.0
    %1760 = vmatpush1.xpose.msra.mxu0 0.0
    %1761 = vmatprep.subr.mxu0 0.0
    %1762 = vmatpush1.xpose.msra.mxu0 0.0
    %1763 = vmatprep.subr.mxu0 0.0
    %1764 = vmatpush1.xpose.msra.mxu0 0.0
    %1765 = vmatprep.subr.mxu0 0.0
    %1766 = vmatpush1.xpose.msra.mxu0 0.0
    %1767 = vmatprep.subr.mxu0 0.0
    %1768 = vmatpush1.xpose.msra.mxu0 0.0
    %1769 = vmatprep.subr.mxu0 0.0
    %1770 = vmatpush1.xpose.msra.mxu0 0.0
    %1771 = vmatprep.subr.mxu0 0.0
    %1772 = vmatpush1.xpose.msra.mxu0 0.0
    %1773 = vmatprep.subr.mxu0 0.0
    %1774 = vmatpush1.xpose.msra.mxu0 0.0
    %1775 = vmatprep.subr.mxu0 0.0
    %1776 = vmatpush1.xpose.msra.mxu0 0.0
    %1777 = vmatprep.subr.mxu0 0.0
    %1778 = vmatpush1.xpose.msra.mxu0 0.0
    %1779 = vmatprep.subr.mxu0 0.0
    %1780 = vmatpush1.xpose.msra.mxu0 0.0
    %1781 = vmatprep.subr.mxu0 0.0
    %1782 = vmatpush1.xpose.msra.mxu0 0.0
    %1783 = vmatprep.subr.mxu0 0.0
    %1784 = vmatpush1.xpose.msra.mxu0 0.0
    %1785 = vmatprep.subr.mxu0 0.0
    %1786 = vmatpush1.xpose.msra.mxu0 0.0
    %1787 = vmatprep.subr.mxu0 0.0
    %1788 = vmatpush1.xpose.msra.mxu0 0.0
    %1789 = vmatprep.subr.mxu0 0.0
    %1790 = vmatpush1.xpose.msra.mxu0 0.0
    %1791 = vmatprep.subr.mxu0 0.0
    %1792 = vmatpush1.xpose.msra.mxu0 0.0
    %1793 = vmatprep.subr.mxu0 0.0
    %1794 = vmatpush1.xpose.msra.mxu0 0.0
    %1795 = vmatprep.mubr.f32.mxu0 0.0
    %1796 = vmatmul.mubr.f32.gmra.mrb[0].mxu0 %v1727
    %v1797 = vpop.f32.mrb[0].mxu0
    %v1798 = vadd.f32 0.0, %v1797
    %v1799 = vpop.f32.mrb[0].mxu0
    %1800 = vdwg.mxu0
    %1801 = vrot.lane.b32.xlu0 %v385, 112
    %v1802 = vpop.permute.xlu0 %1801
    %1803 = vrot.lane.b32.xlu0 %v385, 80
    %v1804 = vpop.permute.xlu0 %1803
    %v1805 = vsel %vm401, %v1802, 0
    %v1807 = vsel %vm401, %v1804, 0
    %1809 = vmatprep.subr.mxu0 0.0
    %1810 = vmatpush1.xpose.msra.mxu0 %v1807
    %1811 = vmatprep.subr.mxu0 0.0
    %1812 = vmatpush1.xpose.msra.mxu0 0.0
    %1813 = vmatprep.subr.mxu0 0.0
    %1814 = vmatpush1.xpose.msra.mxu0 0.0
    %1815 = vmatprep.subr.mxu0 0.0
    %1816 = vmatpush1.xpose.msra.mxu0 0.0
    %1817 = vmatprep.subr.mxu0 0.0
    %1818 = vmatpush1.xpose.msra.mxu0 0.0
    %1819 = vmatprep.subr.mxu0 0.0
    %1820 = vmatpush1.xpose.msra.mxu0 0.0
    %1821 = vmatprep.subr.mxu0 0.0
    %1822 = vmatpush1.xpose.msra.mxu0 0.0
    %1823 = vmatprep.subr.mxu0 0.0
    %1824 = vmatpush1.xpose.msra.mxu0 0.0
    %1825 = vmatprep.subr.mxu0 0.0
    %1826 = vmatpush1.xpose.msra.mxu0 0.0
    %1827 = vmatprep.subr.mxu0 0.0
    %1828 = vmatpush1.xpose.msra.mxu0 0.0
    %1829 = vmatprep.subr.mxu0 0.0
    %1830 = vmatpush1.xpose.msra.mxu0 0.0
    %1831 = vmatprep.subr.mxu0 0.0
    %1832 = vmatpush1.xpose.msra.mxu0 0.0
    %1833 = vmatprep.subr.mxu0 0.0
    %1834 = vmatpush1.xpose.msra.mxu0 0.0
    %1835 = vmatprep.subr.mxu0 0.0
    %1836 = vmatpush1.xpose.msra.mxu0 0.0
    %1837 = vmatprep.subr.mxu0 0.0
    %1838 = vmatpush1.xpose.msra.mxu0 0.0
    %1839 = vmatprep.subr.mxu0 0.0
    %1840 = vmatpush1.xpose.msra.mxu0 0.0
    %1841 = vmatprep.subr.mxu0 0.0
    %1842 = vmatpush1.xpose.msra.mxu0 0.0
    %1843 = vmatprep.subr.mxu0 0.0
    %1844 = vmatpush1.xpose.msra.mxu0 0.0
    %1845 = vmatprep.subr.mxu0 0.0
    %1846 = vmatpush1.xpose.msra.mxu0 0.0
    %1847 = vmatprep.subr.mxu0 0.0
    %1848 = vmatpush1.xpose.msra.mxu0 0.0
    %1849 = vmatprep.subr.mxu0 0.0
    %1850 = vmatpush1.xpose.msra.mxu0 0.0
    %1851 = vmatprep.subr.mxu0 0.0
    %1852 = vmatpush1.xpose.msra.mxu0 0.0
    %1853 = vmatprep.subr.mxu0 0.0
    %1854 = vmatpush1.xpose.msra.mxu0 0.0
    %1855 = vmatprep.subr.mxu0 0.0
    %1856 = vmatpush1.xpose.msra.mxu0 0.0
    %1857 = vmatprep.subr.mxu0 0.0
    %1858 = vmatpush1.xpose.msra.mxu0 0.0
    %1859 = vmatprep.subr.mxu0 0.0
    %1860 = vmatpush1.xpose.msra.mxu0 0.0
    %1861 = vmatprep.subr.mxu0 0.0
    %1862 = vmatpush1.xpose.msra.mxu0 0.0
    %1863 = vmatprep.subr.mxu0 0.0
    %1864 = vmatpush1.xpose.msra.mxu0 0.0
    %1865 = vmatprep.subr.mxu0 0.0
    %1866 = vmatpush1.xpose.msra.mxu0 0.0
    %1867 = vmatprep.subr.mxu0 0.0
    %1868 = vmatpush1.xpose.msra.mxu0 0.0
    %1869 = vmatprep.subr.mxu0 0.0
    %1870 = vmatpush1.xpose.msra.mxu0 0.0
    %1871 = vmatprep.subr.mxu0 0.0
    %1872 = vmatpush1.xpose.msra.mxu0 0.0
    %1873 = vmatprep.mubr.f32.mxu0 0.0
    %1874 = vmatmul.mubr.f32.gmra.mrb[0].mxu0 %v1805
    %v1875 = vpop.f32.mrb[0].mxu0
    %v1876 = vadd.f32 0.0, %v1875
    %v1877 = vpop.f32.mrb[0].mxu0
    %1878 = vdwg.mxu0
    %1879 = vrot.lane.b32.xlu0 %v390, 112
    %v1880 = vpop.permute.xlu0 %1879
    %1881 = vrot.lane.b32.xlu0 %v390, 80
    %v1882 = vpop.permute.xlu0 %1881
    %v1883 = vsel %vm401, %v1880, 0
    %v1885 = vsel %vm401, %v1882, 0
    %1887 = vmatprep.subr.mxu0 0.0
    %1888 = vmatpush1.xpose.msra.mxu0 %v1885
    %1889 = vmatprep.subr.mxu0 0.0
    %1890 = vmatpush1.xpose.msra.mxu0 0.0
    %1891 = vmatprep.subr.mxu0 0.0
    %1892 = vmatpush1.xpose.msra.mxu0 0.0
    %1893 = vmatprep.subr.mxu0 0.0
    %1894 = vmatpush1.xpose.msra.mxu0 0.0
    %1895 = vmatprep.subr.mxu0 0.0
    %1896 = vmatpush1.xpose.msra.mxu0 0.0
    %1897 = vmatprep.subr.mxu0 0.0
    %1898 = vmatpush1.xpose.msra.mxu0 0.0
    %1899 = vmatprep.subr.mxu0 0.0
    %1900 = vmatpush1.xpose.msra.mxu0 0.0
    %1901 = vmatprep.subr.mxu0 0.0
    %1902 = vmatpush1.xpose.msra.mxu0 0.0
    %1903 = vmatprep.subr.mxu0 0.0
    %1904 = vmatpush1.xpose.msra.mxu0 0.0
    %1905 = vmatprep.subr.mxu0 0.0
    %1906 = vmatpush1.xpose.msra.mxu0 0.0
    %1907 = vmatprep.subr.mxu0 0.0
    %1908 = vmatpush1.xpose.msra.mxu0 0.0
    %1909 = vmatprep.subr.mxu0 0.0
    %1910 = vmatpush1.xpose.msra.mxu0 0.0
    %1911 = vmatprep.subr.mxu0 0.0
    %1912 = vmatpush1.xpose.msra.mxu0 0.0
    %1913 = vmatprep.subr.mxu0 0.0
    %1914 = vmatpush1.xpose.msra.mxu0 0.0
    %1915 = vmatprep.subr.mxu0 0.0
    %1916 = vmatpush1.xpose.msra.mxu0 0.0
    %1917 = vmatprep.subr.mxu0 0.0
    %1918 = vmatpush1.xpose.msra.mxu0 0.0
    %1919 = vmatprep.subr.mxu0 0.0
    %1920 = vmatpush1.xpose.msra.mxu0 0.0
    %1921 = vmatprep.subr.mxu0 0.0
    %1922 = vmatpush1.xpose.msra.mxu0 0.0
    %1923 = vmatprep.subr.mxu0 0.0
    %1924 = vmatpush1.xpose.msra.mxu0 0.0
    %1925 = vmatprep.subr.mxu0 0.0
    %1926 = vmatpush1.xpose.msra.mxu0 0.0
    %1927 = vmatprep.subr.mxu0 0.0
    %1928 = vmatpush1.xpose.msra.mxu0 0.0
    %1929 = vmatprep.subr.mxu0 0.0
    %1930 = vmatpush1.xpose.msra.mxu0 0.0
    %1931 = vmatprep.subr.mxu0 0.0
    %1932 = vmatpush1.xpose.msra.mxu0 0.0
    %1933 = vmatprep.subr.mxu0 0.0
    %1934 = vmatpush1.xpose.msra.mxu0 0.0
    %1935 = vmatprep.subr.mxu0 0.0
    %1936 = vmatpush1.xpose.msra.mxu0 0.0
    %1937 = vmatprep.subr.mxu0 0.0
    %1938 = vmatpush1.xpose.msra.mxu0 0.0
    %1939 = vmatprep.subr.mxu0 0.0
    %1940 = vmatpush1.xpose.msra.mxu0 0.0
    %1941 = vmatprep.subr.mxu0 0.0
    %1942 = vmatpush1.xpose.msra.mxu0 0.0
    %1943 = vmatprep.subr.mxu0 0.0
    %1944 = vmatpush1.xpose.msra.mxu0 0.0
    %1945 = vmatprep.subr.mxu0 0.0
    %1946 = vmatpush1.xpose.msra.mxu0 0.0
    %1947 = vmatprep.subr.mxu0 0.0
    %1948 = vmatpush1.xpose.msra.mxu0 0.0
    %1949 = vmatprep.subr.mxu0 0.0
    %1950 = vmatpush1.xpose.msra.mxu0 0.0
    %1951 = vmatprep.mubr.f32.mxu0 0.0
    %1952 = vmatmul.mubr.f32.gmra.mrb[0].mxu0 %v1883
    %v1953 = vpop.f32.mrb[0].mxu0
    %v1954 = vadd.f32 0.0, %v1953
    %v1955 = vpop.f32.mrb[0].mxu0
    %1956 = vdwg.mxu0
    %1957 = vrot.lane.b32.xlu0 %v395, 112
    %v1958 = vpop.permute.xlu0 %1957
    %1959 = vrot.lane.b32.xlu0 %v395, 80
    %v1960 = vpop.permute.xlu0 %1959
    %v1961 = vsel %vm401, %v1958, 0
    %v1963 = vsel %vm401, %v1960, 0
    %1965 = vmatprep.subr.mxu0 0.0
    %1966 = vmatpush1.xpose.msra.mxu0 %v1963
    %1967 = vmatprep.subr.mxu0 0.0
    %1968 = vmatpush1.xpose.msra.mxu0 0.0
    %1969 = vmatprep.subr.mxu0 0.0
    %1970 = vmatpush1.xpose.msra.mxu0 0.0
    %1971 = vmatprep.subr.mxu0 0.0
    %1972 = vmatpush1.xpose.msra.mxu0 0.0
    %1973 = vmatprep.subr.mxu0 0.0
    %1974 = vmatpush1.xpose.msra.mxu0 0.0
    %1975 = vmatprep.subr.mxu0 0.0
    %1976 = vmatpush1.xpose.msra.mxu0 0.0
    %1977 = vmatprep.subr.mxu0 0.0
    %1978 = vmatpush1.xpose.msra.mxu0 0.0
    %1979 = vmatprep.subr.mxu0 0.0
    %1980 = vmatpush1.xpose.msra.mxu0 0.0
    %1981 = vmatprep.subr.mxu0 0.0
    %1982 = vmatpush1.xpose.msra.mxu0 0.0
    %1983 = vmatprep.subr.mxu0 0.0
    %1984 = vmatpush1.xpose.msra.mxu0 0.0
    %1985 = vmatprep.subr.mxu0 0.0
    %1986 = vmatpush1.xpose.msra.mxu0 0.0
    %1987 = vmatprep.subr.mxu0 0.0
    %1988 = vmatpush1.xpose.msra.mxu0 0.0
    %1989 = vmatprep.subr.mxu0 0.0
    %1990 = vmatpush1.xpose.msra.mxu0 0.0
    %1991 = vmatprep.subr.mxu0 0.0
    %1992 = vmatpush1.xpose.msra.mxu0 0.0
    %1993 = vmatprep.subr.mxu0 0.0
    %1994 = vmatpush1.xpose.msra.mxu0 0.0
    %1995 = vmatprep.subr.mxu0 0.0
    %1996 = vmatpush1.xpose.msra.mxu0 0.0
    %1997 = vmatprep.subr.mxu0 0.0
    %1998 = vmatpush1.xpose.msra.mxu0 0.0
    %1999 = vmatprep.subr.mxu0 0.0
    %2000 = vmatpush1.xpose.msra.mxu0 0.0
    %2001 = vmatprep.subr.mxu0 0.0
    %2002 = vmatpush1.xpose.msra.mxu0 0.0
    %2003 = vmatprep.subr.mxu0 0.0
    %2004 = vmatpush1.xpose.msra.mxu0 0.0
    %2005 = vmatprep.subr.mxu0 0.0
    %2006 = vmatpush1.xpose.msra.mxu0 0.0
    %2007 = vmatprep.subr.mxu0 0.0
    %2008 = vmatpush1.xpose.msra.mxu0 0.0
    %2009 = vmatprep.subr.mxu0 0.0
    %2010 = vmatpush1.xpose.msra.mxu0 0.0
    %2011 = vmatprep.subr.mxu0 0.0
    %2012 = vmatpush1.xpose.msra.mxu0 0.0
    %2013 = vmatprep.subr.mxu0 0.0
    %2014 = vmatpush1.xpose.msra.mxu0 0.0
    %2015 = vmatprep.subr.mxu0 0.0
    %2016 = vmatpush1.xpose.msra.mxu0 0.0
    %2017 = vmatprep.subr.mxu0 0.0
    %2018 = vmatpush1.xpose.msra.mxu0 0.0
    %2019 = vmatprep.subr.mxu0 0.0
    %2020 = vmatpush1.xpose.msra.mxu0 0.0
    %2021 = vmatprep.subr.mxu0 0.0
    %2022 = vmatpush1.xpose.msra.mxu0 0.0
    %2023 = vmatprep.subr.mxu0 0.0
    %2024 = vmatpush1.xpose.msra.mxu0 0.0
    %2025 = vmatprep.subr.mxu0 0.0
    %2026 = vmatpush1.xpose.msra.mxu0 0.0
    %2027 = vmatprep.subr.mxu0 0.0
    %2028 = vmatpush1.xpose.msra.mxu0 0.0
    %2029 = vmatprep.mubr.f32.mxu0 0.0
    %2030 = vmatmul.mubr.f32.gmra.mrb[0].mxu0 %v1961
    %v2031 = vpop.f32.mrb[0].mxu0
    %v2032 = vadd.f32 0.0, %v2031
    %v2033 = vpop.f32.mrb[0].mxu0
    %2034 = vdwg.mxu0
    %v2035 = vmul.f32 %v1798, 0.35355338
    %v2036 = vmul.f32 %v1876, 0.35355338
    %v2037 = vmul.f32 %v1954, 0.35355338
    %v2038 = vmul.f32 %v2032, 0.35355338
    %v2039 = vsel %vm401, %v2035, -inf
    %2040 = vmax.xlane.f32.xlu0 %v2039
    %v2041 = vpop.xlane.xlu0 %2040
    %v2042 = vsel %vm401, %v2036, -inf
    %2043 = vmax.xlane.f32.xlu0 %v2042
    %v2044 = vpop.xlane.xlu0 %2043
    %v2045 = vsel %vm401, %v2037, -inf
    %2046 = vmax.xlane.f32.xlu0 %v2045
    %v2047 = vpop.xlane.xlu0 %2046
    %v2048 = vsel %vm401, %v2038, -inf
    %2049 = vmax.xlane.f32.xlu0 %v2048
    %v2050 = vpop.xlane.xlu0 %2049
    %v2051 = vsub.f32 %v2035, %v2041
    %v2052 = vsub.f32 %v2036, %v2044
    %v2053 = vsub.f32 %v2037, %v2047
    %v2054 = vsub.f32 %v2038, %v2050
    %v2055 = vmul.f32 %v2051, 1.442695
    %v2056 = vpow.pop %v2055
    %v2057 = vmul.f32 %v2052, 1.442695
    %v2058 = vpow.pop %v2057
    %v2059 = vmul.f32 %v2053, 1.442695
    %v2060 = vpow.pop %v2059
    %v2061 = vmul.f32 %v2054, 1.442695
    %v2062 = vpow.pop %v2061
    %v2063 = vsel %vm401, %v2056, 0.0
    %2064 = vadd.xlane.f32.xlu0 %v2063
    %v2065 = vpop.xlane.xlu0 %2064
    %v2066 = vsel %vm401, %v2058, 0.0
    %2067 = vadd.xlane.f32.xlu0 %v2066
    %v2068 = vpop.xlane.xlu0 %2067
    %v2069 = vsel %vm401, %v2060, 0.0
    %2070 = vadd.xlane.f32.xlu0 %v2069
    %v2071 = vpop.xlane.xlu0 %2070
    %v2072 = vsel %vm401, %v2062, 0.0
    %2073 = vadd.xlane.f32.xlu0 %v2072
    %v2074 = vpop.xlane.xlu0 %2073
    %v2075 = vrcp.pop %v2065
    %v2076 = vmul.f32 %v2056, %v2075
    %v2077 = vrcp.pop %v2068
    %v2078 = vmul.f32 %v2058, %v2077
    %v2079 = vrcp.pop %v2071
    %v2080 = vmul.f32 %v2060, %v2079
    %v2081 = vrcp.pop %v2074
    %v2082 = vmul.f32 %v2062, %v2081
    %2083 = vrot.lane.b32.xlu0 %v380, 48
    %v2084 = vpop.permute.xlu0 %2083
    %v2087 = vsel %vm401, %v2076, 0
    %2089 = vmatprep.subr.mxu0 0.0
    %2090 = vmatpush1.msra.mxu0 %v2084
    %2091 = vmatprep.subr.mxu0 0.0
    %2092 = vmatpush1.msra.mxu0 0.0
    %2093 = vmatprep.subr.mxu0 0.0
    %2094 = vmatpush1.msra.mxu0 0.0
    %2095 = vmatprep.subr.mxu0 0.0
    %2096 = vmatpush1.msra.mxu0 0.0
    %2097 = vmatprep.subr.mxu0 0.0
    %2098 = vmatpush1.msra.mxu0 0.0
    %2099 = vmatprep.subr.mxu0 0.0
    %2100 = vmatpush1.msra.mxu0 0.0
    %2101 = vmatprep.subr.mxu0 0.0
    %2102 = vmatpush1.msra.mxu0 0.0
    %2103 = vmatprep.subr.mxu0 0.0
    %2104 = vmatpush1.msra.mxu0 0.0
    %2105 = vmatprep.subr.mxu0 0.0
    %2106 = vmatpush1.msra.mxu0 0.0
    %2107 = vmatprep.subr.mxu0 0.0
    %2108 = vmatpush1.msra.mxu0 0.0
    %2109 = vmatprep.subr.mxu0 0.0
    %2110 = vmatpush1.msra.mxu0 0.0
    %2111 = vmatprep.subr.mxu0 0.0
    %2112 = vmatpush1.msra.mxu0 0.0
    %2113 = vmatprep.subr.mxu0 0.0
    %2114 = vmatpush1.msra.mxu0 0.0
    %2115 = vmatprep.subr.mxu0 0.0
    %2116 = vmatpush1.msra.mxu0 0.0
    %2117 = vmatprep.subr.mxu0 0.0
    %2118 = vmatpush1.msra.mxu0 0.0
    %2119 = vmatprep.subr.mxu0 0.0
    %2120 = vmatpush1.msra.mxu0 0.0
    %2121 = vmatprep.subr.mxu0 0.0
    %2122 = vmatpush1.msra.mxu0 0.0
    %2123 = vmatprep.subr.mxu0 0.0
    %2124 = vmatpush1.msra.mxu0 0.0
    %2125 = vmatprep.subr.mxu0 0.0
    %2126 = vmatpush1.msra.mxu0 0.0
    %2127 = vmatprep.subr.mxu0 0.0
    %2128 = vmatpush1.msra.mxu0 0.0
    %2129 = vmatprep.subr.mxu0 0.0
    %2130 = vmatpush1.msra.mxu0 0.0
    %2131 = vmatprep.subr.mxu0 0.0
    %2132 = vmatpush1.msra.mxu0 0.0
    %2133 = vmatprep.subr.mxu0 0.0
    %2134 = vmatpush1.msra.mxu0 0.0
    %2135 = vmatprep.subr.mxu0 0.0
    %2136 = vmatpush1.msra.mxu0 0.0
    %2137 = vmatprep.subr.mxu0 0.0
    %2138 = vmatpush1.msra.mxu0 0.0
    %2139 = vmatprep.subr.mxu0 0.0
    %2140 = vmatpush1.msra.mxu0 0.0
    %2141 = vmatprep.subr.mxu0 0.0
    %2142 = vmatpush1.msra.mxu0 0.0
    %2143 = vmatprep.subr.mxu0 0.0
    %2144 = vmatpush1.msra.mxu0 0.0
    %2145 = vmatprep.subr.mxu0 0.0
    %2146 = vmatpush1.msra.mxu0 0.0
    %2147 = vmatprep.subr.mxu0 0.0
    %2148 = vmatpush1.msra.mxu0 0.0
    %2149 = vmatprep.subr.mxu0 0.0
    %2150 = vmatpush1.msra.mxu0 0.0
    %2151 = vmatprep.subr.mxu0 0.0
    %2152 = vmatpush1.msra.mxu0 0.0
    %2153 = vmatprep.mubr.f32.mxu0 0.0
    %2154 = vmatmul.mubr.f32.gmra.mrb[0].mxu0 %v2087
    %v2155 = vpop.f32.mrb[0].mxu0
    %v2156 = vadd.f32 0.0, %v2155
    %v2157 = vpop.f32.mrb[0].mxu0
    %2158 = vdwg.mxu0
    %2159 = vrot.lane.b32.xlu0 %v385, 48
    %v2160 = vpop.permute.xlu0 %2159
    %v2163 = vsel %vm401, %v2078, 0
    %2165 = vmatprep.subr.mxu0 0.0
    %2166 = vmatpush1.msra.mxu0 %v2160
    %2167 = vmatprep.subr.mxu0 0.0
    %2168 = vmatpush1.msra.mxu0 0.0
    %2169 = vmatprep.subr.mxu0 0.0
    %2170 = vmatpush1.msra.mxu0 0.0
    %2171 = vmatprep.subr.mxu0 0.0
    %2172 = vmatpush1.msra.mxu0 0.0
    %2173 = vmatprep.subr.mxu0 0.0
    %2174 = vmatpush1.msra.mxu0 0.0
    %2175 = vmatprep.subr.mxu0 0.0
    %2176 = vmatpush1.msra.mxu0 0.0
    %2177 = vmatprep.subr.mxu0 0.0
    %2178 = vmatpush1.msra.mxu0 0.0
    %2179 = vmatprep.subr.mxu0 0.0
    %2180 = vmatpush1.msra.mxu0 0.0
    %2181 = vmatprep.subr.mxu0 0.0
    %2182 = vmatpush1.msra.mxu0 0.0
    %2183 = vmatprep.subr.mxu0 0.0
    %2184 = vmatpush1.msra.mxu0 0.0
    %2185 = vmatprep.subr.mxu0 0.0
    %2186 = vmatpush1.msra.mxu0 0.0
    %2187 = vmatprep.subr.mxu0 0.0
    %2188 = vmatpush1.msra.mxu0 0.0
    %2189 = vmatprep.subr.mxu0 0.0
    %2190 = vmatpush1.msra.mxu0 0.0
    %2191 = vmatprep.subr.mxu0 0.0
    %2192 = vmatpush1.msra.mxu0 0.0
    %2193 = vmatprep.subr.mxu0 0.0
    %2194 = vmatpush1.msra.mxu0 0.0
    %2195 = vmatprep.subr.mxu0 0.0
    %2196 = vmatpush1.msra.mxu0 0.0
    %2197 = vmatprep.subr.mxu0 0.0
    %2198 = vmatpush1.msra.mxu0 0.0
    %2199 = vmatprep.subr.mxu0 0.0
    %2200 = vmatpush1.msra.mxu0 0.0
    %2201 = vmatprep.subr.mxu0 0.0
    %2202 = vmatpush1.msra.mxu0 0.0
    %2203 = vmatprep.subr.mxu0 0.0
    %2204 = vmatpush1.msra.mxu0 0.0
    %2205 = vmatprep.subr.mxu0 0.0
    %2206 = vmatpush1.msra.mxu0 0.0
    %2207 = vmatprep.subr.mxu0 0.0
    %2208 = vmatpush1.msra.mxu0 0.0
    %2209 = vmatprep.subr.mxu0 0.0
    %2210 = vmatpush1.msra.mxu0 0.0
    %2211 = vmatprep.subr.mxu0 0.0
    %2212 = vmatpush1.msra.mxu0 0.0
    %2213 = vmatprep.subr.mxu0 0.0
    %2214 = vmatpush1.msra.mxu0 0.0
    %2215 = vmatprep.subr.mxu0 0.0
    %2216 = vmatpush1.msra.mxu0 0.0
    %2217 = vmatprep.subr.mxu0 0.0
    %2218 = vmatpush1.msra.mxu0 0.0
    %2219 = vmatprep.subr.mxu0 0.0
    %2220 = vmatpush1.msra.mxu0 0.0
    %2221 = vmatprep.subr.mxu0 0.0
    %2222 = vmatpush1.msra.mxu0 0.0
    %2223 = vmatprep.subr.mxu0 0.0
    %2224 = vmatpush1.msra.mxu0 0.0
    %2225 = vmatprep.subr.mxu0 0.0
    %2226 = vmatpush1.msra.mxu0 0.0
    %2227 = vmatprep.subr.mxu0 0.0
    %2228 = vmatpush1.msra.mxu0 0.0
    %2229 = vmatprep.mubr.f32.mxu0 0.0
    %2230 = vmatmul.mubr.f32.gmra.mrb[0].mxu0 %v2163
    %v2231 = vpop.f32.mrb[0].mxu0
    %v2232 = vadd.f32 0.0, %v2231
    %v2233 = vpop.f32.mrb[0].mxu0
    %2234 = vdwg.mxu0
    %2235 = vrot.lane.b32.xlu0 %v390, 48
    %v2236 = vpop.permute.xlu0 %2235
    %v2239 = vsel %vm401, %v2080, 0
    %2241 = vmatprep.subr.mxu0 0.0
    %2242 = vmatpush1.msra.mxu0 %v2236
    %2243 = vmatprep.subr.mxu0 0.0
    %2244 = vmatpush1.msra.mxu0 0.0
    %2245 = vmatprep.subr.mxu0 0.0
    %2246 = vmatpush1.msra.mxu0 0.0
    %2247 = vmatprep.subr.mxu0 0.0
    %2248 = vmatpush1.msra.mxu0 0.0
    %2249 = vmatprep.subr.mxu0 0.0
    %2250 = vmatpush1.msra.mxu0 0.0
    %2251 = vmatprep.subr.mxu0 0.0
    %2252 = vmatpush1.msra.mxu0 0.0
    %2253 = vmatprep.subr.mxu0 0.0
    %2254 = vmatpush1.msra.mxu0 0.0
    %2255 = vmatprep.subr.mxu0 0.0
    %2256 = vmatpush1.msra.mxu0 0.0
    %2257 = vmatprep.subr.mxu0 0.0
    %2258 = vmatpush1.msra.mxu0 0.0
    %2259 = vmatprep.subr.mxu0 0.0
    %2260 = vmatpush1.msra.mxu0 0.0
    %2261 = vmatprep.subr.mxu0 0.0
    %2262 = vmatpush1.msra.mxu0 0.0
    %2263 = vmatprep.subr.mxu0 0.0
    %2264 = vmatpush1.msra.mxu0 0.0
    %2265 = vmatprep.subr.mxu0 0.0
    %2266 = vmatpush1.msra.mxu0 0.0
    %2267 = vmatprep.subr.mxu0 0.0
    %2268 = vmatpush1.msra.mxu0 0.0
    %2269 = vmatprep.subr.mxu0 0.0
    %2270 = vmatpush1.msra.mxu0 0.0
    %2271 = vmatprep.subr.mxu0 0.0
    %2272 = vmatpush1.msra.mxu0 0.0
    %2273 = vmatprep.subr.mxu0 0.0
    %2274 = vmatpush1.msra.mxu0 0.0
    %2275 = vmatprep.subr.mxu0 0.0
    %2276 = vmatpush1.msra.mxu0 0.0
    %2277 = vmatprep.subr.mxu0 0.0
    %2278 = vmatpush1.msra.mxu0 0.0
    %2279 = vmatprep.subr.mxu0 0.0
    %2280 = vmatpush1.msra.mxu0 0.0
    %2281 = vmatprep.subr.mxu0 0.0
    %2282 = vmatpush1.msra.mxu0 0.0
    %2283 = vmatprep.subr.mxu0 0.0
    %2284 = vmatpush1.msra.mxu0 0.0
    %2285 = vmatprep.subr.mxu0 0.0
    %2286 = vmatpush1.msra.mxu0 0.0
    %2287 = vmatprep.subr.mxu0 0.0
    %2288 = vmatpush1.msra.mxu0 0.0
    %2289 = vmatprep.subr.mxu0 0.0
    %2290 = vmatpush1.msra.mxu0 0.0
    %2291 = vmatprep.subr.mxu0 0.0
    %2292 = vmatpush1.msra.mxu0 0.0
    %2293 = vmatprep.subr.mxu0 0.0
    %2294 = vmatpush1.msra.mxu0 0.0
    %2295 = vmatprep.subr.mxu0 0.0
    %2296 = vmatpush1.msra.mxu0 0.0
    %2297 = vmatprep.subr.mxu0 0.0
    %2298 = vmatpush1.msra.mxu0 0.0
    %2299 = vmatprep.subr.mxu0 0.0
    %2300 = vmatpush1.msra.mxu0 0.0
    %2301 = vmatprep.subr.mxu0 0.0
    %2302 = vmatpush1.msra.mxu0 0.0
    %2303 = vmatprep.subr.mxu0 0.0
    %2304 = vmatpush1.msra.mxu0 0.0
    %2305 = vmatprep.mubr.f32.mxu0 0.0
    %2306 = vmatmul.mubr.f32.gmra.mrb[0].mxu0 %v2239
    %v2307 = vpop.f32.mrb[0].mxu0
    %v2308 = vadd.f32 0.0, %v2307
    %v2309 = vpop.f32.mrb[0].mxu0
    %2310 = vdwg.mxu0
    %2311 = vrot.lane.b32.xlu0 %v395, 48
    %v2312 = vpop.permute.xlu0 %2311
    %v2315 = vsel %vm401, %v2082, 0
    %2317 = vmatprep.subr.mxu0 0.0
    %2318 = vmatpush1.msra.mxu0 %v2312
    %2319 = vmatprep.subr.mxu0 0.0
    %2320 = vmatpush1.msra.mxu0 0.0
    %2321 = vmatprep.subr.mxu0 0.0
    %2322 = vmatpush1.msra.mxu0 0.0
    %2323 = vmatprep.subr.mxu0 0.0
    %2324 = vmatpush1.msra.mxu0 0.0
    %2325 = vmatprep.subr.mxu0 0.0
    %2326 = vmatpush1.msra.mxu0 0.0
    %2327 = vmatprep.subr.mxu0 0.0
    %2328 = vmatpush1.msra.mxu0 0.0
    %2329 = vmatprep.subr.mxu0 0.0
    %2330 = vmatpush1.msra.mxu0 0.0
    %2331 = vmatprep.subr.mxu0 0.0
    %2332 = vmatpush1.msra.mxu0 0.0
    %2333 = vmatprep.subr.mxu0 0.0
    %2334 = vmatpush1.msra.mxu0 0.0
    %2335 = vmatprep.subr.mxu0 0.0
    %2336 = vmatpush1.msra.mxu0 0.0
    %2337 = vmatprep.subr.mxu0 0.0
    %2338 = vmatpush1.msra.mxu0 0.0
    %2339 = vmatprep.subr.mxu0 0.0
    %2340 = vmatpush1.msra.mxu0 0.0
    %2341 = vmatprep.subr.mxu0 0.0
    %2342 = vmatpush1.msra.mxu0 0.0
    %2343 = vmatprep.subr.mxu0 0.0
    %2344 = vmatpush1.msra.mxu0 0.0
    %2345 = vmatprep.subr.mxu0 0.0
    %2346 = vmatpush1.msra.mxu0 0.0
    %2347 = vmatprep.subr.mxu0 0.0
    %2348 = vmatpush1.msra.mxu0 0.0
    %2349 = vmatprep.subr.mxu0 0.0
    %2350 = vmatpush1.msra.mxu0 0.0
    %2351 = vmatprep.subr.mxu0 0.0
    %2352 = vmatpush1.msra.mxu0 0.0
    %2353 = vmatprep.subr.mxu0 0.0
    %2354 = vmatpush1.msra.mxu0 0.0
    %2355 = vmatprep.subr.mxu0 0.0
    %2356 = vmatpush1.msra.mxu0 0.0
    %2357 = vmatprep.subr.mxu0 0.0
    %2358 = vmatpush1.msra.mxu0 0.0
    %2359 = vmatprep.subr.mxu0 0.0
    %2360 = vmatpush1.msra.mxu0 0.0
    %2361 = vmatprep.subr.mxu0 0.0
    %2362 = vmatpush1.msra.mxu0 0.0
    %2363 = vmatprep.subr.mxu0 0.0
    %2364 = vmatpush1.msra.mxu0 0.0
    %2365 = vmatprep.subr.mxu0 0.0
    %2366 = vmatpush1.msra.mxu0 0.0
    %2367 = vmatprep.subr.mxu0 0.0
    %2368 = vmatpush1.msra.mxu0 0.0
    %2369 = vmatprep.subr.mxu0 0.0
    %2370 = vmatpush1.msra.mxu0 0.0
    %2371 = vmatprep.subr.mxu0 0.0
    %2372 = vmatpush1.msra.mxu0 0.0
    %2373 = vmatprep.subr.mxu0 0.0
    %2374 = vmatpush1.msra.mxu0 0.0
    %2375 = vmatprep.subr.mxu0 0.0
    %2376 = vmatpush1.msra.mxu0 0.0
    %2377 = vmatprep.subr.mxu0 0.0
    %2378 = vmatpush1.msra.mxu0 0.0
    %2379 = vmatprep.subr.mxu0 0.0
    %2380 = vmatpush1.msra.mxu0 0.0
    %2381 = vmatprep.mubr.f32.mxu0 0.0
    %2382 = vmatmul.mubr.f32.gmra.mrb[0].mxu0 %v2315
    %v2383 = vpop.f32.mrb[0].mxu0
    %v2384 = vadd.f32 0.0, %v2383
    %v2385 = vpop.f32.mrb[0].mxu0
    %2386 = vdwg.mxu0
    %2387 = vrot.lane.b32.xlu0 %v380, 104
    %v2388 = vpop.permute.xlu0 %2387
    %2389 = vrot.lane.b32.xlu0 %v380, 72
    %v2390 = vpop.permute.xlu0 %2389
    %v2391 = vsel %vm401, %v2388, 0
    %v2393 = vsel %vm401, %v2390, 0
    %2395 = vmatprep.subr.mxu0 0.0
    %2396 = vmatpush1.xpose.msra.mxu0 %v2393
    %2397 = vmatprep.subr.mxu0 0.0
    %2398 = vmatpush1.xpose.msra.mxu0 0.0
    %2399 = vmatprep.subr.mxu0 0.0
    %2400 = vmatpush1.xpose.msra.mxu0 0.0
    %2401 = vmatprep.subr.mxu0 0.0
    %2402 = vmatpush1.xpose.msra.mxu0 0.0
    %2403 = vmatprep.subr.mxu0 0.0
    %2404 = vmatpush1.xpose.msra.mxu0 0.0
    %2405 = vmatprep.subr.mxu0 0.0
    %2406 = vmatpush1.xpose.msra.mxu0 0.0
    %2407 = vmatprep.subr.mxu0 0.0
    %2408 = vmatpush1.xpose.msra.mxu0 0.0
    %2409 = vmatprep.subr.mxu0 0.0
    %2410 = vmatpush1.xpose.msra.mxu0 0.0
    %2411 = vmatprep.subr.mxu0 0.0
    %2412 = vmatpush1.xpose.msra.mxu0 0.0
    %2413 = vmatprep.subr.mxu0 0.0
    %2414 = vmatpush1.xpose.msra.mxu0 0.0
    %2415 = vmatprep.subr.mxu0 0.0
    %2416 = vmatpush1.xpose.msra.mxu0 0.0
    %2417 = vmatprep.subr.mxu0 0.0
    %2418 = vmatpush1.xpose.msra.mxu0 0.0
    %2419 = vmatprep.subr.mxu0 0.0
    %2420 = vmatpush1.xpose.msra.mxu0 0.0
    %2421 = vmatprep.subr.mxu0 0.0
    %2422 = vmatpush1.xpose.msra.mxu0 0.0
    %2423 = vmatprep.subr.mxu0 0.0
    %2424 = vmatpush1.xpose.msra.mxu0 0.0
    %2425 = vmatprep.subr.mxu0 0.0
    %2426 = vmatpush1.xpose.msra.mxu0 0.0
    %2427 = vmatprep.subr.mxu0 0.0
    %2428 = vmatpush1.xpose.msra.mxu0 0.0
    %2429 = vmatprep.subr.mxu0 0.0
    %2430 = vmatpush1.xpose.msra.mxu0 0.0
    %2431 = vmatprep.subr.mxu0 0.0
    %2432 = vmatpush1.xpose.msra.mxu0 0.0
    %2433 = vmatprep.subr.mxu0 0.0
    %2434 = vmatpush1.xpose.msra.mxu0 0.0
    %2435 = vmatprep.subr.mxu0 0.0
    %2436 = vmatpush1.xpose.msra.mxu0 0.0
    %2437 = vmatprep.subr.mxu0 0.0
    %2438 = vmatpush1.xpose.msra.mxu0 0.0
    %2439 = vmatprep.subr.mxu0 0.0
    %2440 = vmatpush1.xpose.msra.mxu0 0.0
    %2441 = vmatprep.subr.mxu0 0.0
    %2442 = vmatpush1.xpose.msra.mxu0 0.0
    %2443 = vmatprep.subr.mxu0 0.0
    %2444 = vmatpush1.xpose.msra.mxu0 0.0
    %2445 = vmatprep.subr.mxu0 0.0
    %2446 = vmatpush1.xpose.msra.mxu0 0.0
    %2447 = vmatprep.subr.mxu0 0.0
    %2448 = vmatpush1.xpose.msra.mxu0 0.0
    %2449 = vmatprep.subr.mxu0 0.0
    %2450 = vmatpush1.xpose.msra.mxu0 0.0
    %2451 = vmatprep.subr.mxu0 0.0
    %2452 = vmatpush1.xpose.msra.mxu0 0.0
    %2453 = vmatprep.subr.mxu0 0.0
    %2454 = vmatpush1.xpose.msra.mxu0 0.0
    %2455 = vmatprep.subr.mxu0 0.0
    %2456 = vmatpush1.xpose.msra.mxu0 0.0
    %2457 = vmatprep.subr.mxu0 0.0
    %2458 = vmatpush1.xpose.msra.mxu0 0.0
    %2459 = vmatprep.mubr.f32.mxu0 0.0
    %2460 = vmatmul.mubr.f32.gmra.mrb[0].mxu0 %v2391
    %v2461 = vpop.f32.mrb[0].mxu0
    %v2462 = vadd.f32 0.0, %v2461
    %v2463 = vpop.f32.mrb[0].mxu0
    %2464 = vdwg.mxu0
    %2465 = vrot.lane.b32.xlu0 %v385, 104
    %v2466 = vpop.permute.xlu0 %2465
    %2467 = vrot.lane.b32.xlu0 %v385, 72
    %v2468 = vpop.permute.xlu0 %2467
    %v2469 = vsel %vm401, %v2466, 0
    %v2471 = vsel %vm401, %v2468, 0
    %2473 = vmatprep.subr.mxu0 0.0
    %2474 = vmatpush1.xpose.msra.mxu0 %v2471
    %2475 = vmatprep.subr.mxu0 0.0
    %2476 = vmatpush1.xpose.msra.mxu0 0.0
    %2477 = vmatprep.subr.mxu0 0.0
    %2478 = vmatpush1.xpose.msra.mxu0 0.0
    %2479 = vmatprep.subr.mxu0 0.0
    %2480 = vmatpush1.xpose.msra.mxu0 0.0
    %2481 = vmatprep.subr.mxu0 0.0
    %2482 = vmatpush1.xpose.msra.mxu0 0.0
    %2483 = vmatprep.subr.mxu0 0.0
    %2484 = vmatpush1.xpose.msra.mxu0 0.0
    %2485 = vmatprep.subr.mxu0 0.0
    %2486 = vmatpush1.xpose.msra.mxu0 0.0
    %2487 = vmatprep.subr.mxu0 0.0
    %2488 = vmatpush1.xpose.msra.mxu0 0.0
    %2489 = vmatprep.subr.mxu0 0.0
    %2490 = vmatpush1.xpose.msra.mxu0 0.0
    %2491 = vmatprep.subr.mxu0 0.0
    %2492 = vmatpush1.xpose.msra.mxu0 0.0
    %2493 = vmatprep.subr.mxu0 0.0
    %2494 = vmatpush1.xpose.msra.mxu0 0.0
    %2495 = vmatprep.subr.mxu0 0.0
    %2496 = vmatpush1.xpose.msra.mxu0 0.0
    %2497 = vmatprep.subr.mxu0 0.0
    %2498 = vmatpush1.xpose.msra.mxu0 0.0
    %2499 = vmatprep.subr.mxu0 0.0
    %2500 = vmatpush1.xpose.msra.mxu0 0.0
    %2501 = vmatprep.subr.mxu0 0.0
    %2502 = vmatpush1.xpose.msra.mxu0 0.0
    %2503 = vmatprep.subr.mxu0 0.0
    %2504 = vmatpush1.xpose.msra.mxu0 0.0
    %2505 = vmatprep.subr.mxu0 0.0
    %2506 = vmatpush1.xpose.msra.mxu0 0.0
    %2507 = vmatprep.subr.mxu0 0.0
    %2508 = vmatpush1.xpose.msra.mxu0 0.0
    %2509 = vmatprep.subr.mxu0 0.0
    %2510 = vmatpush1.xpose.msra.mxu0 0.0
    %2511 = vmatprep.subr.mxu0 0.0
    %2512 = vmatpush1.xpose.msra.mxu0 0.0
    %2513 = vmatprep.subr.mxu0 0.0
    %2514 = vmatpush1.xpose.msra.mxu0 0.0
    %2515 = vmatprep.subr.mxu0 0.0
    %2516 = vmatpush1.xpose.msra.mxu0 0.0
    %2517 = vmatprep.subr.mxu0 0.0
    %2518 = vmatpush1.xpose.msra.mxu0 0.0
    %2519 = vmatprep.subr.mxu0 0.0
    %2520 = vmatpush1.xpose.msra.mxu0 0.0
    %2521 = vmatprep.subr.mxu0 0.0
    %2522 = vmatpush1.xpose.msra.mxu0 0.0
    %2523 = vmatprep.subr.mxu0 0.0
    %2524 = vmatpush1.xpose.msra.mxu0 0.0
    %2525 = vmatprep.subr.mxu0 0.0
    %2526 = vmatpush1.xpose.msra.mxu0 0.0
    %2527 = vmatprep.subr.mxu0 0.0
    %2528 = vmatpush1.xpose.msra.mxu0 0.0
    %2529 = vmatprep.subr.mxu0 0.0
    %2530 = vmatpush1.xpose.msra.mxu0 0.0
    %2531 = vmatprep.subr.mxu0 0.0
    %2532 = vmatpush1.xpose.msra.mxu0 0.0
    %2533 = vmatprep.subr.mxu0 0.0
    %2534 = vmatpush1.xpose.msra.mxu0 0.0
    %2535 = vmatprep.subr.mxu0 0.0
    %2536 = vmatpush1.xpose.msra.mxu0 0.0
    %2537 = vmatprep.mubr.f32.mxu0 0.0
    %2538 = vmatmul.mubr.f32.gmra.mrb[0].mxu0 %v2469
    %v2539 = vpop.f32.mrb[0].mxu0
    %v2540 = vadd.f32 0.0, %v2539
    %v2541 = vpop.f32.mrb[0].mxu0
    %2542 = vdwg.mxu0
    %2543 = vrot.lane.b32.xlu0 %v390, 104
    %v2544 = vpop.permute.xlu0 %2543
    %2545 = vrot.lane.b32.xlu0 %v390, 72
    %v2546 = vpop.permute.xlu0 %2545
    %v2547 = vsel %vm401, %v2544, 0
    %v2549 = vsel %vm401, %v2546, 0
    %2551 = vmatprep.subr.mxu0 0.0
    %2552 = vmatpush1.xpose.msra.mxu0 %v2549
    %2553 = vmatprep.subr.mxu0 0.0
    %2554 = vmatpush1.xpose.msra.mxu0 0.0
    %2555 = vmatprep.subr.mxu0 0.0
    %2556 = vmatpush1.xpose.msra.mxu0 0.0
    %2557 = vmatprep.subr.mxu0 0.0
    %2558 = vmatpush1.xpose.msra.mxu0 0.0
    %2559 = vmatprep.subr.mxu0 0.0
    %2560 = vmatpush1.xpose.msra.mxu0 0.0
    %2561 = vmatprep.subr.mxu0 0.0
    %2562 = vmatpush1.xpose.msra.mxu0 0.0
    %2563 = vmatprep.subr.mxu0 0.0
    %2564 = vmatpush1.xpose.msra.mxu0 0.0
    %2565 = vmatprep.subr.mxu0 0.0
    %2566 = vmatpush1.xpose.msra.mxu0 0.0
    %2567 = vmatprep.subr.mxu0 0.0
    %2568 = vmatpush1.xpose.msra.mxu0 0.0
    %2569 = vmatprep.subr.mxu0 0.0
    %2570 = vmatpush1.xpose.msra.mxu0 0.0
    %2571 = vmatprep.subr.mxu0 0.0
    %2572 = vmatpush1.xpose.msra.mxu0 0.0
    %2573 = vmatprep.subr.mxu0 0.0
    %2574 = vmatpush1.xpose.msra.mxu0 0.0
    %2575 = vmatprep.subr.mxu0 0.0
    %2576 = vmatpush1.xpose.msra.mxu0 0.0
    %2577 = vmatprep.subr.mxu0 0.0
    %2578 = vmatpush1.xpose.msra.mxu0 0.0
    %2579 = vmatprep.subr.mxu0 0.0
    %2580 = vmatpush1.xpose.msra.mxu0 0.0
    %2581 = vmatprep.subr.mxu0 0.0
    %2582 = vmatpush1.xpose.msra.mxu0 0.0
    %2583 = vmatprep.subr.mxu0 0.0
    %2584 = vmatpush1.xpose.msra.mxu0 0.0
    %2585 = vmatprep.subr.mxu0 0.0
    %2586 = vmatpush1.xpose.msra.mxu0 0.0
    %2587 = vmatprep.subr.mxu0 0.0
    %2588 = vmatpush1.xpose.msra.mxu0 0.0
    %2589 = vmatprep.subr.mxu0 0.0
    %2590 = vmatpush1.xpose.msra.mxu0 0.0
    %2591 = vmatprep.subr.mxu0 0.0
    %2592 = vmatpush1.xpose.msra.mxu0 0.0
    %2593 = vmatprep.subr.mxu0 0.0
    %2594 = vmatpush1.xpose.msra.mxu0 0.0
    %2595 = vmatprep.subr.mxu0 0.0
    %2596 = vmatpush1.xpose.msra.mxu0 0.0
    %2597 = vmatprep.subr.mxu0 0.0
    %2598 = vmatpush1.xpose.msra.mxu0 0.0
    %2599 = vmatprep.subr.mxu0 0.0
    %2600 = vmatpush1.xpose.msra.mxu0 0.0
    %2601 = vmatprep.subr.mxu0 0.0
    %2602 = vmatpush1.xpose.msra.mxu0 0.0
    %2603 = vmatprep.subr.mxu0 0.0
    %2604 = vmatpush1.xpose.msra.mxu0 0.0
    %2605 = vmatprep.subr.mxu0 0.0
    %2606 = vmatpush1.xpose.msra.mxu0 0.0
    %2607 = vmatprep.subr.mxu0 0.0
    %2608 = vmatpush1.xpose.msra.mxu0 0.0
    %2609 = vmatprep.subr.mxu0 0.0
    %2610 = vmatpush1.xpose.msra.mxu0 0.0
    %2611 = vmatprep.subr.mxu0 0.0
    %2612 = vmatpush1.xpose.msra.mxu0 0.0
    %2613 = vmatprep.subr.mxu0 0.0
    %2614 = vmatpush1.xpose.msra.mxu0 0.0
    %2615 = vmatprep.mubr.f32.mxu0 0.0
    %2616 = vmatmul.mubr.f32.gmra.mrb[0].mxu0 %v2547
    %v2617 = vpop.f32.mrb[0].mxu0
    %v2618 = vadd.f32 0.0, %v2617
    %v2619 = vpop.f32.mrb[0].mxu0
    %2620 = vdwg.mxu0
    %2621 = vrot.lane.b32.xlu0 %v395, 104
    %v2622 = vpop.permute.xlu0 %2621
    %2623 = vrot.lane.b32.xlu0 %v395, 72
    %v2624 = vpop.permute.xlu0 %2623
    %v2625 = vsel %vm401, %v2622, 0
    %v2627 = vsel %vm401, %v2624, 0
    %2629 = vmatprep.subr.mxu0 0.0
    %2630 = vmatpush1.xpose.msra.mxu0 %v2627
    %2631 = vmatprep.subr.mxu0 0.0
    %2632 = vmatpush1.xpose.msra.mxu0 0.0
    %2633 = vmatprep.subr.mxu0 0.0
    %2634 = vmatpush1.xpose.msra.mxu0 0.0
    %2635 = vmatprep.subr.mxu0 0.0
    %2636 = vmatpush1.xpose.msra.mxu0 0.0
    %2637 = vmatprep.subr.mxu0 0.0
    %2638 = vmatpush1.xpose.msra.mxu0 0.0
    %2639 = vmatprep.subr.mxu0 0.0
    %2640 = vmatpush1.xpose.msra.mxu0 0.0
    %2641 = vmatprep.subr.mxu0 0.0
    %2642 = vmatpush1.xpose.msra.mxu0 0.0
    %2643 = vmatprep.subr.mxu0 0.0
    %2644 = vmatpush1.xpose.msra.mxu0 0.0
    %2645 = vmatprep.subr.mxu0 0.0
    %2646 = vmatpush1.xpose.msra.mxu0 0.0
    %2647 = vmatprep.subr.mxu0 0.0
    %2648 = vmatpush1.xpose.msra.mxu0 0.0
    %2649 = vmatprep.subr.mxu0 0.0
    %2650 = vmatpush1.xpose.msra.mxu0 0.0
    %2651 = vmatprep.subr.mxu0 0.0
    %2652 = vmatpush1.xpose.msra.mxu0 0.0
    %2653 = vmatprep.subr.mxu0 0.0
    %2654 = vmatpush1.xpose.msra.mxu0 0.0
    %2655 = vmatprep.subr.mxu0 0.0
    %2656 = vmatpush1.xpose.msra.mxu0 0.0
    %2657 = vmatprep.subr.mxu0 0.0
    %2658 = vmatpush1.xpose.msra.mxu0 0.0
    %2659 = vmatprep.subr.mxu0 0.0
    %2660 = vmatpush1.xpose.msra.mxu0 0.0
    %2661 = vmatprep.subr.mxu0 0.0
    %2662 = vmatpush1.xpose.msra.mxu0 0.0
    %2663 = vmatprep.subr.mxu0 0.0
    %2664 = vmatpush1.xpose.msra.mxu0 0.0
    %2665 = vmatprep.subr.mxu0 0.0
    %2666 = vmatpush1.xpose.msra.mxu0 0.0
    %2667 = vmatprep.subr.mxu0 0.0
    %2668 = vmatpush1.xpose.msra.mxu0 0.0
    %2669 = vmatprep.subr.mxu0 0.0
    %2670 = vmatpush1.xpose.msra.mxu0 0.0
    %2671 = vmatprep.subr.mxu0 0.0
    %2672 = vmatpush1.xpose.msra.mxu0 0.0
    %2673 = vmatprep.subr.mxu0 0.0
    %2674 = vmatpush1.xpose.msra.mxu0 0.0
    %2675 = vmatprep.subr.mxu0 0.0
    %2676 = vmatpush1.xpose.msra.mxu0 0.0
    %2677 = vmatprep.subr.mxu0 0.0
    %2678 = vmatpush1.xpose.msra.mxu0 0.0
    %2679 = vmatprep.subr.mxu0 0.0
    %2680 = vmatpush1.xpose.msra.mxu0 0.0
    %2681 = vmatprep.subr.mxu0 0.0
    %2682 = vmatpush1.xpose.msra.mxu0 0.0
    %2683 = vmatprep.subr.mxu0 0.0
    %2684 = vmatpush1.xpose.msra.mxu0 0.0
    %2685 = vmatprep.subr.mxu0 0.0
    %2686 = vmatpush1.xpose.msra.mxu0 0.0
    %2687 = vmatprep.subr.mxu0 0.0
    %2688 = vmatpush1.xpose.msra.mxu0 0.0
    %2689 = vmatprep.subr.mxu0 0.0
    %2690 = vmatpush1.xpose.msra.mxu0 0.0
    %2691 = vmatprep.subr.mxu0 0.0
    %2692 = vmatpush1.xpose.msra.mxu0 0.0
    %2693 = vmatprep.mubr.f32.mxu0 0.0
    %2694 = vmatmul.mubr.f32.gmra.mrb[0].mxu0 %v2625
    %v2695 = vpop.f32.mrb[0].mxu0
    %v2696 = vadd.f32 0.0, %v2695
    %v2697 = vpop.f32.mrb[0].mxu0
    %2698 = vdwg.mxu0
    %v2699 = vmul.f32 %v2462, 0.35355338
    %v2700 = vmul.f32 %v2540, 0.35355338
    %v2701 = vmul.f32 %v2618, 0.35355338
    %v2702 = vmul.f32 %v2696, 0.35355338
    %v2703 = vsel %vm401, %v2699, -inf
    %2704 = vmax.xlane.f32.xlu0 %v2703
    %v2705 = vpop.xlane.xlu0 %2704
    %v2706 = vsel %vm401, %v2700, -inf
    %2707 = vmax.xlane.f32.xlu0 %v2706
    %v2708 = vpop.xlane.xlu0 %2707
    %v2709 = vsel %vm401, %v2701, -inf
    %2710 = vmax.xlane.f32.xlu0 %v2709
    %v2711 = vpop.xlane.xlu0 %2710
    %v2712 = vsel %vm401, %v2702, -inf
    %2713 = vmax.xlane.f32.xlu0 %v2712
    %v2714 = vpop.xlane.xlu0 %2713
    %v2715 = vsub.f32 %v2699, %v2705
    %v2716 = vsub.f32 %v2700, %v2708
    %v2717 = vsub.f32 %v2701, %v2711
    %v2718 = vsub.f32 %v2702, %v2714
    %v2719 = vmul.f32 %v2715, 1.442695
    %v2720 = vpow.pop %v2719
    %v2721 = vmul.f32 %v2716, 1.442695
    %v2722 = vpow.pop %v2721
    %v2723 = vmul.f32 %v2717, 1.442695
    %v2724 = vpow.pop %v2723
    %v2725 = vmul.f32 %v2718, 1.442695
    %v2726 = vpow.pop %v2725
    %v2727 = vsel %vm401, %v2720, 0.0
    %2728 = vadd.xlane.f32.xlu0 %v2727
    %v2729 = vpop.xlane.xlu0 %2728
    %v2730 = vsel %vm401, %v2722, 0.0
    %2731 = vadd.xlane.f32.xlu0 %v2730
    %v2732 = vpop.xlane.xlu0 %2731
    %v2733 = vsel %vm401, %v2724, 0.0
    %2734 = vadd.xlane.f32.xlu0 %v2733
    %v2735 = vpop.xlane.xlu0 %2734
    %v2736 = vsel %vm401, %v2726, 0.0
    %2737 = vadd.xlane.f32.xlu0 %v2736
    %v2738 = vpop.xlane.xlu0 %2737
    %v2739 = vrcp.pop %v2729
    %v2740 = vmul.f32 %v2720, %v2739
    %v2741 = vrcp.pop %v2732
    %v2742 = vmul.f32 %v2722, %v2741
    %v2743 = vrcp.pop %v2735
    %v2744 = vmul.f32 %v2724, %v2743
    %v2745 = vrcp.pop %v2738
    %v2746 = vmul.f32 %v2726, %v2745
    %2747 = vrot.lane.b32.xlu0 %v380, 40
    %v2748 = vpop.permute.xlu0 %2747
    %v2751 = vsel %vm401, %v2740, 0
    %2753 = vmatprep.subr.mxu0 0.0
    %2754 = vmatpush1.msra.mxu0 %v2748
    %2755 = vmatprep.subr.mxu0 0.0
    %2756 = vmatpush1.msra.mxu0 0.0
    %2757 = vmatprep.subr.mxu0 0.0
    %2758 = vmatpush1.msra.mxu0 0.0
    %2759 = vmatprep.subr.mxu0 0.0
    %2760 = vmatpush1.msra.mxu0 0.0
    %2761 = vmatprep.subr.mxu0 0.0
    %2762 = vmatpush1.msra.mxu0 0.0
    %2763 = vmatprep.subr.mxu0 0.0
    %2764 = vmatpush1.msra.mxu0 0.0
    %2765 = vmatprep.subr.mxu0 0.0
    %2766 = vmatpush1.msra.mxu0 0.0
    %2767 = vmatprep.subr.mxu0 0.0
    %2768 = vmatpush1.msra.mxu0 0.0
    %2769 = vmatprep.subr.mxu0 0.0
    %2770 = vmatpush1.msra.mxu0 0.0
    %2771 = vmatprep.subr.mxu0 0.0
    %2772 = vmatpush1.msra.mxu0 0.0
    %2773 = vmatprep.subr.mxu0 0.0
    %2774 = vmatpush1.msra.mxu0 0.0
    %2775 = vmatprep.subr.mxu0 0.0
    %2776 = vmatpush1.msra.mxu0 0.0
    %2777 = vmatprep.subr.mxu0 0.0
    %2778 = vmatpush1.msra.mxu0 0.0
    %2779 = vmatprep.subr.mxu0 0.0
    %2780 = vmatpush1.msra.mxu0 0.0
    %2781 = vmatprep.subr.mxu0 0.0
    %2782 = vmatpush1.msra.mxu0 0.0
    %2783 = vmatprep.subr.mxu0 0.0
    %2784 = vmatpush1.msra.mxu0 0.0
    %2785 = vmatprep.subr.mxu0 0.0
    %2786 = vmatpush1.msra.mxu0 0.0
    %2787 = vmatprep.subr.mxu0 0.0
    %2788 = vmatpush1.msra.mxu0 0.0
    %2789 = vmatprep.subr.mxu0 0.0
    %2790 = vmatpush1.msra.mxu0 0.0
    %2791 = vmatprep.subr.mxu0 0.0
    %2792 = vmatpush1.msra.mxu0 0.0
    %2793 = vmatprep.subr.mxu0 0.0
    %2794 = vmatpush1.msra.mxu0 0.0
    %2795 = vmatprep.subr.mxu0 0.0
    %2796 = vmatpush1.msra.mxu0 0.0
    %2797 = vmatprep.subr.mxu0 0.0
    %2798 = vmatpush1.msra.mxu0 0.0
    %2799 = vmatprep.subr.mxu0 0.0
    %2800 = vmatpush1.msra.mxu0 0.0
    %2801 = vmatprep.subr.mxu0 0.0
    %2802 = vmatpush1.msra.mxu0 0.0
    %2803 = vmatprep.subr.mxu0 0.0
    %2804 = vmatpush1.msra.mxu0 0.0
    %2805 = vmatprep.subr.mxu0 0.0
    %2806 = vmatpush1.msra.mxu0 0.0
    %2807 = vmatprep.subr.mxu0 0.0
    %2808 = vmatpush1.msra.mxu0 0.0
    %2809 = vmatprep.subr.mxu0 0.0
    %2810 = vmatpush1.msra.mxu0 0.0
    %2811 = vmatprep.subr.mxu0 0.0
    %2812 = vmatpush1.msra.mxu0 0.0
    %2813 = vmatprep.subr.mxu0 0.0
    %2814 = vmatpush1.msra.mxu0 0.0
    %2815 = vmatprep.subr.mxu0 0.0
    %2816 = vmatpush1.msra.mxu0 0.0
    %2817 = vmatprep.mubr.f32.mxu0 0.0
    %2818 = vmatmul.mubr.f32.gmra.mrb[0].mxu0 %v2751
    %v2819 = vpop.f32.mrb[0].mxu0
    %v2820 = vadd.f32 0.0, %v2819
    %v2821 = vpop.f32.mrb[0].mxu0
    %2822 = vdwg.mxu0
    %2823 = vrot.lane.b32.xlu0 %v385, 40
    %v2824 = vpop.permute.xlu0 %2823
    %v2827 = vsel %vm401, %v2742, 0
    %2829 = vmatprep.subr.mxu0 0.0
    %2830 = vmatpush1.msra.mxu0 %v2824
    %2831 = vmatprep.subr.mxu0 0.0
    %2832 = vmatpush1.msra.mxu0 0.0
    %2833 = vmatprep.subr.mxu0 0.0
    %2834 = vmatpush1.msra.mxu0 0.0
    %2835 = vmatprep.subr.mxu0 0.0
    %2836 = vmatpush1.msra.mxu0 0.0
    %2837 = vmatprep.subr.mxu0 0.0
    %2838 = vmatpush1.msra.mxu0 0.0
    %2839 = vmatprep.subr.mxu0 0.0
    %2840 = vmatpush1.msra.mxu0 0.0
    %2841 = vmatprep.subr.mxu0 0.0
    %2842 = vmatpush1.msra.mxu0 0.0
    %2843 = vmatprep.subr.mxu0 0.0
    %2844 = vmatpush1.msra.mxu0 0.0
    %2845 = vmatprep.subr.mxu0 0.0
    %2846 = vmatpush1.msra.mxu0 0.0
    %2847 = vmatprep.subr.mxu0 0.0
    %2848 = vmatpush1.msra.mxu0 0.0
    %2849 = vmatprep.subr.mxu0 0.0
    %2850 = vmatpush1.msra.mxu0 0.0
    %2851 = vmatprep.subr.mxu0 0.0
    %2852 = vmatpush1.msra.mxu0 0.0
    %2853 = vmatprep.subr.mxu0 0.0
    %2854 = vmatpush1.msra.mxu0 0.0
    %2855 = vmatprep.subr.mxu0 0.0
    %2856 = vmatpush1.msra.mxu0 0.0
    %2857 = vmatprep.subr.mxu0 0.0
    %2858 = vmatpush1.msra.mxu0 0.0
    %2859 = vmatprep.subr.mxu0 0.0
    %2860 = vmatpush1.msra.mxu0 0.0
    %2861 = vmatprep.subr.mxu0 0.0
    %2862 = vmatpush1.msra.mxu0 0.0
    %2863 = vmatprep.subr.mxu0 0.0
    %2864 = vmatpush1.msra.mxu0 0.0
    %2865 = vmatprep.subr.mxu0 0.0
    %2866 = vmatpush1.msra.mxu0 0.0
    %2867 = vmatprep.subr.mxu0 0.0
    %2868 = vmatpush1.msra.mxu0 0.0
    %2869 = vmatprep.subr.mxu0 0.0
    %2870 = vmatpush1.msra.mxu0 0.0
    %2871 = vmatprep.subr.mxu0 0.0
    %2872 = vmatpush1.msra.mxu0 0.0
    %2873 = vmatprep.subr.mxu0 0.0
    %2874 = vmatpush1.msra.mxu0 0.0
    %2875 = vmatprep.subr.mxu0 0.0
    %2876 = vmatpush1.msra.mxu0 0.0
    %2877 = vmatprep.subr.mxu0 0.0
    %2878 = vmatpush1.msra.mxu0 0.0
    %2879 = vmatprep.subr.mxu0 0.0
    %2880 = vmatpush1.msra.mxu0 0.0
    %2881 = vmatprep.subr.mxu0 0.0
    %2882 = vmatpush1.msra.mxu0 0.0
    %2883 = vmatprep.subr.mxu0 0.0
    %2884 = vmatpush1.msra.mxu0 0.0
    %2885 = vmatprep.subr.mxu0 0.0
    %2886 = vmatpush1.msra.mxu0 0.0
    %2887 = vmatprep.subr.mxu0 0.0
    %2888 = vmatpush1.msra.mxu0 0.0
    %2889 = vmatprep.subr.mxu0 0.0
    %2890 = vmatpush1.msra.mxu0 0.0
    %2891 = vmatprep.subr.mxu0 0.0
    %2892 = vmatpush1.msra.mxu0 0.0
    %2893 = vmatprep.mubr.f32.mxu0 0.0
    %2894 = vmatmul.mubr.f32.gmra.mrb[0].mxu0 %v2827
    %v2895 = vpop.f32.mrb[0].mxu0
    %v2896 = vadd.f32 0.0, %v2895
    %v2897 = vpop.f32.mrb[0].mxu0
    %2898 = vdwg.mxu0
    %2899 = vrot.lane.b32.xlu0 %v390, 40
    %v2900 = vpop.permute.xlu0 %2899
    %v2903 = vsel %vm401, %v2744, 0
    %2905 = vmatprep.subr.mxu0 0.0
    %2906 = vmatpush1.msra.mxu0 %v2900
    %2907 = vmatprep.subr.mxu0 0.0
    %2908 = vmatpush1.msra.mxu0 0.0
    %2909 = vmatprep.subr.mxu0 0.0
    %2910 = vmatpush1.msra.mxu0 0.0
    %2911 = vmatprep.subr.mxu0 0.0
    %2912 = vmatpush1.msra.mxu0 0.0
    %2913 = vmatprep.subr.mxu0 0.0
    %2914 = vmatpush1.msra.mxu0 0.0
    %2915 = vmatprep.subr.mxu0 0.0
    %2916 = vmatpush1.msra.mxu0 0.0
    %2917 = vmatprep.subr.mxu0 0.0
    %2918 = vmatpush1.msra.mxu0 0.0
    %2919 = vmatprep.subr.mxu0 0.0
    %2920 = vmatpush1.msra.mxu0 0.0
    %2921 = vmatprep.subr.mxu0 0.0
    %2922 = vmatpush1.msra.mxu0 0.0
    %2923 = vmatprep.subr.mxu0 0.0
    %2924 = vmatpush1.msra.mxu0 0.0
    %2925 = vmatprep.subr.mxu0 0.0
    %2926 = vmatpush1.msra.mxu0 0.0
    %2927 = vmatprep.subr.mxu0 0.0
    %2928 = vmatpush1.msra.mxu0 0.0
    %2929 = vmatprep.subr.mxu0 0.0
    %2930 = vmatpush1.msra.mxu0 0.0
    %2931 = vmatprep.subr.mxu0 0.0
    %2932 = vmatpush1.msra.mxu0 0.0
    %2933 = vmatprep.subr.mxu0 0.0
    %2934 = vmatpush1.msra.mxu0 0.0
    %2935 = vmatprep.subr.mxu0 0.0
    %2936 = vmatpush1.msra.mxu0 0.0
    %2937 = vmatprep.subr.mxu0 0.0
    %2938 = vmatpush1.msra.mxu0 0.0
    %2939 = vmatprep.subr.mxu0 0.0
    %2940 = vmatpush1.msra.mxu0 0.0
    %2941 = vmatprep.subr.mxu0 0.0
    %2942 = vmatpush1.msra.mxu0 0.0
    %2943 = vmatprep.subr.mxu0 0.0
    %2944 = vmatpush1.msra.mxu0 0.0
    %2945 = vmatprep.subr.mxu0 0.0
    %2946 = vmatpush1.msra.mxu0 0.0
    %2947 = vmatprep.subr.mxu0 0.0
    %2948 = vmatpush1.msra.mxu0 0.0
    %2949 = vmatprep.subr.mxu0 0.0
    %2950 = vmatpush1.msra.mxu0 0.0
    %2951 = vmatprep.subr.mxu0 0.0
    %2952 = vmatpush1.msra.mxu0 0.0
    %2953 = vmatprep.subr.mxu0 0.0
    %2954 = vmatpush1.msra.mxu0 0.0
    %2955 = vmatprep.subr.mxu0 0.0
    %2956 = vmatpush1.msra.mxu0 0.0
    %2957 = vmatprep.subr.mxu0 0.0
    %2958 = vmatpush1.msra.mxu0 0.0
    %2959 = vmatprep.subr.mxu0 0.0
    %2960 = vmatpush1.msra.mxu0 0.0
    %2961 = vmatprep.subr.mxu0 0.0
    %2962 = vmatpush1.msra.mxu0 0.0
    %2963 = vmatprep.subr.mxu0 0.0
    %2964 = vmatpush1.msra.mxu0 0.0
    %2965 = vmatprep.subr.mxu0 0.0
    %2966 = vmatpush1.msra.mxu0 0.0
    %2967 = vmatprep.subr.mxu0 0.0
    %2968 = vmatpush1.msra.mxu0 0.0
    %2969 = vmatprep.mubr.f32.mxu0 0.0
    %2970 = vmatmul.mubr.f32.gmra.mrb[0].mxu0 %v2903
    %v2971 = vpop.f32.mrb[0].mxu0
    %v2972 = vadd.f32 0.0, %v2971
    %v2973 = vpop.f32.mrb[0].mxu0
    %2974 = vdwg.mxu0
    %2975 = vrot.lane.b32.xlu0 %v395, 40
    %v2976 = vpop.permute.xlu0 %2975
    %v2979 = vsel %vm401, %v2746, 0
    %2981 = vmatprep.subr.mxu0 0.0
    %2982 = vmatpush1.msra.mxu0 %v2976
    %2983 = vmatprep.subr.mxu0 0.0
    %2984 = vmatpush1.msra.mxu0 0.0
    %2985 = vmatprep.subr.mxu0 0.0
    %2986 = vmatpush1.msra.mxu0 0.0
    %2987 = vmatprep.subr.mxu0 0.0
    %2988 = vmatpush1.msra.mxu0 0.0
    %2989 = vmatprep.subr.mxu0 0.0
    %2990 = vmatpush1.msra.mxu0 0.0
    %2991 = vmatprep.subr.mxu0 0.0
    %2992 = vmatpush1.msra.mxu0 0.0
    %2993 = vmatprep.subr.mxu0 0.0
    %2994 = vmatpush1.msra.mxu0 0.0
    %2995 = vmatprep.subr.mxu0 0.0
    %2996 = vmatpush1.msra.mxu0 0.0
    %2997 = vmatprep.subr.mxu0 0.0
    %2998 = vmatpush1.msra.mxu0 0.0
    %2999 = vmatprep.subr.mxu0 0.0
    %3000 = vmatpush1.msra.mxu0 0.0
    %3001 = vmatprep.subr.mxu0 0.0
    %3002 = vmatpush1.msra.mxu0 0.0
    %3003 = vmatprep.subr.mxu0 0.0
    %3004 = vmatpush1.msra.mxu0 0.0
    %3005 = vmatprep.subr.mxu0 0.0
    %3006 = vmatpush1.msra.mxu0 0.0
    %3007 = vmatprep.subr.mxu0 0.0
    %3008 = vmatpush1.msra.mxu0 0.0
    %3009 = vmatprep.subr.mxu0 0.0
    %3010 = vmatpush1.msra.mxu0 0.0
    %3011 = vmatprep.subr.mxu0 0.0
    %3012 = vmatpush1.msra.mxu0 0.0
    %3013 = vmatprep.subr.mxu0 0.0
    %3014 = vmatpush1.msra.mxu0 0.0
    %3015 = vmatprep.subr.mxu0 0.0
    %3016 = vmatpush1.msra.mxu0 0.0
    %3017 = vmatprep.subr.mxu0 0.0
    %3018 = vmatpush1.msra.mxu0 0.0
    %3019 = vmatprep.subr.mxu0 0.0
    %3020 = vmatpush1.msra.mxu0 0.0
    %3021 = vmatprep.subr.mxu0 0.0
    %3022 = vmatpush1.msra.mxu0 0.0
    %3023 = vmatprep.subr.mxu0 0.0
    %3024 = vmatpush1.msra.mxu0 0.0
    %3025 = vmatprep.subr.mxu0 0.0
    %3026 = vmatpush1.msra.mxu0 0.0
    %3027 = vmatprep.subr.mxu0 0.0
    %3028 = vmatpush1.msra.mxu0 0.0
    %3029 = vmatprep.subr.mxu0 0.0
    %3030 = vmatpush1.msra.mxu0 0.0
    %3031 = vmatprep.subr.mxu0 0.0
    %3032 = vmatpush1.msra.mxu0 0.0
    %3033 = vmatprep.subr.mxu0 0.0
    %3034 = vmatpush1.msra.mxu0 0.0
    %3035 = vmatprep.subr.mxu0 0.0
    %3036 = vmatpush1.msra.mxu0 0.0
    %3037 = vmatprep.subr.mxu0 0.0
    %3038 = vmatpush1.msra.mxu0 0.0
    %3039 = vmatprep.subr.mxu0 0.0
    %3040 = vmatpush1.msra.mxu0 0.0
    %3041 = vmatprep.subr.mxu0 0.0
    %3042 = vmatpush1.msra.mxu0 0.0
    %3043 = vmatprep.subr.mxu0 0.0
    %3044 = vmatpush1.msra.mxu0 0.0
    %3045 = vmatprep.mubr.f32.mxu0 0.0
    %3046 = vmatmul.mubr.f32.gmra.mrb[0].mxu0 %v2979
    %v3047 = vpop.f32.mrb[0].mxu0
    %v3048 = vadd.f32 0.0, %v3047
    %v3049 = vpop.f32.mrb[0].mxu0
    %3050 = vdwg.mxu0
    %3055 = vrot.lane.b32.xlu0 %v1492, 8
    %v3056 = vpop.permute.xlu0 %3055
    %3057 = vrot.lane.b32.xlu0 %v1568, 8
    %v3058 = vpop.permute.xlu0 %3057
    %3059 = vrot.lane.b32.xlu0 %v1644, 8
    %v3060 = vpop.permute.xlu0 %3059
    %3061 = vrot.lane.b32.xlu0 %v1720, 8
    %v3062 = vpop.permute.xlu0 %3061
    %3071 = vrot.lane.b32.xlu0 %v2156, 16
    %v3072 = vpop.permute.xlu0 %3071
    %3073 = vrot.lane.b32.xlu0 %v2232, 16
    %v3074 = vpop.permute.xlu0 %3073
    %3075 = vrot.lane.b32.xlu0 %v2308, 16
    %v3076 = vpop.permute.xlu0 %3075
    %3077 = vrot.lane.b32.xlu0 %v2384, 16
    %v3078 = vpop.permute.xlu0 %3077
    %3087 = vrot.lane.b32.xlu0 %v2820, 24
    %v3088 = vpop.permute.xlu0 %3087
    %3089 = vrot.lane.b32.xlu0 %v2896, 24
    %v3090 = vpop.permute.xlu0 %3089
    %3091 = vrot.lane.b32.xlu0 %v2972, 24
    %v3092 = vpop.permute.xlu0 %3091
    %3093 = vrot.lane.b32.xlu0 %v3048, 24
    %v3094 = vpop.permute.xlu0 %3093
    %v3099 = vsel %vm401, %v828, %v3056
    %v3100 = vsel %vm401, %v904, %v3058
    %v3101 = vsel %vm401, %v980, %v3060
    %v3102 = vsel %vm401, %v1056, %v3062
    %vm3103 = vcmask 130048
    %v3104 = vsel %vm3103, %v3099, %v3072
    %v3105 = vsel %vm3103, %v3100, %v3074
    %v3106 = vsel %vm3103, %v3101, %v3076
    %v3107 = vsel %vm3103, %v3102, %v3078
    %vm3108 = vcmask 195584
    %v3109 = vsel %vm3108, %v3104, %v3088
    %v3110 = vsel %vm3108, %v3105, %v3090
    %v3111 = vsel %vm3108, %v3106, %v3092
    %v3112 = vsel %vm3108, %v3107, %v3094
    %v3113 = vlaneseq
    %v3114 = vshrl.u32 %v3113, 7
    %v3115 = vsub.s32 0, %v3114
    %v3116 = vrot.slane %v89, %v3115
    %v3118 = vsel %vm199, %v3109, 0
    %v3121 = vsel %vm199, %v3110, 0
    %v3124 = vsel %vm199, %v3111, 0
    %v3127 = vsel %vm199, %v3112, 0
    %3129 = vmatprep.subr.mxu0 0.0
    %3130 = vmatpush1.msra.mxu0 %v71
    %3131 = vmatprep.subr.mxu0 0.0
    %3132 = vmatpush1.msra.mxu0 %v72
    %3133 = vmatprep.subr.mxu0 0.0
    %3134 = vmatpush1.msra.mxu0 %v73
    %3135 = vmatprep.subr.mxu0 0.0
    %3136 = vmatpush1.msra.mxu0 %v74
    %3137 = vmatprep.subr.mxu0 0.0
    %3138 = vmatpush1.msra.mxu0 0.0
    %3139 = vmatprep.subr.mxu0 0.0
    %3140 = vmatpush1.msra.mxu0 0.0
    %3141 = vmatprep.subr.mxu0 0.0
    %3142 = vmatpush1.msra.mxu0 0.0
    %3143 = vmatprep.subr.mxu0 0.0
    %3144 = vmatpush1.msra.mxu0 0.0
    %3145 = vmatprep.subr.mxu0 0.0
    %3146 = vmatpush1.msra.mxu0 0.0
    %3147 = vmatprep.subr.mxu0 0.0
    %3148 = vmatpush1.msra.mxu0 0.0
    %3149 = vmatprep.subr.mxu0 0.0
    %3150 = vmatpush1.msra.mxu0 0.0
    %3151 = vmatprep.subr.mxu0 0.0
    %3152 = vmatpush1.msra.mxu0 0.0
    %3153 = vmatprep.subr.mxu0 0.0
    %3154 = vmatpush1.msra.mxu0 0.0
    %3155 = vmatprep.subr.mxu0 0.0
    %3156 = vmatpush1.msra.mxu0 0.0
    %3157 = vmatprep.subr.mxu0 0.0
    %3158 = vmatpush1.msra.mxu0 0.0
    %3159 = vmatprep.subr.mxu0 0.0
    %3160 = vmatpush1.msra.mxu0 0.0
    %3161 = vmatprep.subr.mxu0 0.0
    %3162 = vmatpush1.msra.mxu0 0.0
    %3163 = vmatprep.subr.mxu0 0.0
    %3164 = vmatpush1.msra.mxu0 0.0
    %3165 = vmatprep.subr.mxu0 0.0
    %3166 = vmatpush1.msra.mxu0 0.0
    %3167 = vmatprep.subr.mxu0 0.0
    %3168 = vmatpush1.msra.mxu0 0.0
    %3169 = vmatprep.subr.mxu0 0.0
    %3170 = vmatpush1.msra.mxu0 0.0
    %3171 = vmatprep.subr.mxu0 0.0
    %3172 = vmatpush1.msra.mxu0 0.0
    %3173 = vmatprep.subr.mxu0 0.0
    %3174 = vmatpush1.msra.mxu0 0.0
    %3175 = vmatprep.subr.mxu0 0.0
    %3176 = vmatpush1.msra.mxu0 0.0
    %3177 = vmatprep.subr.mxu0 0.0
    %3178 = vmatpush1.msra.mxu0 0.0
    %3179 = vmatprep.subr.mxu0 0.0
    %3180 = vmatpush1.msra.mxu0 0.0
    %3181 = vmatprep.subr.mxu0 0.0
    %3182 = vmatpush1.msra.mxu0 0.0
    %3183 = vmatprep.subr.mxu0 0.0
    %3184 = vmatpush1.msra.mxu0 0.0
    %3185 = vmatprep.subr.mxu0 0.0
    %3186 = vmatpush1.msra.mxu0 0.0
    %3187 = vmatprep.subr.mxu0 0.0
    %3188 = vmatpush1.msra.mxu0 0.0
    %3189 = vmatprep.subr.mxu0 0.0
    %3190 = vmatpush1.msra.mxu0 0.0
    %3191 = vmatprep.subr.mxu0 0.0
    %3192 = vmatpush1.msra.mxu0 0.0
    %3193 = vmatprep.mubr.f32.mxu0 0.0
    %3194 = vmatmul.mubr.f32.gmra.mrb[0].mxu0 %v3118
    %v3195 = vpop.f32.mrb[0].mxu0
    %v3196 = vadd.f32 %v3116, %v3195
    %v3197 = vpop.f32.mrb[0].mxu0
    %3198 = vmatprep.mubr.f32.mxu0 0.0
    %3199 = vmatmul.mubr.f32.gmra.mrb[0].mxu0 %v3121
    %v3200 = vpop.f32.mrb[0].mxu0
    %v3201 = vadd.f32 %v3116, %v3200
    %v3202 = vpop.f32.mrb[0].mxu0
    %3203 = vmatprep.mubr.f32.mxu0 0.0
    %3204 = vmatmul.mubr.f32.gmra.mrb[0].mxu0 %v3124
    %v3205 = vpop.f32.mrb[0].mxu0
    %v3206 = vadd.f32 %v3116, %v3205
    %v3207 = vpop.f32.mrb[0].mxu0
    %3208 = vmatprep.mubr.f32.mxu0 0.0
    %3209 = vmatmul.mubr.f32.gmra.mrb[0].mxu0 %v3127
    %v3210 = vpop.f32.mrb[0].mxu0
    %v3211 = vadd.f32 %v3116, %v3210
    %v3212 = vpop.f32.mrb[0].mxu0
    %3213 = vdwg.mxu0
    %v3214 = vadd.f32 %v279, %v3196
    %v3215 = vadd.f32 %v284, %v3201
    %v3216 = vadd.f32 %v289, %v3206
    %v3217 = vadd.f32 %v294, %v3211
    %v3218 = vsel %vm199, %v3214, 0.0
    %3219 = vadd.xlane.f32.xlu0 %v3218
    %v3220 = vpop.xlane.xlu0 %3219
    %v3221 = vsel %vm199, %v3215, 0.0
    %3222 = vadd.xlane.f32.xlu0 %v3221
    %v3223 = vpop.xlane.xlu0 %3222
    %v3224 = vsel %vm199, %v3216, 0.0
    %3225 = vadd.xlane.f32.xlu0 %v3224
    %v3226 = vpop.xlane.xlu0 %3225
    %v3227 = vsel %vm199, %v3217, 0.0
    %3228 = vadd.xlane.f32.xlu0 %v3227
    %v3229 = vpop.xlane.xlu0 %3228
    %v3230 = vrcp.pop 32.0
    %v3231 = vmul.f32 %v3220, %v3230
    %v3232 = vmul.f32 %v3223, %v3230
    %v3233 = vmul.f32 %v3226, %v3230
    %v3234 = vmul.f32 %v3229, %v3230
    %v3235 = vsub.f32 %v3214, %v3231
    %v3236 = vsub.f32 %v3215, %v3232
    %v3237 = vsub.f32 %v3216, %v3233
    %v3238 = vsub.f32 %v3217, %v3234
    %v3239 = vmul.f32 %v3235, %v3235
    %v3240 = vmul.f32 %v3236, %v3236
    %v3241 = vmul.f32 %v3237, %v3237
    %v3242 = vmul.f32 %v3238, %v3238
    %v3243 = vsel %vm199, %v3239, 0.0
    %3244 = vadd.xlane.f32.xlu0 %v3243
    %v3245 = vpop.xlane.xlu0 %3244
    %v3246 = vsel %vm199, %v3240, 0.0
    %3247 = vadd.xlane.f32.xlu0 %v3246
    %v3248 = vpop.xlane.xlu0 %3247
    %v3249 = vsel %vm199, %v3241, 0.0
    %3250 = vadd.xlane.f32.xlu0 %v3249
    %v3251 = vpop.xlane.xlu0 %3250
    %v3252 = vsel %vm199, %v3242, 0.0
    %3253 = vadd.xlane.f32.xlu0 %v3252
    %v3254 = vpop.xlane.xlu0 %3253
    %v3255 = vmul.f32 %v3245, %v3230
    %v3256 = vmul.f32 %v3248, %v3230
    %v3257 = vmul.f32 %v3251, %v3230
    %v3258 = vmul.f32 %v3254, %v3230
    %v3259 = vadd.f32 %v3255, 1e-05
    %v3260 = vadd.f32 %v3256, 1e-05
    %v3261 = vadd.f32 %v3257, 1e-05
    %v3262 = vadd.f32 %v3258, 1e-05
    %v3263 = vrsqrt.pop %v3259
    %v3264 = vrsqrt.pop %v3260
    %v3265 = vrsqrt.pop %v3261
    %v3266 = vrsqrt.pop %v3262
    %v3267 = vmul.f32 %v3235, %v3263
    %v3268 = vmul.f32 %v3236, %v3264
    %v3269 = vmul.f32 %v3237, %v3265
    %v3270 = vmul.f32 %v3238, %v3266
    %v3271 = vlaneseq
    %v3272 = vshrl.u32 %v3271, 7
    %v3273 = vsub.s32 0, %v3272
    %v3274 = vrot.slane %v90, %v3273
    %v3275 = vmul.f32 %v3267, %v3274
    %v3276 = vmul.f32 %v3268, %v3274
    %v3277 = vmul.f32 %v3269, %v3274
    %v3278 = vmul.f32 %v3270, %v3274
    %v3279 = vlaneseq
    %v3280 = vshrl.u32 %v3279, 7
    %v3281 = vsub.s32 0, %v3280
    %v3282 = vrot.slane %v91, %v3281
    %v3283 = vadd.f32 %v3275, %v3282
    %v3284 = vadd.f32 %v3276, %v3282
    %v3285 = vadd.f32 %v3277, %v3282
    %v3286 = vadd.f32 %v3278, %v3282
    %v3287 = vlaneseq
    %v3288 = vshrl.u32 %v3287, 7
    %v3289 = vsub.s32 0, %v3288
    %v3290 = vrot.slane %v88, %v3289
    %v3292 = vsel %vm199, %v3283, 0
    %v3295 = vsel %vm199, %v3284, 0
    %v3298 = vsel %vm199, %v3285, 0
    %v3301 = vsel %vm199, %v3286, 0
    %3303 = vmatprep.subr.mxu0 0.0
    %3304 = vmatpush1.msra.mxu0 %v75
    %3305 = vmatprep.subr.mxu0 0.0
    %3306 = vmatpush1.msra.mxu0 %v76
    %3307 = vmatprep.subr.mxu0 0.0
    %3308 = vmatpush1.msra.mxu0 %v77
    %3309 = vmatprep.subr.mxu0 0.0
    %3310 = vmatpush1.msra.mxu0 %v78
    %3311 = vmatprep.subr.mxu0 0.0
    %3312 = vmatpush1.msra.mxu0 0.0
    %3313 = vmatprep.subr.mxu0 0.0
    %3314 = vmatpush1.msra.mxu0 0.0
    %3315 = vmatprep.subr.mxu0 0.0
    %3316 = vmatpush1.msra.mxu0 0.0
    %3317 = vmatprep.subr.mxu0 0.0
    %3318 = vmatpush1.msra.mxu0 0.0
    %3319 = vmatprep.subr.mxu0 0.0
    %3320 = vmatpush1.msra.mxu0 0.0
    %3321 = vmatprep.subr.mxu0 0.0
    %3322 = vmatpush1.msra.mxu0 0.0
    %3323 = vmatprep.subr.mxu0 0.0
    %3324 = vmatpush1.msra.mxu0 0.0
    %3325 = vmatprep.subr.mxu0 0.0
    %3326 = vmatpush1.msra.mxu0 0.0
    %3327 = vmatprep.subr.mxu0 0.0
    %3328 = vmatpush1.msra.mxu0 0.0
    %3329 = vmatprep.subr.mxu0 0.0
    %3330 = vmatpush1.msra.mxu0 0.0
    %3331 = vmatprep.subr.mxu0 0.0
    %3332 = vmatpush1.msra.mxu0 0.0
    %3333 = vmatprep.subr.mxu0 0.0
    %3334 = vmatpush1.msra.mxu0 0.0
    %3335 = vmatprep.subr.mxu0 0.0
    %3336 = vmatpush1.msra.mxu0 0.0
    %3337 = vmatprep.subr.mxu0 0.0
    %3338 = vmatpush1.msra.mxu0 0.0
    %3339 = vmatprep.subr.mxu0 0.0
    %3340 = vmatpush1.msra.mxu0 0.0
    %3341 = vmatprep.subr.mxu0 0.0
    %3342 = vmatpush1.msra.mxu0 0.0
    %3343 = vmatprep.subr.mxu0 0.0
    %3344 = vmatpush1.msra.mxu0 0.0
    %3345 = vmatprep.subr.mxu0 0.0
    %3346 = vmatpush1.msra.mxu0 0.0
    %3347 = vmatprep.subr.mxu0 0.0
    %3348 = vmatpush1.msra.mxu0 0.0
    %3349 = vmatprep.subr.mxu0 0.0
    %3350 = vmatpush1.msra.mxu0 0.0
    %3351 = vmatprep.subr.mxu0 0.0
    %3352 = vmatpush1.msra.mxu0 0.0
    %3353 = vmatprep.subr.mxu0 0.0
    %3354 = vmatpush1.msra.mxu0 0.0
    %3355 = vmatprep.subr.mxu0 0.0
    %3356 = vmatpush1.msra.mxu0 0.0
    %3357 = vmatprep.subr.mxu0 0.0
    %3358 = vmatpush1.msra.mxu0 0.0
    %3359 = vmatprep.subr.mxu0 0.0
    %3360 = vmatpush1.msra.mxu0 0.0
    %3361 = vmatprep.subr.mxu0 0.0
    %3362 = vmatpush1.msra.mxu0 0.0
    %3363 = vmatprep.subr.mxu0 0.0
    %3364 = vmatpush1.msra.mxu0 0.0
    %3365 = vmatprep.subr.mxu0 0.0
    %3366 = vmatpush1.msra.mxu0 0.0
    %3367 = vmatprep.mubr.f32.mxu0 0.0
    %3368 = vmatmul.mubr.f32.gmra.mrb[0].mxu0 %v3292
    %v3369 = vpop.f32.mrb[0].mxu0
    %v3370 = vadd.f32 %v3290, %v3369
    %v3371 = vpop.f32.mrb[0].mxu0
    %3372 = vmatprep.mubr.f32.mxu0 0.0
    %3373 = vmatmul.mubr.f32.gmra.mrb[0].mxu0 %v3295
    %v3374 = vpop.f32.mrb[0].mxu0
    %v3375 = vadd.f32 %v3290, %v3374
    %v3376 = vpop.f32.mrb[0].mxu0
    %3377 = vmatprep.mubr.f32.mxu0 0.0
    %3378 = vmatmul.mubr.f32.gmra.mrb[0].mxu0 %v3298
    %v3379 = vpop.f32.mrb[0].mxu0
    %v3380 = vadd.f32 %v3290, %v3379
    %v3381 = vpop.f32.mrb[0].mxu0
    %3382 = vmatprep.mubr.f32.mxu0 0.0
    %3383 = vmatmul.mubr.f32.gmra.mrb[0].mxu0 %v3301
    %v3384 = vpop.f32.mrb[0].mxu0
    %v3385 = vadd.f32 %v3290, %v3384
    %v3386 = vpop.f32.mrb[0].mxu0
    %3387 = vdwg.mxu0
    %v3388 = vmax.f32 %v3370, 0.0
    %v3389 = vmax.f32 %v3375, 0.0
    %v3390 = vmax.f32 %v3380, 0.0
    %v3391 = vmax.f32 %v3385, 0.0
    %v3392 = vlaneseq
    %v3393 = vshrl.u32 %v3392, 7
    %v3394 = vsub.s32 0, %v3393
    %v3395 = vrot.slane %v94, %v3394
    %vm3396 = vcmask 523264
    %v3398 = vsel %vm3396, %v3388, 0
    %v3401 = vsel %vm3396, %v3389, 0
    %v3404 = vsel %vm3396, %v3390, 0
    %v3407 = vsel %vm3396, %v3391, 0
    %3409 = vmatprep.subr.mxu0 0.0
    %3410 = vmatpush1.msra.mxu0 %v79
    %3411 = vmatprep.subr.mxu0 0.0
    %3412 = vmatpush1.msra.mxu0 %v80
    %3413 = vmatprep.subr.mxu0 0.0
    %3414 = vmatpush1.msra.mxu0 %v81
    %3415 = vmatprep.subr.mxu0 0.0
    %3416 = vmatpush1.msra.mxu0 %v82
    %3417 = vmatprep.subr.mxu0 0.0
    %3418 = vmatpush1.msra.mxu0 %v83
    %3419 = vmatprep.subr.mxu0 0.0
    %3420 = vmatpush1.msra.mxu0 %v84
    %3421 = vmatprep.subr.mxu0 0.0
    %3422 = vmatpush1.msra.mxu0 %v85
    %3423 = vmatprep.subr.mxu0 0.0
    %3424 = vmatpush1.msra.mxu0 %v86
    %3425 = vmatprep.subr.mxu0 0.0
    %3426 = vmatpush1.msra.mxu0 0.0
    %3427 = vmatprep.subr.mxu0 0.0
    %3428 = vmatpush1.msra.mxu0 0.0
    %3429 = vmatprep.subr.mxu0 0.0
    %3430 = vmatpush1.msra.mxu0 0.0
    %3431 = vmatprep.subr.mxu0 0.0
    %3432 = vmatpush1.msra.mxu0 0.0
    %3433 = vmatprep.subr.mxu0 0.0
    %3434 = vmatpush1.msra.mxu0 0.0
    %3435 = vmatprep.subr.mxu0 0.0
    %3436 = vmatpush1.msra.mxu0 0.0
    %3437 = vmatprep.subr.mxu0 0.0
    %3438 = vmatpush1.msra.mxu0 0.0
    %3439 = vmatprep.subr.mxu0 0.0
    %3440 = vmatpush1.msra.mxu0 0.0
    %3441 = vmatprep.subr.mxu0 0.0
    %3442 = vmatpush1.msra.mxu0 0.0
    %3443 = vmatprep.subr.mxu0 0.0
    %3444 = vmatpush1.msra.mxu0 0.0
    %3445 = vmatprep.subr.mxu0 0.0
    %3446 = vmatpush1.msra.mxu0 0.0
    %3447 = vmatprep.subr.mxu0 0.0
    %3448 = vmatpush1.msra.mxu0 0.0
    %3449 = vmatprep.subr.mxu0 0.0
    %3450 = vmatpush1.msra.mxu0 0.0
    %3451 = vmatprep.subr.mxu0 0.0
    %3452 = vmatpush1.msra.mxu0 0.0
    %3453 = vmatprep.subr.mxu0 0.0
    %3454 = vmatpush1.msra.mxu0 0.0
    %3455 = vmatprep.subr.mxu0 0.0
    %3456 = vmatpush1.msra.mxu0 0.0
    %3457 = vmatprep.subr.mxu0 0.0
    %3458 = vmatpush1.msra.mxu0 0.0
    %3459 = vmatprep.subr.mxu0 0.0
    %3460 = vmatpush1.msra.mxu0 0.0
    %3461 = vmatprep.subr.mxu0 0.0
    %3462 = vmatpush1.msra.mxu0 0.0
    %3463 = vmatprep.subr.mxu0 0.0
    %3464 = vmatpush1.msra.mxu0 0.0
    %3465 = vmatprep.subr.mxu0 0.0
    %3466 = vmatpush1.msra.mxu0 0.0
    %3467 = vmatprep.subr.mxu0 0.0
    %3468 = vmatpush1.msra.mxu0 0.0
    %3469 = vmatprep.subr.mxu0 0.0
    %3470 = vmatpush1.msra.mxu0 0.0
    %3471 = vmatprep.subr.mxu0 0.0
    %3472 = vmatpush1.msra.mxu0 0.0
    %3473 = vmatprep.mubr.f32.mxu0 0.0
    %3474 = vmatmul.mubr.f32.gmra.mrb[0].mxu0 %v3398
    %v3475 = vpop.f32.mrb[0].mxu0
    %v3476 = vadd.f32 %v3395, %v3475
    %v3477 = vpop.f32.mrb[0].mxu0
    %3478 = vmatprep.mubr.f32.mxu0 0.0
    %3479 = vmatmul.mubr.f32.gmra.mrb[0].mxu0 %v3401
    %v3480 = vpop.f32.mrb[0].mxu0
    %v3481 = vadd.f32 %v3395, %v3480
    %v3482 = vpop.f32.mrb[0].mxu0
    %3483 = vmatprep.mubr.f32.mxu0 0.0
    %3484 = vmatmul.mubr.f32.gmra.mrb[0].mxu0 %v3404
    %v3485 = vpop.f32.mrb[0].mxu0
    %v3486 = vadd.f32 %v3395, %v3485
    %v3487 = vpop.f32.mrb[0].mxu0
    %3488 = vmatprep.mubr.f32.mxu0 0.0
    %3489 = vmatmul.mubr.f32.gmra.mrb[0].mxu0 %v3407
    %v3490 = vpop.f32.mrb[0].mxu0
    %v3491 = vadd.f32 %v3395, %v3490
    %v3492 = vpop.f32.mrb[0].mxu0
    %3493 = vdwg.mxu0
    %v3494 = vadd.f32 %v3283, %v3476
    %v3495 = vadd.f32 %v3284, %v3481
    %v3496 = vadd.f32 %v3285, %v3486
    %v3497 = vadd.f32 %v3286, %v3491
    %v3498 = vsel %vm199, %v3494, 0.0
    %3499 = vadd.xlane.f32.xlu0 %v3498
    %v3500 = vpop.xlane.xlu0 %3499
    %v3501 = vsel %vm199, %v3495, 0.0
    %3502 = vadd.xlane.f32.xlu0 %v3501
    %v3503 = vpop.xlane.xlu0 %3502
    %v3504 = vsel %vm199, %v3496, 0.0
    %3505 = vadd.xlane.f32.xlu0 %v3504
    %v3506 = vpop.xlane.xlu0 %3505
    %v3507 = vsel %vm199, %v3497, 0.0
    %3508 = vadd.xlane.f32.xlu0 %v3507
    %v3509 = vpop.xlane.xlu0 %3508
    %v3510 = vmul.f32 %v3500, %v3230
    %v3511 = vmul.f32 %v3503, %v3230
    %v3512 = vmul.f32 %v3506, %v3230
    %v3513 = vmul.f32 %v3509, %v3230
    %v3514 = vsub.f32 %v3494, %v3510
    %v3515 = vsub.f32 %v3495, %v3511
    %v3516 = vsub.f32 %v3496, %v3512
    %v3517 = vsub.f32 %v3497, %v3513
    %v3518 = vmul.f32 %v3514, %v3514
    %v3519 = vmul.f32 %v3515, %v3515
    %v3520 = vmul.f32 %v3516, %v3516
    %v3521 = vmul.f32 %v3517, %v3517
    %v3522 = vsel %vm199, %v3518, 0.0
    %3523 = vadd.xlane.f32.xlu0 %v3522
    %v3524 = vpop.xlane.xlu0 %3523
    %v3525 = vsel %vm199, %v3519, 0.0
    %3526 = vadd.xlane.f32.xlu0 %v3525
    %v3527 = vpop.xlane.xlu0 %3526
    %v3528 = vsel %vm199, %v3520, 0.0
    %3529 = vadd.xlane.f32.xlu0 %v3528
    %v3530 = vpop.xlane.xlu0 %3529
    %v3531 = vsel %vm199, %v3521, 0.0
    %3532 = vadd.xlane.f32.xlu0 %v3531
    %v3533 = vpop.xlane.xlu0 %3532
    %v3534 = vmul.f32 %v3524, %v3230
    %v3535 = vmul.f32 %v3527, %v3230
    %v3536 = vmul.f32 %v3530, %v3230
    %v3537 = vmul.f32 %v3533, %v3230
    %v3538 = vadd.f32 %v3534, 1e-05
    %v3539 = vadd.f32 %v3535, 1e-05
    %v3540 = vadd.f32 %v3536, 1e-05
    %v3541 = vadd.f32 %v3537, 1e-05
    %v3542 = vrsqrt.pop %v3538
    %v3543 = vrsqrt.pop %v3539
    %v3544 = vrsqrt.pop %v3540
    %v3545 = vrsqrt.pop %v3541
    %v3546 = vmul.f32 %v3514, %v3542
    %v3547 = vmul.f32 %v3515, %v3543
    %v3548 = vmul.f32 %v3516, %v3544
    %v3549 = vmul.f32 %v3517, %v3545
    %v3550 = vlaneseq
    %v3551 = vshrl.u32 %v3550, 7
    %v3552 = vsub.s32 0, %v3551
    %v3553 = vrot.slane %v92, %v3552
    %v3554 = vmul.f32 %v3546, %v3553
    %v3555 = vmul.f32 %v3547, %v3553
    %v3556 = vmul.f32 %v3548, %v3553
    %v3557 = vmul.f32 %v3549, %v3553
    %v3558 = vlaneseq
    %v3559 = vshrl.u32 %v3558, 7
    %v3560 = vsub.s32 0, %v3559
    %v3561 = vrot.slane %v93, %v3560
    %v3562 = vadd.f32 %v3554, %v3561
    %v3563 = vadd.f32 %v3555, %v3561
    %v3564 = vadd.f32 %v3556, %v3561
    %v3565 = vadd.f32 %v3557, %v3561
    %v3567 = vsel %vm199, %v63, 0
    %v3570 = vsel %vm199, %v64, 0
    %v3573 = vsel %vm199, %v65, 0
    %v3576 = vsel %vm199, %v66, 0
    %3578 = vmatprep.subr.mxu0 0.0
    %3579 = vmatpush1.msra.mxu0 %v3562
    %3580 = vmatprep.subr.mxu0 0.0
    %3581 = vmatpush1.msra.mxu0 %v3563
    %3582 = vmatprep.subr.mxu0 0.0
    %3583 = vmatpush1.msra.mxu0 %v3564
    %3584 = vmatprep.subr.mxu0 0.0
    %3585 = vmatpush1.msra.mxu0 %v3565
    %3586 = vmatprep.subr.mxu0 0.0
    %3587 = vmatpush1.msra.mxu0 0.0
    %3588 = vmatprep.subr.mxu0 0.0
    %3589 = vmatpush1.msra.mxu0 0.0
    %3590 = vmatprep.subr.mxu0 0.0
    %3591 = vmatpush1.msra.mxu0 0.0
    %3592 = vmatprep.subr.mxu0 0.0
    %3593 = vmatpush1.msra.mxu0 0.0
    %3594 = vmatprep.subr.mxu0 0.0
    %3595 = vmatpush1.msra.mxu0 0.0
    %3596 = vmatprep.subr.mxu0 0.0
    %3597 = vmatpush1.msra.mxu0 0.0
    %3598 = vmatprep.subr.mxu0 0.0
    %3599 = vmatpush1.msra.mxu0 0.0
    %3600 = vmatprep.subr.mxu0 0.0
    %3601 = vmatpush1.msra.mxu0 0.0
    %3602 = vmatprep.subr.mxu0 0.0
    %3603 = vmatpush1.msra.mxu0 0.0
    %3604 = vmatprep.subr.mxu0 0.0
    %3605 = vmatpush1.msra.mxu0 0.0
    %3606 = vmatprep.subr.mxu0 0.0
    %3607 = vmatpush1.msra.mxu0 0.0
    %3608 = vmatprep.subr.mxu0 0.0
    %3609 = vmatpush1.msra.mxu0 0.0
    %3610 = vmatprep.subr.mxu0 0.0
    %3611 = vmatpush1.msra.mxu0 0.0
    %3612 = vmatprep.subr.mxu0 0.0
    %3613 = vmatpush1.msra.mxu0 0.0
    %3614 = vmatprep.subr.mxu0 0.0
    %3615 = vmatpush1.msra.mxu0 0.0
    %3616 = vmatprep.subr.mxu0 0.0
    %3617 = vmatpush1.msra.mxu0 0.0
    %3618 = vmatprep.subr.mxu0 0.0
    %3619 = vmatpush1.msra.mxu0 0.0
    %3620 = vmatprep.subr.mxu0 0.0
    %3621 = vmatpush1.msra.mxu0 0.0
    %3622 = vmatprep.subr.mxu0 0.0
    %3623 = vmatpush1.msra.mxu0 0.0
    %3624 = vmatprep.subr.mxu0 0.0
    %3625 = vmatpush1.msra.mxu0 0.0
    %3626 = vmatprep.subr.mxu0 0.0
    %3627 = vmatpush1.msra.mxu0 0.0
    %3628 = vmatprep.subr.mxu0 0.0
    %3629 = vmatpush1.msra.mxu0 0.0
    %3630 = vmatprep.subr.mxu0 0.0
    %3631 = vmatpush1.msra.mxu0 0.0
    %3632 = vmatprep.subr.mxu0 0.0
    %3633 = vmatpush1.msra.mxu0 0.0
    %3634 = vmatprep.subr.mxu0 0.0
    %3635 = vmatpush1.msra.mxu0 0.0
    %3636 = vmatprep.subr.mxu0 0.0
    %3637 = vmatpush1.msra.mxu0 0.0
    %3638 = vmatprep.subr.mxu0 0.0
    %3639 = vmatpush1.msra.mxu0 0.0
    %3640 = vmatprep.subr.mxu0 0.0
    %3641 = vmatpush1.msra.mxu0 0.0
    %3642 = vmatprep.mubr.f32.mxu0 0.0
    %3643 = vmatmul.mubr.f32.gmra.mrb[0].mxu0 %v3567
    %v3644 = vpop.f32.mrb[0].mxu0
    %v3645 = vadd.f32 0.0, %v3644
    %v3646 = vpop.f32.mrb[0].mxu0
    %3647 = vmatprep.mubr.f32.mxu0 0.0
    %3648 = vmatmul.mubr.f32.gmra.mrb[0].mxu0 %v3570
    %v3649 = vpop.f32.mrb[0].mxu0
    %v3650 = vadd.f32 0.0, %v3649
    %v3651 = vpop.f32.mrb[0].mxu0
    %3652 = vmatprep.mubr.f32.mxu0 0.0
    %3653 = vmatmul.mubr.f32.gmra.mrb[0].mxu0 %v3573
    %v3654 = vpop.f32.mrb[0].mxu0
    %v3655 = vadd.f32 0.0, %v3654
    %v3656 = vpop.f32.mrb[0].mxu0
    %3657 = vmatprep.mubr.f32.mxu0 0.0
    %3658 = vmatmul.mubr.f32.gmra.mrb[0].mxu0 %v3576
    %v3659 = vpop.f32.mrb[0].mxu0
    %v3660 = vadd.f32 0.0, %v3659
    %v3661 = vpop.f32.mrb[0].mxu0
    %3662 = vdwg.mxu0
    %v3665 = vcombine.high %v3645, %v3645
    %v3667 = vunpack.c.l.s4 1983009808
    %v3668 = vunpack.c.0.s8 %v3667
    %v3669 = vlaneseq
    %v3670 = vshrl.u32 %v3669, 7
    %v3671 = vsub.s32 %v3668, %v3670
    %v3672 = vrot.slane %v3645, %v3671
    %v3674 = vunpack.c.l.s4 1983009808
    %v3675 = vunpack.c.0.s8 %v3674
    %v3676 = vlaneseq
    %v3677 = vshrl.u32 %v3676, 7
    %v3678 = vsub.s32 %v3675, %v3677
    %v3679 = vrot.slane %v3665, %v3678
    %v3680 = vcombine.high %v3672, %v3672
    %v3681 = vcombine.high %v3679, %v3679
    %v3682 = vcombine.high %v3650, %v3650
    %v3684 = vunpack.c.l.s4 1983009808
    %v3685 = vunpack.c.0.s8 %v3684
    %v3686 = vlaneseq
    %v3687 = vshrl.u32 %v3686, 7
    %v3688 = vsub.s32 %v3685, %v3687
    %v3689 = vrot.slane %v3650, %v3688
    %v3691 = vunpack.c.l.s4 1983009808
    %v3692 = vunpack.c.0.s8 %v3691
    %v3693 = vlaneseq
    %v3694 = vshrl.u32 %v3693, 7
    %v3695 = vsub.s32 %v3692, %v3694
    %v3696 = vrot.slane %v3682, %v3695
    %v3697 = vcombine.high %v3689, %v3689
    %v3698 = vcombine.high %v3696, %v3696
    %vm3707 = vcmask 254976
    %3708 = vst.msk [vmem:[#allocation8] sm:$0x3] %vm3707, %v3672
    %3709 = vst.msk [vmem:[#allocation8 + $0x2] sm:$0x3] %vm3707, %v3680
    %3710 = vst.msk [vmem:[#allocation8 + $0x4] sm:$0x3] %vm3707, %v3679
    %3711 = vst.msk [vmem:[#allocation8 + $0x6] sm:$0x3] %vm3707, %v3681
    %3712 = vst.msk [vmem:[#allocation8 + $0x8] sm:$0x3] %vm3707, %v3689
    %3713 = vst.msk [vmem:[#allocation8 + $0xa] sm:$0x3] %vm3707, %v3697
    %3714 = vst.msk [vmem:[#allocation8 + $0xc] sm:$0x3] %vm3707, %v3696
    %3715 = vst.msk [vmem:[#allocation8 + $0xe] sm:$0x3] %vm3707, %v3698
    %v3718 = vcombine.high %v3655, %v3655
    %v3720 = vunpack.c.l.s4 1983009808
    %v3721 = vunpack.c.0.s8 %v3720
    %v3722 = vlaneseq
    %v3723 = vshrl.u32 %v3722, 7
    %v3724 = vsub.s32 %v3721, %v3723
    %v3725 = vrot.slane %v3655, %v3724
    %v3727 = vunpack.c.l.s4 1983009808
    %v3728 = vunpack.c.0.s8 %v3727
    %v3729 = vlaneseq
    %v3730 = vshrl.u32 %v3729, 7
    %v3731 = vsub.s32 %v3728, %v3730
    %v3732 = vrot.slane %v3718, %v3731
    %v3733 = vcombine.high %v3725, %v3725
    %v3734 = vcombine.high %v3732, %v3732
    %v3735 = vcombine.high %v3660, %v3660
    %v3737 = vunpack.c.l.s4 1983009808
    %v3738 = vunpack.c.0.s8 %v3737
    %v3739 = vlaneseq
    %v3740 = vshrl.u32 %v3739, 7
    %v3741 = vsub.s32 %v3738, %v3740
    %v3742 = vrot.slane %v3660, %v3741
    %v3744 = vunpack.c.l.s4 1983009808
    %v3745 = vunpack.c.0.s8 %v3744
    %v3746 = vlaneseq
    %v3747 = vshrl.u32 %v3746, 7
    %v3748 = vsub.s32 %v3745, %v3747
    %v3749 = vrot.slane %v3735, %v3748
    %v3750 = vcombine.high %v3742, %v3742
    %v3751 = vcombine.high %v3749, %v3749
    %3760 = vst.msk [vmem:[#allocation9] sm:$0x3] %vm3707, %v3725
    %3761 = vst.msk [vmem:[#allocation9 + $0x2] sm:$0x3] %vm3707, %v3733
    %3762 = vst.msk [vmem:[#allocation9 + $0x4] sm:$0x3] %vm3707, %v3732
    %3763 = vst.msk [vmem:[#allocation9 + $0x6] sm:$0x3] %vm3707, %v3734
    %3764 = vst.msk [vmem:[#allocation9 + $0x8] sm:$0x3] %vm3707, %v3742
    %3765 = vst.msk [vmem:[#allocation9 + $0xa] sm:$0x3] %vm3707, %v3750
    %3766 = vst.msk [vmem:[#allocation9 + $0xc] sm:$0x3] %vm3707, %v3749
    %3767 = vst.msk [vmem:[#allocation9 + $0xe] sm:$0x3] %vm3707, %v3751
    // Predicated region
    $region26: #{transformer_encoder_layer_forward.1} parent=1 // pred_check
      _
    $region27: #{transformer_encoder_layer_forward.1} parent=1 // pred_check_branch
      %3769 = sbr.rel (0) target = $region29
    $region28: #{transformer_encoder_layer_forward.1} parent=1 // pred_region
      %s3771 = ssub.s32 256, 256
      %3772 = vsyncadd [#allocation4], %s3771
      %s3773 = sshll.u32 [#allocation8], 4
      %s3774 = int_to_ptr.vmem [resolvable:$true] %s3773
      %3779 = dma.vmem_to_hbm [thread:$0]  %s3774, 256, %s3, [#allocation4], 32, 32, 2
    $region29: #{transformer_encoder_layer_forward.1} parent=1 // pred_fallthru
      _
    // Predicated region
    $region30: #{transformer_encoder_layer_forward.1} parent=1 // pred_check
      _
    $region31: #{transformer_encoder_layer_forward.1} parent=1 // pred_check_branch
      %3781 = sbr.rel (0) target = $region33
    $region32: #{transformer_encoder_layer_forward.1} parent=1 // pred_region
      %s3783 = ssub.s32 256, 256
      %3784 = vsyncadd [#allocation10], %s3783
      %s3785 = sshll.u32 [#allocation9], 4
      %s3786 = int_to_ptr.vmem [resolvable:$true] %s3785
      %3791 = dma.vmem_to_hbm [thread:$0]  %s3786, 256, %s4, [#allocation10], 32, 32, 2
    $region33: #{transformer_encoder_layer_forward.1} parent=1 // pred_fallthru
      _
    // Predicated region
    $region34: #{transformer_encoder_layer_forward.1} parent=1 // pred_check
      _
    $region35: #{transformer_encoder_layer_forward.1} parent=1 // pred_check_branch
      %3793 = sbr.rel (0) target = $region37
    $region36: #{transformer_encoder_layer_forward.1} parent=1 // pred_region
      %3794 = dma.done [#allocation4], 256
    $region37: #{transformer_encoder_layer_forward.1} parent=1 // pred_fallthru
      _
    // Predicated region
    $region38: #{transformer_encoder_layer_forward.1} parent=1 // pred_check
      _
    $region39: #{transformer_encoder_layer_forward.1} parent=1 // pred_check_branch
      %3796 = sbr.rel (0) target = $region41
    $region40: #{transformer_encoder_layer_forward.1} parent=1 // pred_region
      %3797 = dma.done [#allocation10], 256
    $region41: #{transformer_encoder_layer_forward.1} parent=1 // pred_fallthru
      _
    %3798 = vsyncpa [#allocation3], 1
    %3799 = vsyncpa [#allocation6], 1
    %3800 = vsyncpa [#allocation4], 1
    %3801 = vsyncpa [#allocation10], 1

</llo_original>
